<compile_context>
chip_gen: v7x
topology: tpu7x:2x2x1
jax: 0.10.0
libtpu: 0.0.40
codegen_flags: <defaults>
</compile_context>

<pallas_src>
import functools

import numpy as np
import jax
import jax.numpy as jnp
from jax.experimental import pallas as pl
from jax.experimental.pallas import tpu as pltpu


def decoder_darnn_kernel(enc_ref, y_ref, w_enc_ref, w_step_ref, w2bd_ref,
                         slab_ref, out_ref, *, B, T1, E, D):
  f32 = jnp.float32
  TE = T1 * E

  enc_flat = enc_ref[...]                          # (B, TE)
  w_enc = w_enc_ref[...]                           # (TE, TE + 2*T1)
  w_step = w_step_ref[...]                         # (2D, TE + 4D)
  w2_bd = w2bd_ref[...]                            # (TE, T1)

  b1_tiled = slab_ref[0:1, :TE]                    # (1, TE)
  w_ih = slab_ref[1:2, :4 * D]                     # (1, 4D)  gate order i|f|g|o
  b_g = slab_ref[2:3, :4 * D]                      # (1, 4D)  b_ih+b_hh+b_fc*W_ih
  wf_h = slab_ref[3:4, :D]                         # (1, D)   final weight on hidden
  fcw_y = slab_ref[4:5, 0:1]                       # (1, 1)   fc weight on y_t
  bf = slab_ref[4:5, 1:2]                          # (1, 1)   final bias

  # ---- hoisted, loop-invariant compute ------------------------------------
  # One MXU dot produces: tiled encoder attention projection (+b1),
  # enc . fc_ctx_weights, and enc . final_ctx_weights.
  hoist = jnp.dot(enc_flat, w_enc, preferred_element_type=f32)   # (B, TE+2*T1)
  enc_proj = hoist[:, :TE] + b1_tiled                            # (B, TE)
  enc_fc = hoist[:, TE:TE + T1]                                  # (B, T1)
  enc_wf = hoist[:, TE + T1:TE + 2 * T1]                         # (B, T1)
  y_fc = y_ref[...] * fcw_y                                      # (B, T1)
  w_ih_b = jnp.broadcast_to(w_ih, (B, 4 * D))                    # hoisted bcasts
  b_g_b = jnp.broadcast_to(b_g, (B, 4 * D))

  hidden = jnp.zeros((B, D), f32)
  cell = jnp.zeros((B, D), f32)
  attn = jnp.zeros((B, T1), f32)

  # Fully unrolled decode loop (T1 small & static); static t => static slices.
  # TODO(synk): for long horizons (T1 >> 16) switch to a partially unrolled
  # lax.fori_loop to bound live vreg ranges.
  for t in range(T1):
    # --- fused per-step MXU dot: attention proj (tiled) + gate partial -----
    hc = jnp.concatenate([hidden, cell], axis=1)                 # (B, 2D)
    big = jnp.dot(hc, w_step, preferred_element_type=f32)        # (B, TE+4D)

    # --- input attention over encoder timesteps (lane-dense slab) ----------
    pre = jnp.tanh(enc_proj + big[:, :TE])                       # (B, TE)
    score = jnp.dot(pre, w2_bd, preferred_element_type=f32)      # (B, T1)
    score = score - jnp.max(score, axis=-1, keepdims=True)
    ex = jnp.exp(score)
    inv = pl.reciprocal(jnp.sum(ex, axis=-1, keepdims=True), approx=True)
    attn = ex * inv                                              # softmax (B, T1)

    # --- y_tilde = fc([context, y_t]) without materializing context --------
    y_tilde = (jnp.sum(attn * enc_fc, axis=-1, keepdims=True)
               + y_fc[:, t:t + 1])                               # (B, 1)

    # --- one LSTM cell step (gate partial product already in `big`) --------
    gates = y_tilde * w_ih_b + big[:, TE:] + b_g_b               # (B, 4D)
    sig = jax.nn.sigmoid(gates)
    i_g = sig[:, 0 * D:1 * D]
    f_g = sig[:, 1 * D:2 * D]
    o_g = sig[:, 3 * D:4 * D]
    g_g = jnp.tanh(gates[:, 2 * D:3 * D])
    cell = f_g * cell + i_g * g_g
    hidden = o_g * jnp.tanh(cell)

  # --- y_pred = fc_final([hidden, context]); context.wf_e == attn.enc_wf ---
  out_ref[...] = (jnp.sum(hidden * wf_h, axis=-1, keepdims=True)
                  + jnp.sum(attn * enc_wf, axis=-1, keepdims=True)
                  + bf)


def decoder_darnn_pallas(input_encoded, y_history, params):
  B, T1, E = input_encoded.shape
  D = params["W_hh"].shape[1]
  TE = T1 * E
  f32 = jnp.float32

  W1 = params["W1"].astype(f32)                  # (E, 2D+E)
  W2 = params["W2"].astype(f32)                  # (1, E)
  W_ih = params["W_ih"].astype(f32)              # (4D, 1)
  W_hh = params["W_hh"].astype(f32)              # (4D, D)
  W_fc = params["W_fc"].astype(f32)              # (1, E+1)
  W_final = params["W_final"].astype(f32)        # (1, D+E)

  w_ih_row = W_ih[:, 0]                          # (4D,) gate order i,f,g,o
  # Fold fc bias into the LSTM gate bias (y_tilde enters gates as y_tilde*W_ih).
  b_gate = (params["b_ih"] + params["b_hh"]
            + params["b_fc"][0] * w_ih_row).astype(f32)

  w_hc = W1[:, :2 * D].T                         # (2D, E)  hidden/cell proj
  w1e = W1[:, 2 * D:].T                          # (E, E)   encoder proj
  fcw_e = W_fc[0, :E]                            # (E,)     fc weight on context
  fcw_y = W_fc[0, E]                             #          fc weight on y_t
  wf_h = W_final[0, :D]                          # (D,)     final weight on hidden
  wf_e = W_final[0, D:]                          # (E,)     final weight on context

  eye = jnp.eye(T1, dtype=f32)
  # Hoisted encoder-side weights, all applied by one in-kernel dot:
  #   [block-diag(w1e) | block-diag(fcw_e) | block-diag(wf_e)]
  w_enc = jnp.concatenate([
      jnp.kron(eye, w1e),                        # (TE, TE)
      jnp.kron(eye, fcw_e[:, None]),             # (TE, T1)
      jnp.kron(eye, wf_e[:, None]),              # (TE, T1)
  ], axis=1)                                     # (TE, TE + 2*T1)

  # Fused per-step weights: [w_hc tiled over T1 | gate block], where the cell
  # rows of the gate block are zero (only hidden feeds the LSTM gates).
  w_hh_pad = jnp.concatenate([W_hh.T, jnp.zeros((D, 4 * D), f32)], axis=0)
  w_step = jnp.concatenate([jnp.tile(w_hc, (1, T1)), w_hh_pad], axis=1)

  # Block-diagonal w2 so the score reduce is a single MXU dot.
  w2_bd = jnp.kron(eye, W2[0][:, None])          # (TE, T1)
  # b2 dropped: uniform shift, softmax-invariant.

  # One small slab holding all bias/weight rows and scalars (fewer startup DMAs).
  W_slab = max(TE, 4 * D, D, 2)

  def row(v):
    v = jnp.asarray(v, f32).reshape(-1)
    return jnp.pad(v, (0, W_slab - v.shape[0]))

  slab = jnp.stack([
      row(jnp.tile(params["b1"].astype(f32), T1)),          # 0: b1 tiled   (TE)
      row(w_ih_row),                                         # 1: W_ih       (4D)
      row(b_gate),                                           # 2: gate bias  (4D)
      row(wf_h),                                             # 3: final h w  (D)
      row(jnp.stack([fcw_y, params["b_final"].astype(f32)[0]])),  # 4: scalars
  ], axis=0)                                                 # (5, W_slab)

  args = (
      input_encoded.astype(f32).reshape(B, TE),              # (B, TE) lane-dense
      y_history.astype(f32),                                 # (B, T1)
      w_enc,                                                 # (TE, TE+2*T1)
      w_step,                                                # (2D, TE+4D)
      w2_bd,                                                 # (TE, T1)
      slab,                                                  # (5, W_slab)
  )

  kernel = functools.partial(decoder_darnn_kernel, B=B, T1=T1, E=E, D=D)
  return pl.pallas_call(
      kernel,
      out_shape=jax.ShapeDtypeStruct((B, 1), f32),
      in_specs=[pl.BlockSpec(memory_space=pltpu.MemorySpace.VMEM)] * len(args),
      out_specs=pl.BlockSpec(memory_space=pltpu.MemorySpace.VMEM),
  )(*args)
  # TODO(synk): for large batch, add a batch grid axis with
  # dimension_semantics=("parallel",) (DMA pipelining + v7x second TensorCore);
  # not worth it at B=8.


def decoder_darnn_ref(input_encoded, y_history, params):
  """Pure-JAX mirror of the PyTorch forward (for correctness check)."""
  B, T1, E = input_encoded.shape
  D = params["W_hh"].shape[1]
  hidden = jnp.zeros((B, D), jnp.float32)
  cell = jnp.zeros((B, D), jnp.float32)
  context = jnp.zeros((B, E), jnp.float32)
  for t in range(T1):
    x = jnp.concatenate(
        [jnp.broadcast_to(hidden[:, None, :], (B, T1, D)),
         jnp.broadcast_to(cell[:, None, :], (B, T1, D)),
         input_encoded], axis=2)
    z = jnp.tanh(x.reshape(-1, 2 * D + E) @ params["W1"].T + params["b1"])
    z = z @ params["W2"].T + params["b2"]                       # (B*T1, 1)
    attn = jax.nn.softmax(z.reshape(B, T1), axis=1)
    context = jnp.einsum("bt,bte->be", attn, input_encoded)
    y_tilde = (jnp.concatenate([context, y_history[:, t:t + 1]], axis=1)
               @ params["W_fc"].T + params["b_fc"])             # (B, 1)
    gates = (y_tilde @ params["W_ih"].T + params["b_ih"]
             + hidden @ params["W_hh"].T + params["b_hh"])      # (B, 4D)
    i = jax.nn.sigmoid(gates[:, :D])
    f = jax.nn.sigmoid(gates[:, D:2 * D])
    g = jnp.tanh(gates[:, 2 * D:3 * D])
    o = jax.nn.sigmoid(gates[:, 3 * D:])
    cell = f * cell + i * g
    hidden = o * jnp.tanh(cell)
  return (jnp.concatenate([hidden, context], axis=1)
          @ params["W_final"].T + params["b_final"])


def make_params(key, E, D):
  ks = jax.random.split(key, 12)
  n = lambda k, shape, s=0.1: s * jax.random.normal(k, shape, dtype=jnp.float32)
  return {
      "W1": n(ks[0], (E, 2 * D + E)),          # attn_layer[0]
      "b1": n(ks[1], (E,)),
      "W2": n(ks[2], (1, E)),                  # attn_layer[2]
      "b2": n(ks[3], (1,)),
      "W_ih": n(ks[4], (4 * D, 1)),            # LSTM input weights
      "W_hh": n(ks[5], (4 * D, D)),            # LSTM hidden weights
      "b_ih": n(ks[6], (4 * D,)),
      "b_hh": n(ks[7], (4 * D,)),
      "W_fc": n(ks[8], (1, E + 1), 1.0),       # fc (weight.data.normal_())
      "b_fc": n(ks[9], (1,)),
      "W_final": n(ks[10], (1, D + E)),        # fc_final
      "b_final": n(ks[11], (1,)),
  }


if __name__ == "__main__":
  B = 8            # batch
  T = 9            # -> T-1 = 8 decode / encoder steps
  E = 32           # encoder_hidden_size
  D = 32           # decoder_hidden_size
  T1 = T - 1

  key = jax.random.PRNGKey(0)
  k_enc, k_y, k_p = jax.random.split(key, 3)
  input_encoded = jax.random.normal(k_enc, (B, T1, E), dtype=jnp.float32)
  y_history = jax.random.normal(k_y, (B, T1), dtype=jnp.float32)
  params = make_params(k_p, E, D)

  out = decoder_darnn_pallas(input_encoded, y_history, params)
  out = jax.block_until_ready(out)

  ref = decoder_darnn_ref(input_encoded, y_history, params)
  assert out.shape == (B, 1)
  np.testing.assert_allclose(np.asarray(out), np.asarray(ref), rtol=5e-3, atol=5e-3)

  print("KERNEL_OK")
</pallas_src>

<mosaic_0001>
module attributes {stable_mosaic.version = 11 : i64} {
  func.func @decoder_darnn_kernel(%arg0: memref<8x256xf32, #tpu.memory_space<vmem>>, %arg1: memref<8x8xf32, #tpu.memory_space<vmem>>, %arg2: memref<256x272xf32, #tpu.memory_space<vmem>>, %arg3: memref<64x384xf32, #tpu.memory_space<vmem>>, %arg4: memref<256x8xf32, #tpu.memory_space<vmem>>, %arg5: memref<5x256xf32, #tpu.memory_space<vmem>>, %arg6: memref<8x1xf32, #tpu.memory_space<vmem>>) attributes {dimension_semantics = [], scalar_prefetch = 0 : i64, scratch_operands = 0 : i64, tpu.core_type = #tpu.core_type<tc>} {
    %c0 = arith.constant 0 : index
    %c0_0 = arith.constant 0 : index
    %0 = vector.load %arg0[%c0, %c0_0] : memref<8x256xf32, #tpu.memory_space<vmem>>, vector<8x256xf32>
    %c0_1 = arith.constant 0 : index
    %c0_2 = arith.constant 0 : index
    %1 = vector.load %arg2[%c0_1, %c0_2] : memref<256x272xf32, #tpu.memory_space<vmem>>, vector<256x272xf32>
    %c0_3 = arith.constant 0 : index
    %c0_4 = arith.constant 0 : index
    %2 = vector.load %arg3[%c0_3, %c0_4] : memref<64x384xf32, #tpu.memory_space<vmem>>, vector<64x384xf32>
    %c0_5 = arith.constant 0 : index
    %c0_6 = arith.constant 0 : index
    %3 = vector.load %arg4[%c0_5, %c0_6] : memref<256x8xf32, #tpu.memory_space<vmem>>, vector<256x8xf32>
    %c0_7 = arith.constant 0 : index
    %c0_8 = arith.constant 0 : index
    %4 = vector.load %arg5[%c0_7, %c0_8] : memref<5x256xf32, #tpu.memory_space<vmem>>, vector<1x256xf32>
    %c1 = arith.constant 1 : index
    %c0_9 = arith.constant 0 : index
    %5 = vector.load %arg5[%c1, %c0_9] : memref<5x256xf32, #tpu.memory_space<vmem>>, vector<1x128xf32>
    %c2 = arith.constant 2 : index
    %c0_10 = arith.constant 0 : index
    %6 = vector.load %arg5[%c2, %c0_10] : memref<5x256xf32, #tpu.memory_space<vmem>>, vector<1x128xf32>
    %c3 = arith.constant 3 : index
    %c0_11 = arith.constant 0 : index
    %7 = vector.load %arg5[%c3, %c0_11] : memref<5x256xf32, #tpu.memory_space<vmem>>, vector<1x32xf32>
    %c4 = arith.constant 4 : index
    %c0_12 = arith.constant 0 : index
    %8 = vector.load %arg5[%c4, %c0_12] : memref<5x256xf32, #tpu.memory_space<vmem>>, vector<1x1xf32>
    %c4_13 = arith.constant 4 : index
    %c1_14 = arith.constant 1 : index
    %9 = vector.load %arg5[%c4_13, %c1_14] : memref<5x256xf32, #tpu.memory_space<vmem>>, vector<1x1xf32>
    %cst = arith.constant dense<0.000000e+00> : vector<8x272xf32>
    %10 = tpu.matmul %0, %1, %cst {dimension_numbers = #tpu.dot_dimension_numbers<[1], [0], [0], [1], [0, 0, 1, 1], [], []>} : vector<8x256xf32>, vector<256x272xf32>, vector<8x272xf32> -> vector<8x272xf32>
    %11 = vector.extract_strided_slice %10 {offsets = [0, 0], sizes = [8, 256], strides = [1, 1]} : vector<8x272xf32> to vector<8x256xf32>
    %12 = vector.broadcast %4 : vector<1x256xf32> to vector<8x256xf32>
    %13 = arith.addf %11, %12 : vector<8x256xf32>
    %14 = vector.extract_strided_slice %10 {offsets = [0, 256], sizes = [8, 8], strides = [1, 1]} : vector<8x272xf32> to vector<8x8xf32>
    %15 = vector.extract_strided_slice %10 {offsets = [0, 264], sizes = [8, 8], strides = [1, 1]} : vector<8x272xf32> to vector<8x8xf32>
    %c0_15 = arith.constant 0 : index
    %c0_16 = arith.constant 0 : index
    %16 = vector.load %arg1[%c0_15, %c0_16] : memref<8x8xf32, #tpu.memory_space<vmem>>, vector<8x8xf32>
    %17 = vector.broadcast %8 : vector<1x1xf32> to vector<8x8xf32>
    %18 = arith.mulf %16, %17 : vector<8x8xf32>
    %19 = vector.shape_cast %5 : vector<1x128xf32> to vector<1x128xf32>
    %20 = vector.broadcast %19 : vector<1x128xf32> to vector<8x128xf32>
    %21 = vector.shape_cast %6 : vector<1x128xf32> to vector<1x128xf32>
    %22 = vector.broadcast %21 : vector<1x128xf32> to vector<8x128xf32>
    %cst_17 = arith.constant 0.000000e+00 : f32
    %23 = vector.broadcast %cst_17 : f32 to vector<8x32xf32>
    %cst_18 = arith.constant 0.000000e+00 : f32
    %24 = vector.broadcast %cst_18 : f32 to vector<8x32xf32>
    %25 = tpu.concatenate %23, %24 in 1 : vector<8x32xf32>, vector<8x32xf32> -> vector<8x64xf32>
    %cst_19 = arith.constant dense<0.000000e+00> : vector<8x384xf32>
    %26 = tpu.matmul %25, %2, %cst_19 {dimension_numbers = #tpu.dot_dimension_numbers<[1], [0], [0], [1], [0, 0, 1, 1], [], []>} : vector<8x64xf32>, vector<64x384xf32>, vector<8x384xf32> -> vector<8x384xf32>
    %27 = vector.extract_strided_slice %26 {offsets = [0, 0], sizes = [8, 256], strides = [1, 1]} : vector<8x384xf32> to vector<8x256xf32>
    %28 = arith.addf %13, %27 : vector<8x256xf32>
    %29 = math.tanh %28 : vector<8x256xf32>
    %cst_20 = arith.constant dense<0.000000e+00> : vector<8x8xf32>
    %30 = tpu.matmul %29, %3, %cst_20 {dimension_numbers = #tpu.dot_dimension_numbers<[1], [0], [0], [1], [0, 0, 1, 1], [], []>} : vector<8x256xf32>, vector<256x8xf32>, vector<8x8xf32> -> vector<8x8xf32>
    %cst_21 = arith.constant dense<0xFF800000> : vector<8xf32>
    %31 = vector.multi_reduction <maximumf>, %30, %cst_21 [1] : vector<8x8xf32> to vector<8xf32>
    %32 = vector.shape_cast %31 : vector<8xf32> to vector<8x1xf32>
    %33 = vector.broadcast %32 : vector<8x1xf32> to vector<8x8xf32>
    %34 = arith.subf %30, %33 : vector<8x8xf32>
    %35 = math.exp %34 : vector<8x8xf32>
    %cst_22 = arith.constant dense<0.000000e+00> : vector<8xf32>
    %36 = vector.multi_reduction <add>, %35, %cst_22 [1] : vector<8x8xf32> to vector<8xf32>
    %37 = vector.shape_cast %36 : vector<8xf32> to vector<8x1xf32>
    %38 = tpu.reciprocal %37 {approx = true} : vector<8x1xf32> -> vector<8x1xf32>
    %39 = vector.broadcast %38 : vector<8x1xf32> to vector<8x8xf32>
    %40 = arith.mulf %35, %39 : vector<8x8xf32>
    %41 = arith.mulf %40, %14 : vector<8x8xf32>
    %cst_23 = arith.constant dense<0.000000e+00> : vector<8xf32>
    %42 = vector.multi_reduction <add>, %41, %cst_23 [1] : vector<8x8xf32> to vector<8xf32>
    %43 = vector.shape_cast %42 : vector<8xf32> to vector<8x1xf32>
    %44 = vector.extract_strided_slice %18 {offsets = [0, 0], sizes = [8, 1], strides = [1, 1]} : vector<8x8xf32> to vector<8x1xf32>
    %45 = arith.addf %43, %44 : vector<8x1xf32>
    %46 = vector.broadcast %45 : vector<8x1xf32> to vector<8x128xf32>
    %47 = arith.mulf %46, %20 : vector<8x128xf32>
    %48 = vector.extract_strided_slice %26 {offsets = [0, 256], sizes = [8, 128], strides = [1, 1]} : vector<8x384xf32> to vector<8x128xf32>
    %49 = arith.addf %47, %48 : vector<8x128xf32>
    %50 = arith.addf %49, %22 : vector<8x128xf32>
    %51 = arith.negf %50 : vector<8x128xf32>
    %52 = math.exp %51 : vector<8x128xf32>
    %cst_24 = arith.constant 1.000000e+00 : f32
    %53 = vector.broadcast %cst_24 : f32 to vector<8x128xf32>
    %54 = arith.addf %53, %52 : vector<8x128xf32>
    %55 = arith.divf %53, %54 : vector<8x128xf32>
    %56 = vector.extract_strided_slice %55 {offsets = [0, 0], sizes = [8, 32], strides = [1, 1]} : vector<8x128xf32> to vector<8x32xf32>
    %57 = vector.extract_strided_slice %55 {offsets = [0, 32], sizes = [8, 32], strides = [1, 1]} : vector<8x128xf32> to vector<8x32xf32>
    %58 = vector.extract_strided_slice %55 {offsets = [0, 96], sizes = [8, 32], strides = [1, 1]} : vector<8x128xf32> to vector<8x32xf32>
    %59 = vector.extract_strided_slice %50 {offsets = [0, 64], sizes = [8, 32], strides = [1, 1]} : vector<8x128xf32> to vector<8x32xf32>
    %60 = math.tanh %59 : vector<8x32xf32>
    %61 = arith.mulf %57, %24 : vector<8x32xf32>
    %62 = arith.mulf %56, %60 : vector<8x32xf32>
    %63 = arith.addf %61, %62 : vector<8x32xf32>
    %64 = math.tanh %63 : vector<8x32xf32>
    %65 = arith.mulf %58, %64 : vector<8x32xf32>
    %66 = tpu.concatenate %65, %63 in 1 : vector<8x32xf32>, vector<8x32xf32> -> vector<8x64xf32>
    %cst_25 = arith.constant dense<0.000000e+00> : vector<8x384xf32>
    %67 = tpu.matmul %66, %2, %cst_25 {dimension_numbers = #tpu.dot_dimension_numbers<[1], [0], [0], [1], [0, 0, 1, 1], [], []>} : vector<8x64xf32>, vector<64x384xf32>, vector<8x384xf32> -> vector<8x384xf32>
    %68 = vector.extract_strided_slice %67 {offsets = [0, 0], sizes = [8, 256], strides = [1, 1]} : vector<8x384xf32> to vector<8x256xf32>
    %69 = arith.addf %13, %68 : vector<8x256xf32>
    %70 = math.tanh %69 : vector<8x256xf32>
    %cst_26 = arith.constant dense<0.000000e+00> : vector<8x8xf32>
    %71 = tpu.matmul %70, %3, %cst_26 {dimension_numbers = #tpu.dot_dimension_numbers<[1], [0], [0], [1], [0, 0, 1, 1], [], []>} : vector<8x256xf32>, vector<256x8xf32>, vector<8x8xf32> -> vector<8x8xf32>
    %cst_27 = arith.constant dense<0xFF800000> : vector<8xf32>
    %72 = vector.multi_reduction <maximumf>, %71, %cst_27 [1] : vector<8x8xf32> to vector<8xf32>
    %73 = vector.shape_cast %72 : vector<8xf32> to vector<8x1xf32>
    %74 = vector.broadcast %73 : vector<8x1xf32> to vector<8x8xf32>
    %75 = arith.subf %71, %74 : vector<8x8xf32>
    %76 = math.exp %75 : vector<8x8xf32>
    %cst_28 = arith.constant dense<0.000000e+00> : vector<8xf32>
    %77 = vector.multi_reduction <add>, %76, %cst_28 [1] : vector<8x8xf32> to vector<8xf32>
    %78 = vector.shape_cast %77 : vector<8xf32> to vector<8x1xf32>
    %79 = tpu.reciprocal %78 {approx = true} : vector<8x1xf32> -> vector<8x1xf32>
    %80 = vector.broadcast %79 : vector<8x1xf32> to vector<8x8xf32>
    %81 = arith.mulf %76, %80 : vector<8x8xf32>
    %82 = arith.mulf %81, %14 : vector<8x8xf32>
    %cst_29 = arith.constant dense<0.000000e+00> : vector<8xf32>
    %83 = vector.multi_reduction <add>, %82, %cst_29 [1] : vector<8x8xf32> to vector<8xf32>
    %84 = vector.shape_cast %83 : vector<8xf32> to vector<8x1xf32>
    %85 = vector.extract_strided_slice %18 {offsets = [0, 1], sizes = [8, 1], strides = [1, 1]} : vector<8x8xf32> to vector<8x1xf32>
    %86 = arith.addf %84, %85 : vector<8x1xf32>
    %87 = vector.broadcast %86 : vector<8x1xf32> to vector<8x128xf32>
    %88 = arith.mulf %87, %20 : vector<8x128xf32>
    %89 = vector.extract_strided_slice %67 {offsets = [0, 256], sizes = [8, 128], strides = [1, 1]} : vector<8x384xf32> to vector<8x128xf32>
    %90 = arith.addf %88, %89 : vector<8x128xf32>
    %91 = arith.addf %90, %22 : vector<8x128xf32>
    %92 = arith.negf %91 : vector<8x128xf32>
    %93 = math.exp %92 : vector<8x128xf32>
    %cst_30 = arith.constant 1.000000e+00 : f32
    %94 = vector.broadcast %cst_30 : f32 to vector<8x128xf32>
    %95 = arith.addf %94, %93 : vector<8x128xf32>
    %96 = arith.divf %94, %95 : vector<8x128xf32>
    %97 = vector.extract_strided_slice %96 {offsets = [0, 0], sizes = [8, 32], strides = [1, 1]} : vector<8x128xf32> to vector<8x32xf32>
    %98 = vector.extract_strided_slice %96 {offsets = [0, 32], sizes = [8, 32], strides = [1, 1]} : vector<8x128xf32> to vector<8x32xf32>
    %99 = vector.extract_strided_slice %96 {offsets = [0, 96], sizes = [8, 32], strides = [1, 1]} : vector<8x128xf32> to vector<8x32xf32>
    %100 = vector.extract_strided_slice %91 {offsets = [0, 64], sizes = [8, 32], strides = [1, 1]} : vector<8x128xf32> to vector<8x32xf32>
    %101 = math.tanh %100 : vector<8x32xf32>
    %102 = arith.mulf %98, %63 : vector<8x32xf32>
    %103 = arith.mulf %97, %101 : vector<8x32xf32>
    %104 = arith.addf %102, %103 : vector<8x32xf32>
    %105 = math.tanh %104 : vector<8x32xf32>
    %106 = arith.mulf %99, %105 : vector<8x32xf32>
    %107 = tpu.concatenate %106, %104 in 1 : vector<8x32xf32>, vector<8x32xf32> -> vector<8x64xf32>
    %cst_31 = arith.constant dense<0.000000e+00> : vector<8x384xf32>
    %108 = tpu.matmul %107, %2, %cst_31 {dimension_numbers = #tpu.dot_dimension_numbers<[1], [0], [0], [1], [0, 0, 1, 1], [], []>} : vector<8x64xf32>, vector<64x384xf32>, vector<8x384xf32> -> vector<8x384xf32>
    %109 = vector.extract_strided_slice %108 {offsets = [0, 0], sizes = [8, 256], strides = [1, 1]} : vector<8x384xf32> to vector<8x256xf32>
    %110 = arith.addf %13, %109 : vector<8x256xf32>
    %111 = math.tanh %110 : vector<8x256xf32>
    %cst_32 = arith.constant dense<0.000000e+00> : vector<8x8xf32>
    %112 = tpu.matmul %111, %3, %cst_32 {dimension_numbers = #tpu.dot_dimension_numbers<[1], [0], [0], [1], [0, 0, 1, 1], [], []>} : vector<8x256xf32>, vector<256x8xf32>, vector<8x8xf32> -> vector<8x8xf32>
    %cst_33 = arith.constant dense<0xFF800000> : vector<8xf32>
    %113 = vector.multi_reduction <maximumf>, %112, %cst_33 [1] : vector<8x8xf32> to vector<8xf32>
    %114 = vector.shape_cast %113 : vector<8xf32> to vector<8x1xf32>
    %115 = vector.broadcast %114 : vector<8x1xf32> to vector<8x8xf32>
    %116 = arith.subf %112, %115 : vector<8x8xf32>
    %117 = math.exp %116 : vector<8x8xf32>
    %cst_34 = arith.constant dense<0.000000e+00> : vector<8xf32>
    %118 = vector.multi_reduction <add>, %117, %cst_34 [1] : vector<8x8xf32> to vector<8xf32>
    %119 = vector.shape_cast %118 : vector<8xf32> to vector<8x1xf32>
    %120 = tpu.reciprocal %119 {approx = true} : vector<8x1xf32> -> vector<8x1xf32>
    %121 = vector.broadcast %120 : vector<8x1xf32> to vector<8x8xf32>
    %122 = arith.mulf %117, %121 : vector<8x8xf32>
    %123 = arith.mulf %122, %14 : vector<8x8xf32>
    %cst_35 = arith.constant dense<0.000000e+00> : vector<8xf32>
    %124 = vector.multi_reduction <add>, %123, %cst_35 [1] : vector<8x8xf32> to vector<8xf32>
    %125 = vector.shape_cast %124 : vector<8xf32> to vector<8x1xf32>
    %126 = vector.extract_strided_slice %18 {offsets = [0, 2], sizes = [8, 1], strides = [1, 1]} : vector<8x8xf32> to vector<8x1xf32>
    %127 = arith.addf %125, %126 : vector<8x1xf32>
    %128 = vector.broadcast %127 : vector<8x1xf32> to vector<8x128xf32>
    %129 = arith.mulf %128, %20 : vector<8x128xf32>
    %130 = vector.extract_strided_slice %108 {offsets = [0, 256], sizes = [8, 128], strides = [1, 1]} : vector<8x384xf32> to vector<8x128xf32>
    %131 = arith.addf %129, %130 : vector<8x128xf32>
    %132 = arith.addf %131, %22 : vector<8x128xf32>
    %133 = arith.negf %132 : vector<8x128xf32>
    %134 = math.exp %133 : vector<8x128xf32>
    %cst_36 = arith.constant 1.000000e+00 : f32
    %135 = vector.broadcast %cst_36 : f32 to vector<8x128xf32>
    %136 = arith.addf %135, %134 : vector<8x128xf32>
    %137 = arith.divf %135, %136 : vector<8x128xf32>
    %138 = vector.extract_strided_slice %137 {offsets = [0, 0], sizes = [8, 32], strides = [1, 1]} : vector<8x128xf32> to vector<8x32xf32>
    %139 = vector.extract_strided_slice %137 {offsets = [0, 32], sizes = [8, 32], strides = [1, 1]} : vector<8x128xf32> to vector<8x32xf32>
    %140 = vector.extract_strided_slice %137 {offsets = [0, 96], sizes = [8, 32], strides = [1, 1]} : vector<8x128xf32> to vector<8x32xf32>
    %141 = vector.extract_strided_slice %132 {offsets = [0, 64], sizes = [8, 32], strides = [1, 1]} : vector<8x128xf32> to vector<8x32xf32>
    %142 = math.tanh %141 : vector<8x32xf32>
    %143 = arith.mulf %139, %104 : vector<8x32xf32>
    %144 = arith.mulf %138, %142 : vector<8x32xf32>
    %145 = arith.addf %143, %144 : vector<8x32xf32>
    %146 = math.tanh %145 : vector<8x32xf32>
    %147 = arith.mulf %140, %146 : vector<8x32xf32>
    %148 = tpu.concatenate %147, %145 in 1 : vector<8x32xf32>, vector<8x32xf32> -> vector<8x64xf32>
    %cst_37 = arith.constant dense<0.000000e+00> : vector<8x384xf32>
    %149 = tpu.matmul %148, %2, %cst_37 {dimension_numbers = #tpu.dot_dimension_numbers<[1], [0], [0], [1], [0, 0, 1, 1], [], []>} : vector<8x64xf32>, vector<64x384xf32>, vector<8x384xf32> -> vector<8x384xf32>
    %150 = vector.extract_strided_slice %149 {offsets = [0, 0], sizes = [8, 256], strides = [1, 1]} : vector<8x384xf32> to vector<8x256xf32>
    %151 = arith.addf %13, %150 : vector<8x256xf32>
    %152 = math.tanh %151 : vector<8x256xf32>
    %cst_38 = arith.constant dense<0.000000e+00> : vector<8x8xf32>
    %153 = tpu.matmul %152, %3, %cst_38 {dimension_numbers = #tpu.dot_dimension_numbers<[1], [0], [0], [1], [0, 0, 1, 1], [], []>} : vector<8x256xf32>, vector<256x8xf32>, vector<8x8xf32> -> vector<8x8xf32>
    %cst_39 = arith.constant dense<0xFF800000> : vector<8xf32>
    %154 = vector.multi_reduction <maximumf>, %153, %cst_39 [1] : vector<8x8xf32> to vector<8xf32>
    %155 = vector.shape_cast %154 : vector<8xf32> to vector<8x1xf32>
    %156 = vector.broadcast %155 : vector<8x1xf32> to vector<8x8xf32>
    %157 = arith.subf %153, %156 : vector<8x8xf32>
    %158 = math.exp %157 : vector<8x8xf32>
    %cst_40 = arith.constant dense<0.000000e+00> : vector<8xf32>
    %159 = vector.multi_reduction <add>, %158, %cst_40 [1] : vector<8x8xf32> to vector<8xf32>
    %160 = vector.shape_cast %159 : vector<8xf32> to vector<8x1xf32>
    %161 = tpu.reciprocal %160 {approx = true} : vector<8x1xf32> -> vector<8x1xf32>
    %162 = vector.broadcast %161 : vector<8x1xf32> to vector<8x8xf32>
    %163 = arith.mulf %158, %162 : vector<8x8xf32>
    %164 = arith.mulf %163, %14 : vector<8x8xf32>
    %cst_41 = arith.constant dense<0.000000e+00> : vector<8xf32>
    %165 = vector.multi_reduction <add>, %164, %cst_41 [1] : vector<8x8xf32> to vector<8xf32>
    %166 = vector.shape_cast %165 : vector<8xf32> to vector<8x1xf32>
    %167 = vector.extract_strided_slice %18 {offsets = [0, 3], sizes = [8, 1], strides = [1, 1]} : vector<8x8xf32> to vector<8x1xf32>
    %168 = arith.addf %166, %167 : vector<8x1xf32>
    %169 = vector.broadcast %168 : vector<8x1xf32> to vector<8x128xf32>
    %170 = arith.mulf %169, %20 : vector<8x128xf32>
    %171 = vector.extract_strided_slice %149 {offsets = [0, 256], sizes = [8, 128], strides = [1, 1]} : vector<8x384xf32> to vector<8x128xf32>
    %172 = arith.addf %170, %171 : vector<8x128xf32>
    %173 = arith.addf %172, %22 : vector<8x128xf32>
    %174 = arith.negf %173 : vector<8x128xf32>
    %175 = math.exp %174 : vector<8x128xf32>
    %cst_42 = arith.constant 1.000000e+00 : f32
    %176 = vector.broadcast %cst_42 : f32 to vector<8x128xf32>
    %177 = arith.addf %176, %175 : vector<8x128xf32>
    %178 = arith.divf %176, %177 : vector<8x128xf32>
    %179 = vector.extract_strided_slice %178 {offsets = [0, 0], sizes = [8, 32], strides = [1, 1]} : vector<8x128xf32> to vector<8x32xf32>
    %180 = vector.extract_strided_slice %178 {offsets = [0, 32], sizes = [8, 32], strides = [1, 1]} : vector<8x128xf32> to vector<8x32xf32>
    %181 = vector.extract_strided_slice %178 {offsets = [0, 96], sizes = [8, 32], strides = [1, 1]} : vector<8x128xf32> to vector<8x32xf32>
    %182 = vector.extract_strided_slice %173 {offsets = [0, 64], sizes = [8, 32], strides = [1, 1]} : vector<8x128xf32> to vector<8x32xf32>
    %183 = math.tanh %182 : vector<8x32xf32>
    %184 = arith.mulf %180, %145 : vector<8x32xf32>
    %185 = arith.mulf %179, %183 : vector<8x32xf32>
    %186 = arith.addf %184, %185 : vector<8x32xf32>
    %187 = math.tanh %186 : vector<8x32xf32>
    %188 = arith.mulf %181, %187 : vector<8x32xf32>
    %189 = tpu.concatenate %188, %186 in 1 : vector<8x32xf32>, vector<8x32xf32> -> vector<8x64xf32>
    %cst_43 = arith.constant dense<0.000000e+00> : vector<8x384xf32>
    %190 = tpu.matmul %189, %2, %cst_43 {dimension_numbers = #tpu.dot_dimension_numbers<[1], [0], [0], [1], [0, 0, 1, 1], [], []>} : vector<8x64xf32>, vector<64x384xf32>, vector<8x384xf32> -> vector<8x384xf32>
    %191 = vector.extract_strided_slice %190 {offsets = [0, 0], sizes = [8, 256], strides = [1, 1]} : vector<8x384xf32> to vector<8x256xf32>
    %192 = arith.addf %13, %191 : vector<8x256xf32>
    %193 = math.tanh %192 : vector<8x256xf32>
    %cst_44 = arith.constant dense<0.000000e+00> : vector<8x8xf32>
    %194 = tpu.matmul %193, %3, %cst_44 {dimension_numbers = #tpu.dot_dimension_numbers<[1], [0], [0], [1], [0, 0, 1, 1], [], []>} : vector<8x256xf32>, vector<256x8xf32>, vector<8x8xf32> -> vector<8x8xf32>
    %cst_45 = arith.constant dense<0xFF800000> : vector<8xf32>
    %195 = vector.multi_reduction <maximumf>, %194, %cst_45 [1] : vector<8x8xf32> to vector<8xf32>
    %196 = vector.shape_cast %195 : vector<8xf32> to vector<8x1xf32>
    %197 = vector.broadcast %196 : vector<8x1xf32> to vector<8x8xf32>
    %198 = arith.subf %194, %197 : vector<8x8xf32>
    %199 = math.exp %198 : vector<8x8xf32>
    %cst_46 = arith.constant dense<0.000000e+00> : vector<8xf32>
    %200 = vector.multi_reduction <add>, %199, %cst_46 [1] : vector<8x8xf32> to vector<8xf32>
    %201 = vector.shape_cast %200 : vector<8xf32> to vector<8x1xf32>
    %202 = tpu.reciprocal %201 {approx = true} : vector<8x1xf32> -> vector<8x1xf32>
    %203 = vector.broadcast %202 : vector<8x1xf32> to vector<8x8xf32>
    %204 = arith.mulf %199, %203 : vector<8x8xf32>
    %205 = arith.mulf %204, %14 : vector<8x8xf32>
    %cst_47 = arith.constant dense<0.000000e+00> : vector<8xf32>
    %206 = vector.multi_reduction <add>, %205, %cst_47 [1] : vector<8x8xf32> to vector<8xf32>
    %207 = vector.shape_cast %206 : vector<8xf32> to vector<8x1xf32>
    %208 = vector.extract_strided_slice %18 {offsets = [0, 4], sizes = [8, 1], strides = [1, 1]} : vector<8x8xf32> to vector<8x1xf32>
    %209 = arith.addf %207, %208 : vector<8x1xf32>
    %210 = vector.broadcast %209 : vector<8x1xf32> to vector<8x128xf32>
    %211 = arith.mulf %210, %20 : vector<8x128xf32>
    %212 = vector.extract_strided_slice %190 {offsets = [0, 256], sizes = [8, 128], strides = [1, 1]} : vector<8x384xf32> to vector<8x128xf32>
    %213 = arith.addf %211, %212 : vector<8x128xf32>
    %214 = arith.addf %213, %22 : vector<8x128xf32>
    %215 = arith.negf %214 : vector<8x128xf32>
    %216 = math.exp %215 : vector<8x128xf32>
    %cst_48 = arith.constant 1.000000e+00 : f32
    %217 = vector.broadcast %cst_48 : f32 to vector<8x128xf32>
    %218 = arith.addf %217, %216 : vector<8x128xf32>
    %219 = arith.divf %217, %218 : vector<8x128xf32>
    %220 = vector.extract_strided_slice %219 {offsets = [0, 0], sizes = [8, 32], strides = [1, 1]} : vector<8x128xf32> to vector<8x32xf32>
    %221 = vector.extract_strided_slice %219 {offsets = [0, 32], sizes = [8, 32], strides = [1, 1]} : vector<8x128xf32> to vector<8x32xf32>
    %222 = vector.extract_strided_slice %219 {offsets = [0, 96], sizes = [8, 32], strides = [1, 1]} : vector<8x128xf32> to vector<8x32xf32>
    %223 = vector.extract_strided_slice %214 {offsets = [0, 64], sizes = [8, 32], strides = [1, 1]} : vector<8x128xf32> to vector<8x32xf32>
    %224 = math.tanh %223 : vector<8x32xf32>
    %225 = arith.mulf %221, %186 : vector<8x32xf32>
    %226 = arith.mulf %220, %224 : vector<8x32xf32>
    %227 = arith.addf %225, %226 : vector<8x32xf32>
    %228 = math.tanh %227 : vector<8x32xf32>
    %229 = arith.mulf %222, %228 : vector<8x32xf32>
    %230 = tpu.concatenate %229, %227 in 1 : vector<8x32xf32>, vector<8x32xf32> -> vector<8x64xf32>
    %cst_49 = arith.constant dense<0.000000e+00> : vector<8x384xf32>
    %231 = tpu.matmul %230, %2, %cst_49 {dimension_numbers = #tpu.dot_dimension_numbers<[1], [0], [0], [1], [0, 0, 1, 1], [], []>} : vector<8x64xf32>, vector<64x384xf32>, vector<8x384xf32> -> vector<8x384xf32>
    %232 = vector.extract_strided_slice %231 {offsets = [0, 0], sizes = [8, 256], strides = [1, 1]} : vector<8x384xf32> to vector<8x256xf32>
    %233 = arith.addf %13, %232 : vector<8x256xf32>
    %234 = math.tanh %233 : vector<8x256xf32>
    %cst_50 = arith.constant dense<0.000000e+00> : vector<8x8xf32>
    %235 = tpu.matmul %234, %3, %cst_50 {dimension_numbers = #tpu.dot_dimension_numbers<[1], [0], [0], [1], [0, 0, 1, 1], [], []>} : vector<8x256xf32>, vector<256x8xf32>, vector<8x8xf32> -> vector<8x8xf32>
    %cst_51 = arith.constant dense<0xFF800000> : vector<8xf32>
    %236 = vector.multi_reduction <maximumf>, %235, %cst_51 [1] : vector<8x8xf32> to vector<8xf32>
    %237 = vector.shape_cast %236 : vector<8xf32> to vector<8x1xf32>
    %238 = vector.broadcast %237 : vector<8x1xf32> to vector<8x8xf32>
    %239 = arith.subf %235, %238 : vector<8x8xf32>
    %240 = math.exp %239 : vector<8x8xf32>
    %cst_52 = arith.constant dense<0.000000e+00> : vector<8xf32>
    %241 = vector.multi_reduction <add>, %240, %cst_52 [1] : vector<8x8xf32> to vector<8xf32>
    %242 = vector.shape_cast %241 : vector<8xf32> to vector<8x1xf32>
    %243 = tpu.reciprocal %242 {approx = true} : vector<8x1xf32> -> vector<8x1xf32>
    %244 = vector.broadcast %243 : vector<8x1xf32> to vector<8x8xf32>
    %245 = arith.mulf %240, %244 : vector<8x8xf32>
    %246 = arith.mulf %245, %14 : vector<8x8xf32>
    %cst_53 = arith.constant dense<0.000000e+00> : vector<8xf32>
    %247 = vector.multi_reduction <add>, %246, %cst_53 [1] : vector<8x8xf32> to vector<8xf32>
    %248 = vector.shape_cast %247 : vector<8xf32> to vector<8x1xf32>
    %249 = vector.extract_strided_slice %18 {offsets = [0, 5], sizes = [8, 1], strides = [1, 1]} : vector<8x8xf32> to vector<8x1xf32>
    %250 = arith.addf %248, %249 : vector<8x1xf32>
    %251 = vector.broadcast %250 : vector<8x1xf32> to vector<8x128xf32>
    %252 = arith.mulf %251, %20 : vector<8x128xf32>
    %253 = vector.extract_strided_slice %231 {offsets = [0, 256], sizes = [8, 128], strides = [1, 1]} : vector<8x384xf32> to vector<8x128xf32>
    %254 = arith.addf %252, %253 : vector<8x128xf32>
    %255 = arith.addf %254, %22 : vector<8x128xf32>
    %256 = arith.negf %255 : vector<8x128xf32>
    %257 = math.exp %256 : vector<8x128xf32>
    %cst_54 = arith.constant 1.000000e+00 : f32
    %258 = vector.broadcast %cst_54 : f32 to vector<8x128xf32>
    %259 = arith.addf %258, %257 : vector<8x128xf32>
    %260 = arith.divf %258, %259 : vector<8x128xf32>
    %261 = vector.extract_strided_slice %260 {offsets = [0, 0], sizes = [8, 32], strides = [1, 1]} : vector<8x128xf32> to vector<8x32xf32>
    %262 = vector.extract_strided_slice %260 {offsets = [0, 32], sizes = [8, 32], strides = [1, 1]} : vector<8x128xf32> to vector<8x32xf32>
    %263 = vector.extract_strided_slice %260 {offsets = [0, 96], sizes = [8, 32], strides = [1, 1]} : vector<8x128xf32> to vector<8x32xf32>
    %264 = vector.extract_strided_slice %255 {offsets = [0, 64], sizes = [8, 32], strides = [1, 1]} : vector<8x128xf32> to vector<8x32xf32>
    %265 = math.tanh %264 : vector<8x32xf32>
    %266 = arith.mulf %262, %227 : vector<8x32xf32>
    %267 = arith.mulf %261, %265 : vector<8x32xf32>
    %268 = arith.addf %266, %267 : vector<8x32xf32>
    %269 = math.tanh %268 : vector<8x32xf32>
    %270 = arith.mulf %263, %269 : vector<8x32xf32>
    %271 = tpu.concatenate %270, %268 in 1 : vector<8x32xf32>, vector<8x32xf32> -> vector<8x64xf32>
    %cst_55 = arith.constant dense<0.000000e+00> : vector<8x384xf32>
    %272 = tpu.matmul %271, %2, %cst_55 {dimension_numbers = #tpu.dot_dimension_numbers<[1], [0], [0], [1], [0, 0, 1, 1], [], []>} : vector<8x64xf32>, vector<64x384xf32>, vector<8x384xf32> -> vector<8x384xf32>
    %273 = vector.extract_strided_slice %272 {offsets = [0, 0], sizes = [8, 256], strides = [1, 1]} : vector<8x384xf32> to vector<8x256xf32>
    %274 = arith.addf %13, %273 : vector<8x256xf32>
    %275 = math.tanh %274 : vector<8x256xf32>
    %cst_56 = arith.constant dense<0.000000e+00> : vector<8x8xf32>
    %276 = tpu.matmul %275, %3, %cst_56 {dimension_numbers = #tpu.dot_dimension_numbers<[1], [0], [0], [1], [0, 0, 1, 1], [], []>} : vector<8x256xf32>, vector<256x8xf32>, vector<8x8xf32> -> vector<8x8xf32>
    %cst_57 = arith.constant dense<0xFF800000> : vector<8xf32>
    %277 = vector.multi_reduction <maximumf>, %276, %cst_57 [1] : vector<8x8xf32> to vector<8xf32>
    %278 = vector.shape_cast %277 : vector<8xf32> to vector<8x1xf32>
    %279 = vector.broadcast %278 : vector<8x1xf32> to vector<8x8xf32>
    %280 = arith.subf %276, %279 : vector<8x8xf32>
    %281 = math.exp %280 : vector<8x8xf32>
    %cst_58 = arith.constant dense<0.000000e+00> : vector<8xf32>
    %282 = vector.multi_reduction <add>, %281, %cst_58 [1] : vector<8x8xf32> to vector<8xf32>
    %283 = vector.shape_cast %282 : vector<8xf32> to vector<8x1xf32>
    %284 = tpu.reciprocal %283 {approx = true} : vector<8x1xf32> -> vector<8x1xf32>
    %285 = vector.broadcast %284 : vector<8x1xf32> to vector<8x8xf32>
    %286 = arith.mulf %281, %285 : vector<8x8xf32>
    %287 = arith.mulf %286, %14 : vector<8x8xf32>
    %cst_59 = arith.constant dense<0.000000e+00> : vector<8xf32>
    %288 = vector.multi_reduction <add>, %287, %cst_59 [1] : vector<8x8xf32> to vector<8xf32>
    %289 = vector.shape_cast %288 : vector<8xf32> to vector<8x1xf32>
    %290 = vector.extract_strided_slice %18 {offsets = [0, 6], sizes = [8, 1], strides = [1, 1]} : vector<8x8xf32> to vector<8x1xf32>
    %291 = arith.addf %289, %290 : vector<8x1xf32>
    %292 = vector.broadcast %291 : vector<8x1xf32> to vector<8x128xf32>
    %293 = arith.mulf %292, %20 : vector<8x128xf32>
    %294 = vector.extract_strided_slice %272 {offsets = [0, 256], sizes = [8, 128], strides = [1, 1]} : vector<8x384xf32> to vector<8x128xf32>
    %295 = arith.addf %293, %294 : vector<8x128xf32>
    %296 = arith.addf %295, %22 : vector<8x128xf32>
    %297 = arith.negf %296 : vector<8x128xf32>
    %298 = math.exp %297 : vector<8x128xf32>
    %cst_60 = arith.constant 1.000000e+00 : f32
    %299 = vector.broadcast %cst_60 : f32 to vector<8x128xf32>
    %300 = arith.addf %299, %298 : vector<8x128xf32>
    %301 = arith.divf %299, %300 : vector<8x128xf32>
    %302 = vector.extract_strided_slice %301 {offsets = [0, 0], sizes = [8, 32], strides = [1, 1]} : vector<8x128xf32> to vector<8x32xf32>
    %303 = vector.extract_strided_slice %301 {offsets = [0, 32], sizes = [8, 32], strides = [1, 1]} : vector<8x128xf32> to vector<8x32xf32>
    %304 = vector.extract_strided_slice %301 {offsets = [0, 96], sizes = [8, 32], strides = [1, 1]} : vector<8x128xf32> to vector<8x32xf32>
    %305 = vector.extract_strided_slice %296 {offsets = [0, 64], sizes = [8, 32], strides = [1, 1]} : vector<8x128xf32> to vector<8x32xf32>
    %306 = math.tanh %305 : vector<8x32xf32>
    %307 = arith.mulf %303, %268 : vector<8x32xf32>
    %308 = arith.mulf %302, %306 : vector<8x32xf32>
    %309 = arith.addf %307, %308 : vector<8x32xf32>
    %310 = math.tanh %309 : vector<8x32xf32>
    %311 = arith.mulf %304, %310 : vector<8x32xf32>
    %312 = tpu.concatenate %311, %309 in 1 : vector<8x32xf32>, vector<8x32xf32> -> vector<8x64xf32>
    %cst_61 = arith.constant dense<0.000000e+00> : vector<8x384xf32>
    %313 = tpu.matmul %312, %2, %cst_61 {dimension_numbers = #tpu.dot_dimension_numbers<[1], [0], [0], [1], [0, 0, 1, 1], [], []>} : vector<8x64xf32>, vector<64x384xf32>, vector<8x384xf32> -> vector<8x384xf32>
    %314 = vector.extract_strided_slice %313 {offsets = [0, 0], sizes = [8, 256], strides = [1, 1]} : vector<8x384xf32> to vector<8x256xf32>
    %315 = arith.addf %13, %314 : vector<8x256xf32>
    %316 = math.tanh %315 : vector<8x256xf32>
    %cst_62 = arith.constant dense<0.000000e+00> : vector<8x8xf32>
    %317 = tpu.matmul %316, %3, %cst_62 {dimension_numbers = #tpu.dot_dimension_numbers<[1], [0], [0], [1], [0, 0, 1, 1], [], []>} : vector<8x256xf32>, vector<256x8xf32>, vector<8x8xf32> -> vector<8x8xf32>
    %cst_63 = arith.constant dense<0xFF800000> : vector<8xf32>
    %318 = vector.multi_reduction <maximumf>, %317, %cst_63 [1] : vector<8x8xf32> to vector<8xf32>
    %319 = vector.shape_cast %318 : vector<8xf32> to vector<8x1xf32>
    %320 = vector.broadcast %319 : vector<8x1xf32> to vector<8x8xf32>
    %321 = arith.subf %317, %320 : vector<8x8xf32>
    %322 = math.exp %321 : vector<8x8xf32>
    %cst_64 = arith.constant dense<0.000000e+00> : vector<8xf32>
    %323 = vector.multi_reduction <add>, %322, %cst_64 [1] : vector<8x8xf32> to vector<8xf32>
    %324 = vector.shape_cast %323 : vector<8xf32> to vector<8x1xf32>
    %325 = tpu.reciprocal %324 {approx = true} : vector<8x1xf32> -> vector<8x1xf32>
    %326 = vector.broadcast %325 : vector<8x1xf32> to vector<8x8xf32>
    %327 = arith.mulf %322, %326 : vector<8x8xf32>
    %328 = arith.mulf %327, %14 : vector<8x8xf32>
    %cst_65 = arith.constant dense<0.000000e+00> : vector<8xf32>
    %329 = vector.multi_reduction <add>, %328, %cst_65 [1] : vector<8x8xf32> to vector<8xf32>
    %330 = vector.shape_cast %329 : vector<8xf32> to vector<8x1xf32>
    %331 = vector.extract_strided_slice %18 {offsets = [0, 7], sizes = [8, 1], strides = [1, 1]} : vector<8x8xf32> to vector<8x1xf32>
    %332 = arith.addf %330, %331 : vector<8x1xf32>
    %333 = vector.broadcast %332 : vector<8x1xf32> to vector<8x128xf32>
    %334 = arith.mulf %333, %20 : vector<8x128xf32>
    %335 = vector.extract_strided_slice %313 {offsets = [0, 256], sizes = [8, 128], strides = [1, 1]} : vector<8x384xf32> to vector<8x128xf32>
    %336 = arith.addf %334, %335 : vector<8x128xf32>
    %337 = arith.addf %336, %22 : vector<8x128xf32>
    %338 = arith.negf %337 : vector<8x128xf32>
    %339 = math.exp %338 : vector<8x128xf32>
    %cst_66 = arith.constant 1.000000e+00 : f32
    %340 = vector.broadcast %cst_66 : f32 to vector<8x128xf32>
    %341 = arith.addf %340, %339 : vector<8x128xf32>
    %342 = arith.divf %340, %341 : vector<8x128xf32>
    %343 = vector.extract_strided_slice %342 {offsets = [0, 0], sizes = [8, 32], strides = [1, 1]} : vector<8x128xf32> to vector<8x32xf32>
    %344 = vector.extract_strided_slice %342 {offsets = [0, 32], sizes = [8, 32], strides = [1, 1]} : vector<8x128xf32> to vector<8x32xf32>
    %345 = vector.extract_strided_slice %342 {offsets = [0, 96], sizes = [8, 32], strides = [1, 1]} : vector<8x128xf32> to vector<8x32xf32>
    %346 = vector.extract_strided_slice %337 {offsets = [0, 64], sizes = [8, 32], strides = [1, 1]} : vector<8x128xf32> to vector<8x32xf32>
    %347 = math.tanh %346 : vector<8x32xf32>
    %348 = arith.mulf %344, %309 : vector<8x32xf32>
    %349 = arith.mulf %343, %347 : vector<8x32xf32>
    %350 = arith.addf %348, %349 : vector<8x32xf32>
    %351 = math.tanh %350 : vector<8x32xf32>
    %352 = arith.mulf %345, %351 : vector<8x32xf32>
    %353 = vector.broadcast %7 : vector<1x32xf32> to vector<8x32xf32>
    %354 = arith.mulf %352, %353 : vector<8x32xf32>
    %cst_67 = arith.constant dense<0.000000e+00> : vector<8xf32>
    %355 = vector.multi_reduction <add>, %354, %cst_67 [1] : vector<8x32xf32> to vector<8xf32>
    %356 = vector.shape_cast %355 : vector<8xf32> to vector<8x1xf32>
    %357 = arith.mulf %327, %15 : vector<8x8xf32>
    %cst_68 = arith.constant dense<0.000000e+00> : vector<8xf32>
    %358 = vector.multi_reduction <add>, %357, %cst_68 [1] : vector<8x8xf32> to vector<8xf32>
    %359 = vector.shape_cast %358 : vector<8xf32> to vector<8x1xf32>
    %360 = arith.addf %356, %359 : vector<8x1xf32>
    %361 = vector.broadcast %9 : vector<1x1xf32> to vector<8x1xf32>
    %362 = arith.addf %360, %361 : vector<8x1xf32>
    %c0_69 = arith.constant 0 : index
    %c0_70 = arith.constant 0 : index
    %363 = vector.load %arg6[%c0_69, %c0_70] : memref<8x1xf32, #tpu.memory_space<vmem>>, vector<8x1xf32>
    tpu.vector_store %arg6[%c0_69, %c0_70], %362 {strides = array<i32>} : memref<8x1xf32, #tpu.memory_space<vmem>>, vector<8x1xf32>,
    return
  }
}

</mosaic_0001>

<llo_original>
// kernel: tpu_custom_call.1
$region0: #{tpu_custom_call.1}
  #allocation0 [shape = 'u32[]', space=smem, size = 0x4, offset = 0x4, fixed_abs, tag = 'smem constant byte address 0x4 - core index']
  #allocation1 [shape = 'u32[144,128]{1,0:T(1,128)}', space=vmem, size = 0x12000, scoped, tag = 'internal scratch']
  %s0 = inlined_call_operand.vmem [shape: f32[8,256], index: 0, kind: input, shape index: {}]
  %s1 = inlined_call_operand.vmem [shape: f32[8,8], index: 1, kind: input, shape index: {}]
  %s2 = inlined_call_operand.vmem [shape: f32[256,272], index: 2, kind: input, shape index: {}]
  %s3 = inlined_call_operand.vmem [shape: f32[64,384], index: 3, kind: input, shape index: {}]
  %s4 = inlined_call_operand.vmem [shape: f32[256,8], index: 4, kind: input, shape index: {}]
  %s5 = inlined_call_operand.vmem [shape: f32[5,256], index: 5, kind: input, shape index: {}]
  %s6 = inlined_call_operand.vmem [shape: f32[8,1], index: 6, kind: output, shape index: {}]
  %s7 = sld [smem:[#allocation0]]
  $region34: #{tpu_custom_call.1} parent=0
    _
  %s9 = ssub.s32 1, %s7
  %s10 = scalar_select 0, %s9, %s7
  // Predicated region
  $region2: #{tpu_custom_call.1} parent=0 // pred_check
    _
  $region3: #{tpu_custom_call.1} parent=0 // pred_check_branch
    %12 = sbr.rel (0) target = $region5
  $region4: #{tpu_custom_call.1} parent=0 // pred_region
    _
  $region5: #{tpu_custom_call.1} parent=0 // pred_fallthru
    _
  // Predicated region
  $region6: #{tpu_custom_call.1} parent=0 // pred_check
    _
  $region7: #{tpu_custom_call.1} parent=0 // pred_check_branch
    %14 = sbr.rel (0) target = $region9
  $region8: #{tpu_custom_call.1} parent=0 // pred_region
    _
  $region9: #{tpu_custom_call.1} parent=0 // pred_fallthru
    _
  // Predicated region
  $region10: #{tpu_custom_call.1} parent=0 // pred_check
    _
  $region11: #{tpu_custom_call.1} parent=0 // pred_check_branch
    %16 = sbr.rel (0) target = $region13
  $region12: #{tpu_custom_call.1} parent=0 // pred_region
    _
  $region13: #{tpu_custom_call.1} parent=0 // pred_fallthru
    _
  // Predicated region
  $region14: #{tpu_custom_call.1} parent=0 // pred_check
    _
  $region15: #{tpu_custom_call.1} parent=0 // pred_check_branch
    %18 = sbr.rel (0) target = $region17
  $region16: #{tpu_custom_call.1} parent=0 // pred_region
    _
  $region17: #{tpu_custom_call.1} parent=0 // pred_fallthru
    _
  // Predicated region
  $region18: #{tpu_custom_call.1} parent=0 // pred_check
    _
  $region19: #{tpu_custom_call.1} parent=0 // pred_check_branch
    %20 = sbr.rel (0) target = $region21
  $region20: #{tpu_custom_call.1} parent=0 // pred_region
    _
  $region21: #{tpu_custom_call.1} parent=0 // pred_fallthru
    _
  // Predicated region
  $region22: #{tpu_custom_call.1} parent=0 // pred_check
    _
  $region23: #{tpu_custom_call.1} parent=0 // pred_check_branch
    %22 = sbr.rel (0) target = $region25
  $region24: #{tpu_custom_call.1} parent=0 // pred_region
    _
  $region25: #{tpu_custom_call.1} parent=0 // pred_fallthru
    _
  %v23 = vld [vmem:[%s0] sm:$0xff]
  %v24 = vld [vmem:[%s0 + $0x8] sm:$0xff]
  %v25 = vld [vmem:[%s2] sm:$0xff]
  %v26 = vld [vmem:[%s2 + $0x8] sm:$0xff]
  %v27 = vld [vmem:[%s2 + $0x10] sm:$0xff]
  %v28 = vld [vmem:[%s2 + $0x18] sm:$0xff]
  %v29 = vld [vmem:[%s2 + $0x20] sm:$0xff]
  %v30 = vld [vmem:[%s2 + $0x28] sm:$0xff]
  %v31 = vld [vmem:[%s2 + $0x30] sm:$0xff]
  %v32 = vld [vmem:[%s2 + $0x38] sm:$0xff]
  %v33 = vld [vmem:[%s2 + $0x40] sm:$0xff]
  %v34 = vld [vmem:[%s2 + $0x48] sm:$0xff]
  %v35 = vld [vmem:[%s2 + $0x50] sm:$0xff]
  %v36 = vld [vmem:[%s2 + $0x58] sm:$0xff]
  %v37 = vld [vmem:[%s2 + $0x60] sm:$0xff]
  %v38 = vld [vmem:[%s2 + $0x68] sm:$0xff]
  %v39 = vld [vmem:[%s2 + $0x70] sm:$0xff]
  %v40 = vld [vmem:[%s2 + $0x78] sm:$0xff]
  %v41 = vld [vmem:[%s2 + $0x80] sm:$0xff]
  %v42 = vld [vmem:[%s2 + $0x88] sm:$0xff]
  %v43 = vld [vmem:[%s2 + $0x90] sm:$0xff]
  %v44 = vld [vmem:[%s2 + $0x98] sm:$0xff]
  %v45 = vld [vmem:[%s2 + $0xa0] sm:$0xff]
  %v46 = vld [vmem:[%s2 + $0xa8] sm:$0xff]
  %v47 = vld [vmem:[%s2 + $0xb0] sm:$0xff]
  %v48 = vld [vmem:[%s2 + $0xb8] sm:$0xff]
  %v49 = vld [vmem:[%s2 + $0xc0] sm:$0xff]
  %v50 = vld [vmem:[%s2 + $0xc8] sm:$0xff]
  %v51 = vld [vmem:[%s2 + $0xd0] sm:$0xff]
  %v52 = vld [vmem:[%s2 + $0xd8] sm:$0xff]
  %v53 = vld [vmem:[%s2 + $0xe0] sm:$0xff]
  %v54 = vld [vmem:[%s2 + $0xe8] sm:$0xff]
  %v55 = vld [vmem:[%s2 + $0xf0] sm:$0xff]
  %v56 = vld [vmem:[%s2 + $0xf8] sm:$0xff]
  %v57 = vld [vmem:[%s2 + $0x100] sm:$0xff]
  %v58 = vld [vmem:[%s2 + $0x108] sm:$0xff]
  %v59 = vld [vmem:[%s2 + $0x110] sm:$0xff]
  %v60 = vld [vmem:[%s2 + $0x118] sm:$0xff]
  %v61 = vld [vmem:[%s2 + $0x120] sm:$0xff]
  %v62 = vld [vmem:[%s2 + $0x128] sm:$0xff]
  %v63 = vld [vmem:[%s2 + $0x130] sm:$0xff]
  %v64 = vld [vmem:[%s2 + $0x138] sm:$0xff]
  %v65 = vld [vmem:[%s2 + $0x140] sm:$0xff]
  %v66 = vld [vmem:[%s2 + $0x148] sm:$0xff]
  %v67 = vld [vmem:[%s2 + $0x150] sm:$0xff]
  %v68 = vld [vmem:[%s2 + $0x158] sm:$0xff]
  %v69 = vld [vmem:[%s2 + $0x160] sm:$0xff]
  %v70 = vld [vmem:[%s2 + $0x168] sm:$0xff]
  %v71 = vld [vmem:[%s2 + $0x170] sm:$0xff]
  %v72 = vld [vmem:[%s2 + $0x178] sm:$0xff]
  %v73 = vld [vmem:[%s2 + $0x180] sm:$0xff]
  %v74 = vld [vmem:[%s2 + $0x188] sm:$0xff]
  %v75 = vld [vmem:[%s2 + $0x190] sm:$0xff]
  %v76 = vld [vmem:[%s2 + $0x198] sm:$0xff]
  %v77 = vld [vmem:[%s2 + $0x1a0] sm:$0xff]
  %v78 = vld [vmem:[%s2 + $0x1a8] sm:$0xff]
  %v79 = vld [vmem:[%s2 + $0x1b0] sm:$0xff]
  %v80 = vld [vmem:[%s2 + $0x1b8] sm:$0xff]
  %v81 = vld [vmem:[%s2 + $0x1c0] sm:$0xff]
  %v82 = vld [vmem:[%s2 + $0x1c8] sm:$0xff]
  %v83 = vld [vmem:[%s2 + $0x1d0] sm:$0xff]
  %v84 = vld [vmem:[%s2 + $0x1d8] sm:$0xff]
  %v85 = vld [vmem:[%s2 + $0x1e0] sm:$0xff]
  %v86 = vld [vmem:[%s2 + $0x1e8] sm:$0xff]
  %v87 = vld [vmem:[%s2 + $0x1f0] sm:$0xff]
  %v88 = vld [vmem:[%s2 + $0x1f8] sm:$0xff]
  %v89 = vld [vmem:[%s2 + $0x200] sm:$0xff]
  %v90 = vld [vmem:[%s2 + $0x208] sm:$0xff]
  %v91 = vld [vmem:[%s2 + $0x210] sm:$0xff]
  %v92 = vld [vmem:[%s2 + $0x218] sm:$0xff]
  %v93 = vld [vmem:[%s2 + $0x220] sm:$0xff]
  %v94 = vld [vmem:[%s2 + $0x228] sm:$0xff]
  %v95 = vld [vmem:[%s2 + $0x230] sm:$0xff]
  %v96 = vld [vmem:[%s2 + $0x238] sm:$0xff]
  %v97 = vld [vmem:[%s2 + $0x240] sm:$0xff]
  %v98 = vld [vmem:[%s2 + $0x248] sm:$0xff]
  %v99 = vld [vmem:[%s2 + $0x250] sm:$0xff]
  %v100 = vld [vmem:[%s2 + $0x258] sm:$0xff]
  %v101 = vld [vmem:[%s2 + $0x260] sm:$0xff]
  %v102 = vld [vmem:[%s2 + $0x268] sm:$0xff]
  %v103 = vld [vmem:[%s2 + $0x270] sm:$0xff]
  %v104 = vld [vmem:[%s2 + $0x278] sm:$0xff]
  %v105 = vld [vmem:[%s2 + $0x280] sm:$0xff]
  %v106 = vld [vmem:[%s2 + $0x288] sm:$0xff]
  %v107 = vld [vmem:[%s2 + $0x290] sm:$0xff]
  %v108 = vld [vmem:[%s2 + $0x298] sm:$0xff]
  %v109 = vld [vmem:[%s2 + $0x2a0] sm:$0xff]
  %v110 = vld [vmem:[%s2 + $0x2a8] sm:$0xff]
  %v111 = vld [vmem:[%s2 + $0x2b0] sm:$0xff]
  %v112 = vld [vmem:[%s2 + $0x2b8] sm:$0xff]
  %v113 = vld [vmem:[%s2 + $0x2c0] sm:$0xff]
  %v114 = vld [vmem:[%s2 + $0x2c8] sm:$0xff]
  %v115 = vld [vmem:[%s2 + $0x2d0] sm:$0xff]
  %v116 = vld [vmem:[%s2 + $0x2d8] sm:$0xff]
  %v117 = vld [vmem:[%s2 + $0x2e0] sm:$0xff]
  %v118 = vld [vmem:[%s2 + $0x2e8] sm:$0xff]
  %v119 = vld [vmem:[%s2 + $0x2f0] sm:$0xff]
  %v120 = vld [vmem:[%s2 + $0x2f8] sm:$0xff]
  %v121 = vld [vmem:[%s3] sm:$0xff]
  %v122 = vld [vmem:[%s3 + $0x8] sm:$0xff]
  %v123 = vld [vmem:[%s3 + $0x10] sm:$0xff]
  %v124 = vld [vmem:[%s3 + $0x18] sm:$0xff]
  %v125 = vld [vmem:[%s3 + $0x20] sm:$0xff]
  %v126 = vld [vmem:[%s3 + $0x28] sm:$0xff]
  %v127 = vld [vmem:[%s3 + $0x30] sm:$0xff]
  %v128 = vld [vmem:[%s3 + $0x38] sm:$0xff]
  %v129 = vld [vmem:[%s3 + $0x40] sm:$0xff]
  %v130 = vld [vmem:[%s3 + $0x48] sm:$0xff]
  %v131 = vld [vmem:[%s3 + $0x50] sm:$0xff]
  %v132 = vld [vmem:[%s3 + $0x58] sm:$0xff]
  %v133 = vld [vmem:[%s3 + $0x60] sm:$0xff]
  %v134 = vld [vmem:[%s3 + $0x68] sm:$0xff]
  %v135 = vld [vmem:[%s3 + $0x70] sm:$0xff]
  %v136 = vld [vmem:[%s3 + $0x78] sm:$0xff]
  %v137 = vld [vmem:[%s3 + $0x80] sm:$0xff]
  %v138 = vld [vmem:[%s3 + $0x88] sm:$0xff]
  %v139 = vld [vmem:[%s3 + $0x90] sm:$0xff]
  %v140 = vld [vmem:[%s3 + $0x98] sm:$0xff]
  %v141 = vld [vmem:[%s3 + $0xa0] sm:$0xff]
  %v142 = vld [vmem:[%s3 + $0xa8] sm:$0xff]
  %v143 = vld [vmem:[%s3 + $0xb0] sm:$0xff]
  %v144 = vld [vmem:[%s3 + $0xb8] sm:$0xff]
  %v145 = vld [vmem:[%s4] sm:$0xff]
  %v146 = vld [vmem:[%s4 + $0x8] sm:$0xff]
  %v147 = vld [vmem:[%s4 + $0x10] sm:$0xff]
  %v148 = vld [vmem:[%s4 + $0x18] sm:$0xff]
  %v149 = vld [vmem:[%s4 + $0x20] sm:$0xff]
  %v150 = vld [vmem:[%s4 + $0x28] sm:$0xff]
  %v151 = vld [vmem:[%s4 + $0x30] sm:$0xff]
  %v152 = vld [vmem:[%s4 + $0x38] sm:$0xff]
  %v153 = vld [vmem:[%s4 + $0x40] sm:$0xff]
  %v154 = vld [vmem:[%s4 + $0x48] sm:$0xff]
  %v155 = vld [vmem:[%s4 + $0x50] sm:$0xff]
  %v156 = vld [vmem:[%s4 + $0x58] sm:$0xff]
  %v157 = vld [vmem:[%s4 + $0x60] sm:$0xff]
  %v158 = vld [vmem:[%s4 + $0x68] sm:$0xff]
  %v159 = vld [vmem:[%s4 + $0x70] sm:$0xff]
  %v160 = vld [vmem:[%s4 + $0x78] sm:$0xff]
  %v161 = vld [vmem:[%s4 + $0x80] sm:$0xff]
  %v162 = vld [vmem:[%s4 + $0x88] sm:$0xff]
  %v163 = vld [vmem:[%s4 + $0x90] sm:$0xff]
  %v164 = vld [vmem:[%s4 + $0x98] sm:$0xff]
  %v165 = vld [vmem:[%s4 + $0xa0] sm:$0xff]
  %v166 = vld [vmem:[%s4 + $0xa8] sm:$0xff]
  %v167 = vld [vmem:[%s4 + $0xb0] sm:$0xff]
  %v168 = vld [vmem:[%s4 + $0xb8] sm:$0xff]
  %v169 = vld [vmem:[%s4 + $0xc0] sm:$0xff]
  %v170 = vld [vmem:[%s4 + $0xc8] sm:$0xff]
  %v171 = vld [vmem:[%s4 + $0xd0] sm:$0xff]
  %v172 = vld [vmem:[%s4 + $0xd8] sm:$0xff]
  %v173 = vld [vmem:[%s4 + $0xe0] sm:$0xff]
  %v174 = vld [vmem:[%s4 + $0xe8] sm:$0xff]
  %v175 = vld [vmem:[%s4 + $0xf0] sm:$0xff]
  %v176 = vld [vmem:[%s4 + $0xf8] sm:$0xff]
  %v177 = vld [vmem:[%s5] ss:$8 sm:$0x3]
  %v178 = vld [vmem:[%s5 + $0x1] ss:$0 sm:$0xff]
  %v179 = vld [vmem:[%s5 + $0x2] ss:$0 sm:$0xff]
  %v180 = vld [vmem:[%s5 + $0x3] ss:$0 sm:$0xff]
  %v181 = vld [vmem:[%s5 + $0x4] ss:$0 sm:$0xff]
  %182 = vmatprep.subr.mxu0 %v26
  %183 = vmatpush1.msra.mxu0 %v25
  %184 = vmatprep.subr.mxu0 %v29
  %185 = vmatpush1.msra.mxu0 %v28
  %186 = vmatprep.subr.mxu0 %v32
  %187 = vmatpush1.msra.mxu0 %v31
  %188 = vmatprep.subr.mxu0 %v35
  %189 = vmatpush1.msra.mxu0 %v34
  %190 = vmatprep.subr.mxu0 %v38
  %191 = vmatpush1.msra.mxu0 %v37
  %192 = vmatprep.subr.mxu0 %v41
  %193 = vmatpush1.msra.mxu0 %v40
  %194 = vmatprep.subr.mxu0 %v44
  %195 = vmatpush1.msra.mxu0 %v43
  %196 = vmatprep.subr.mxu0 %v47
  %197 = vmatpush1.msra.mxu0 %v46
  %198 = vmatprep.subr.mxu0 %v50
  %199 = vmatpush1.msra.mxu0 %v49
  %200 = vmatprep.subr.mxu0 %v53
  %201 = vmatpush1.msra.mxu0 %v52
  %202 = vmatprep.subr.mxu0 %v56
  %203 = vmatpush1.msra.mxu0 %v55
  %204 = vmatprep.subr.mxu0 %v59
  %205 = vmatpush1.msra.mxu0 %v58
  %206 = vmatprep.subr.mxu0 %v62
  %207 = vmatpush1.msra.mxu0 %v61
  %208 = vmatprep.subr.mxu0 %v65
  %209 = vmatpush1.msra.mxu0 %v64
  %210 = vmatprep.subr.mxu0 %v68
  %211 = vmatpush1.msra.mxu0 %v67
  %212 = vmatprep.subr.mxu0 %v71
  %213 = vmatpush1.msra.mxu0 %v70
  %214 = vmatprep.subr.mxu0 %v74
  %215 = vmatpush1.msra.mxu0 %v73
  %216 = vmatprep.subr.mxu0 %v77
  %217 = vmatpush1.msra.mxu0 %v76
  %218 = vmatprep.subr.mxu0 %v80
  %219 = vmatpush1.msra.mxu0 %v79
  %220 = vmatprep.subr.mxu0 %v83
  %221 = vmatpush1.msra.mxu0 %v82
  %222 = vmatprep.subr.mxu0 %v86
  %223 = vmatpush1.msra.mxu0 %v85
  %224 = vmatprep.subr.mxu0 %v89
  %225 = vmatpush1.msra.mxu0 %v88
  %226 = vmatprep.subr.mxu0 %v92
  %227 = vmatpush1.msra.mxu0 %v91
  %228 = vmatprep.subr.mxu0 %v95
  %229 = vmatpush1.msra.mxu0 %v94
  %230 = vmatprep.subr.mxu0 %v98
  %231 = vmatpush1.msra.mxu0 %v97
  %232 = vmatprep.subr.mxu0 %v101
  %233 = vmatpush1.msra.mxu0 %v100
  %234 = vmatprep.subr.mxu0 %v104
  %235 = vmatpush1.msra.mxu0 %v103
  %236 = vmatprep.subr.mxu0 %v107
  %237 = vmatpush1.msra.mxu0 %v106
  %238 = vmatprep.subr.mxu0 %v110
  %239 = vmatpush1.msra.mxu0 %v109
  %240 = vmatprep.subr.mxu0 %v113
  %241 = vmatpush1.msra.mxu0 %v112
  %242 = vmatprep.subr.mxu0 %v116
  %243 = vmatpush1.msra.mxu0 %v115
  %244 = vmatprep.subr.mxu0 %v119
  %245 = vmatpush1.msra.mxu0 %v118
  %246 = vmatprep.mubr.f32.mxu0 %v24
  %247 = vmatmul.mubr.f32.gmra.mrb[0].mxu0 %v23
  %v248 = vpop.f32.mrb[0].mxu0
  %v249 = vadd.f32 0.0, %v248
  %v250 = vpop.f32.mrb[0].mxu0
  %v251 = vadd.f32 0.0, %v250
  %252 = vdwg.mxu0
  %253 = vmatprep.subr.mxu0 0.0
  %254 = vmatpush1.msra.mxu0 %v27
  %255 = vmatprep.subr.mxu0 0.0
  %256 = vmatpush1.msra.mxu0 %v30
  %257 = vmatprep.subr.mxu0 0.0
  %258 = vmatpush1.msra.mxu0 %v33
  %259 = vmatprep.subr.mxu0 0.0
  %260 = vmatpush1.msra.mxu0 %v36
  %261 = vmatprep.subr.mxu0 0.0
  %262 = vmatpush1.msra.mxu0 %v39
  %263 = vmatprep.subr.mxu0 0.0
  %264 = vmatpush1.msra.mxu0 %v42
  %265 = vmatprep.subr.mxu0 0.0
  %266 = vmatpush1.msra.mxu0 %v45
  %267 = vmatprep.subr.mxu0 0.0
  %268 = vmatpush1.msra.mxu0 %v48
  %269 = vmatprep.subr.mxu0 0.0
  %270 = vmatpush1.msra.mxu0 %v51
  %271 = vmatprep.subr.mxu0 0.0
  %272 = vmatpush1.msra.mxu0 %v54
  %273 = vmatprep.subr.mxu0 0.0
  %274 = vmatpush1.msra.mxu0 %v57
  %275 = vmatprep.subr.mxu0 0.0
  %276 = vmatpush1.msra.mxu0 %v60
  %277 = vmatprep.subr.mxu0 0.0
  %278 = vmatpush1.msra.mxu0 %v63
  %279 = vmatprep.subr.mxu0 0.0
  %280 = vmatpush1.msra.mxu0 %v66
  %281 = vmatprep.subr.mxu0 0.0
  %282 = vmatpush1.msra.mxu0 %v69
  %283 = vmatprep.subr.mxu0 0.0
  %284 = vmatpush1.msra.mxu0 %v72
  %285 = vmatprep.subr.mxu0 0.0
  %286 = vmatpush1.msra.mxu0 %v75
  %287 = vmatprep.subr.mxu0 0.0
  %288 = vmatpush1.msra.mxu0 %v78
  %289 = vmatprep.subr.mxu0 0.0
  %290 = vmatpush1.msra.mxu0 %v81
  %291 = vmatprep.subr.mxu0 0.0
  %292 = vmatpush1.msra.mxu0 %v84
  %293 = vmatprep.subr.mxu0 0.0
  %294 = vmatpush1.msra.mxu0 %v87
  %295 = vmatprep.subr.mxu0 0.0
  %296 = vmatpush1.msra.mxu0 %v90
  %297 = vmatprep.subr.mxu0 0.0
  %298 = vmatpush1.msra.mxu0 %v93
  %299 = vmatprep.subr.mxu0 0.0
  %300 = vmatpush1.msra.mxu0 %v96
  %301 = vmatprep.subr.mxu0 0.0
  %302 = vmatpush1.msra.mxu0 %v99
  %303 = vmatprep.subr.mxu0 0.0
  %304 = vmatpush1.msra.mxu0 %v102
  %305 = vmatprep.subr.mxu0 0.0
  %306 = vmatpush1.msra.mxu0 %v105
  %307 = vmatprep.subr.mxu0 0.0
  %308 = vmatpush1.msra.mxu0 %v108
  %309 = vmatprep.subr.mxu0 0.0
  %310 = vmatpush1.msra.mxu0 %v111
  %311 = vmatprep.subr.mxu0 0.0
  %312 = vmatpush1.msra.mxu0 %v114
  %313 = vmatprep.subr.mxu0 0.0
  %314 = vmatpush1.msra.mxu0 %v117
  %315 = vmatprep.subr.mxu0 0.0
  %316 = vmatpush1.msra.mxu0 %v120
  %317 = vmatprep.mubr.f32.mxu0 %v24
  %318 = vmatmul.mubr.f32.gmra.mrb[0].mxu0 %v23
  %v319 = vpop.f32.mrb[0].mxu0
  %v320 = vadd.f32 0.0, %v319
  %v321 = vpop.f32.mrb[0].mxu0
  %322 = vdwg.mxu0
  %v324 = vlaneseq
  %v325 = vshrl.u32 %v324, 7
  %v326 = vsub.s32 0, %v325
  %v327 = vrot.slane %v177, %v326
  %v328 = vlaneseq
  %v329 = vshrl.u32 %v328, 7
  %v330 = vsub.s32 1, %v329
  %v331 = vrot.slane %v177, %v330
  %v334 = vadd.f32 %v249, %v327
  %v335 = vadd.f32 %v251, %v331
  %v336 = vld [vmem:[%s1] sm:$0xff]
  %338 = vset.pattern.permute.xlu0 0
  %339 = vperm.xlu0 %338, %v181
  %v340 = vpop.permute.xlu0 %339
  %v342 = vmul.f32 %v336, %v340
  %vm343 = vcmask 523264
  %v345 = vsel %vm343, 0.0, 0
  %347 = vmatprep.subr.mxu0 %v122
  %348 = vmatpush1.msra.mxu0 %v121
  %349 = vmatprep.subr.mxu0 %v125
  %350 = vmatpush1.msra.mxu0 %v124
  %351 = vmatprep.subr.mxu0 %v128
  %352 = vmatpush1.msra.mxu0 %v127
  %353 = vmatprep.subr.mxu0 %v131
  %354 = vmatpush1.msra.mxu0 %v130
  %355 = vmatprep.subr.mxu0 %v134
  %356 = vmatpush1.msra.mxu0 %v133
  %357 = vmatprep.subr.mxu0 %v137
  %358 = vmatpush1.msra.mxu0 %v136
  %359 = vmatprep.subr.mxu0 %v140
  %360 = vmatpush1.msra.mxu0 %v139
  %361 = vmatprep.subr.mxu0 %v143
  %362 = vmatpush1.msra.mxu0 %v142
  %363 = vmatprep.subr.mxu0 0.0
  %364 = vmatpush1.msra.mxu0 0.0
  %365 = vmatprep.subr.mxu0 0.0
  %366 = vmatpush1.msra.mxu0 0.0
  %367 = vmatprep.subr.mxu0 0.0
  %368 = vmatpush1.msra.mxu0 0.0
  %369 = vmatprep.subr.mxu0 0.0
  %370 = vmatpush1.msra.mxu0 0.0
  %371 = vmatprep.subr.mxu0 0.0
  %372 = vmatpush1.msra.mxu0 0.0
  %373 = vmatprep.subr.mxu0 0.0
  %374 = vmatpush1.msra.mxu0 0.0
  %375 = vmatprep.subr.mxu0 0.0
  %376 = vmatpush1.msra.mxu0 0.0
  %377 = vmatprep.subr.mxu0 0.0
  %378 = vmatpush1.msra.mxu0 0.0
  %379 = vmatprep.subr.mxu0 0.0
  %380 = vmatpush1.msra.mxu0 0.0
  %381 = vmatprep.subr.mxu0 0.0
  %382 = vmatpush1.msra.mxu0 0.0
  %383 = vmatprep.subr.mxu0 0.0
  %384 = vmatpush1.msra.mxu0 0.0
  %385 = vmatprep.subr.mxu0 0.0
  %386 = vmatpush1.msra.mxu0 0.0
  %387 = vmatprep.subr.mxu0 0.0
  %388 = vmatpush1.msra.mxu0 0.0
  %389 = vmatprep.subr.mxu0 0.0
  %390 = vmatpush1.msra.mxu0 0.0
  %391 = vmatprep.subr.mxu0 0.0
  %392 = vmatpush1.msra.mxu0 0.0
  %393 = vmatprep.subr.mxu0 0.0
  %394 = vmatpush1.msra.mxu0 0.0
  %395 = vmatprep.subr.mxu0 0.0
  %396 = vmatpush1.msra.mxu0 0.0
  %397 = vmatprep.subr.mxu0 0.0
  %398 = vmatpush1.msra.mxu0 0.0
  %399 = vmatprep.subr.mxu0 0.0
  %400 = vmatpush1.msra.mxu0 0.0
  %401 = vmatprep.subr.mxu0 0.0
  %402 = vmatpush1.msra.mxu0 0.0
  %403 = vmatprep.subr.mxu0 0.0
  %404 = vmatpush1.msra.mxu0 0.0
  %405 = vmatprep.subr.mxu0 0.0
  %406 = vmatpush1.msra.mxu0 0.0
  %407 = vmatprep.subr.mxu0 0.0
  %408 = vmatpush1.msra.mxu0 0.0
  %409 = vmatprep.subr.mxu0 0.0
  %410 = vmatpush1.msra.mxu0 0.0
  %411 = vmatprep.mubr.f32.mxu0 0.0
  %412 = vmatmul.mubr.f32.gmra.mrb[0].mxu0 %v345
  %v413 = vpop.f32.mrb[0].mxu0
  %v414 = vadd.f32 0.0, %v413
  %v415 = vpop.f32.mrb[0].mxu0
  %v416 = vadd.f32 0.0, %v415
  %417 = vdwg.mxu0
  %418 = vmatprep.subr.mxu0 0.0
  %419 = vmatpush1.msra.mxu0 %v123
  %420 = vmatprep.subr.mxu0 0.0
  %421 = vmatpush1.msra.mxu0 %v126
  %422 = vmatprep.subr.mxu0 0.0
  %423 = vmatpush1.msra.mxu0 %v129
  %424 = vmatprep.subr.mxu0 0.0
  %425 = vmatpush1.msra.mxu0 %v132
  %426 = vmatprep.subr.mxu0 0.0
  %427 = vmatpush1.msra.mxu0 %v135
  %428 = vmatprep.subr.mxu0 0.0
  %429 = vmatpush1.msra.mxu0 %v138
  %430 = vmatprep.subr.mxu0 0.0
  %431 = vmatpush1.msra.mxu0 %v141
  %432 = vmatprep.subr.mxu0 0.0
  %433 = vmatpush1.msra.mxu0 %v144
  %434 = vmatprep.subr.mxu0 0.0
  %435 = vmatpush1.msra.mxu0 0.0
  %436 = vmatprep.subr.mxu0 0.0
  %437 = vmatpush1.msra.mxu0 0.0
  %438 = vmatprep.subr.mxu0 0.0
  %439 = vmatpush1.msra.mxu0 0.0
  %440 = vmatprep.subr.mxu0 0.0
  %441 = vmatpush1.msra.mxu0 0.0
  %442 = vmatprep.subr.mxu0 0.0
  %443 = vmatpush1.msra.mxu0 0.0
  %444 = vmatprep.subr.mxu0 0.0
  %445 = vmatpush1.msra.mxu0 0.0
  %446 = vmatprep.subr.mxu0 0.0
  %447 = vmatpush1.msra.mxu0 0.0
  %448 = vmatprep.subr.mxu0 0.0
  %449 = vmatpush1.msra.mxu0 0.0
  %450 = vmatprep.subr.mxu0 0.0
  %451 = vmatpush1.msra.mxu0 0.0
  %452 = vmatprep.subr.mxu0 0.0
  %453 = vmatpush1.msra.mxu0 0.0
  %454 = vmatprep.subr.mxu0 0.0
  %455 = vmatpush1.msra.mxu0 0.0
  %456 = vmatprep.subr.mxu0 0.0
  %457 = vmatpush1.msra.mxu0 0.0
  %458 = vmatprep.subr.mxu0 0.0
  %459 = vmatpush1.msra.mxu0 0.0
  %460 = vmatprep.subr.mxu0 0.0
  %461 = vmatpush1.msra.mxu0 0.0
  %462 = vmatprep.subr.mxu0 0.0
  %463 = vmatpush1.msra.mxu0 0.0
  %464 = vmatprep.subr.mxu0 0.0
  %465 = vmatpush1.msra.mxu0 0.0
  %466 = vmatprep.subr.mxu0 0.0
  %467 = vmatpush1.msra.mxu0 0.0
  %468 = vmatprep.subr.mxu0 0.0
  %469 = vmatpush1.msra.mxu0 0.0
  %470 = vmatprep.subr.mxu0 0.0
  %471 = vmatpush1.msra.mxu0 0.0
  %472 = vmatprep.subr.mxu0 0.0
  %473 = vmatpush1.msra.mxu0 0.0
  %474 = vmatprep.subr.mxu0 0.0
  %475 = vmatpush1.msra.mxu0 0.0
  %476 = vmatprep.subr.mxu0 0.0
  %477 = vmatpush1.msra.mxu0 0.0
  %478 = vmatprep.subr.mxu0 0.0
  %479 = vmatpush1.msra.mxu0 0.0
  %480 = vmatprep.subr.mxu0 0.0
  %481 = vmatpush1.msra.mxu0 0.0
  %482 = vmatprep.mubr.f32.mxu0 0.0
  %483 = vmatmul.mubr.f32.gmra.mrb[0].mxu0 %v345
  %v484 = vpop.f32.mrb[0].mxu0
  %v485 = vadd.f32 0.0, %v484
  %v486 = vpop.f32.mrb[0].mxu0
  %487 = vdwg.mxu0
  %v488 = vadd.f32 %v334, %v414
  %v489 = vadd.f32 %v335, %v416
  %v490 = vtanh.pop %v488
  %v491 = vtanh.pop %v489
  %492 = vmatprep.subr.mxu0 0.0
  %493 = vmatpush1.msra.mxu0 %v145
  %494 = vmatprep.subr.mxu0 0.0
  %495 = vmatpush1.msra.mxu0 %v146
  %496 = vmatprep.subr.mxu0 0.0
  %497 = vmatpush1.msra.mxu0 %v147
  %498 = vmatprep.subr.mxu0 0.0
  %499 = vmatpush1.msra.mxu0 %v148
  %500 = vmatprep.subr.mxu0 0.0
  %501 = vmatpush1.msra.mxu0 %v149
  %502 = vmatprep.subr.mxu0 0.0
  %503 = vmatpush1.msra.mxu0 %v150
  %504 = vmatprep.subr.mxu0 0.0
  %505 = vmatpush1.msra.mxu0 %v151
  %506 = vmatprep.subr.mxu0 0.0
  %507 = vmatpush1.msra.mxu0 %v152
  %508 = vmatprep.subr.mxu0 0.0
  %509 = vmatpush1.msra.mxu0 %v153
  %510 = vmatprep.subr.mxu0 0.0
  %511 = vmatpush1.msra.mxu0 %v154
  %512 = vmatprep.subr.mxu0 0.0
  %513 = vmatpush1.msra.mxu0 %v155
  %514 = vmatprep.subr.mxu0 0.0
  %515 = vmatpush1.msra.mxu0 %v156
  %516 = vmatprep.subr.mxu0 0.0
  %517 = vmatpush1.msra.mxu0 %v157
  %518 = vmatprep.subr.mxu0 0.0
  %519 = vmatpush1.msra.mxu0 %v158
  %520 = vmatprep.subr.mxu0 0.0
  %521 = vmatpush1.msra.mxu0 %v159
  %522 = vmatprep.subr.mxu0 0.0
  %523 = vmatpush1.msra.mxu0 %v160
  %524 = vmatprep.subr.mxu0 0.0
  %525 = vmatpush1.msra.mxu0 %v161
  %526 = vmatprep.subr.mxu0 0.0
  %527 = vmatpush1.msra.mxu0 %v162
  %528 = vmatprep.subr.mxu0 0.0
  %529 = vmatpush1.msra.mxu0 %v163
  %530 = vmatprep.subr.mxu0 0.0
  %531 = vmatpush1.msra.mxu0 %v164
  %532 = vmatprep.subr.mxu0 0.0
  %533 = vmatpush1.msra.mxu0 %v165
  %534 = vmatprep.subr.mxu0 0.0
  %535 = vmatpush1.msra.mxu0 %v166
  %536 = vmatprep.subr.mxu0 0.0
  %537 = vmatpush1.msra.mxu0 %v167
  %538 = vmatprep.subr.mxu0 0.0
  %539 = vmatpush1.msra.mxu0 %v168
  %540 = vmatprep.subr.mxu0 0.0
  %541 = vmatpush1.msra.mxu0 %v169
  %542 = vmatprep.subr.mxu0 0.0
  %543 = vmatpush1.msra.mxu0 %v170
  %544 = vmatprep.subr.mxu0 0.0
  %545 = vmatpush1.msra.mxu0 %v171
  %546 = vmatprep.subr.mxu0 0.0
  %547 = vmatpush1.msra.mxu0 %v172
  %548 = vmatprep.subr.mxu0 0.0
  %549 = vmatpush1.msra.mxu0 %v173
  %550 = vmatprep.subr.mxu0 0.0
  %551 = vmatpush1.msra.mxu0 %v174
  %552 = vmatprep.subr.mxu0 0.0
  %553 = vmatpush1.msra.mxu0 %v175
  %554 = vmatprep.subr.mxu0 0.0
  %555 = vmatpush1.msra.mxu0 %v176
  %556 = vmatprep.mubr.f32.mxu0 %v491
  %557 = vmatmul.mubr.f32.gmra.mrb[0].mxu0 %v490
  %v558 = vpop.f32.mrb[0].mxu0
  %v559 = vadd.f32 0.0, %v558
  %v560 = vpop.f32.mrb[0].mxu0
  %561 = vdwg.mxu0
  %vm562 = vcmask 64512
  %v563 = vsel %vm562, %v559, -inf
  %564 = vmax.xlane.f32.xlu0 %v563
  %v565 = vpop.xlane.xlu0 %564
  %v566 = vsub.f32 %v559, %v565
  %v567 = vmul.f32 %v566, 1.442695
  %v568 = vpow.pop %v567
  %v569 = vsel %vm562, %v568, 0.0
  %570 = vadd.xlane.f32.xlu0 %v569
  %v571 = vpop.xlane.xlu0 %570
  %v572 = vrcp.pop %v571
  %v573 = vmul.f32 %v568, %v572
  %v574 = vmul.f32 %v573, %v320
  %v575 = vsel %vm562, %v574, 0.0
  %576 = vadd.xlane.f32.xlu0 %v575
  %v577 = vpop.xlane.xlu0 %576
  %v578 = vadd.f32 %v577, %v342
  %580 = vset.pattern.permute.xlu0 0
  %581 = vperm.xlu0 %580, %v578
  %v582 = vpop.permute.xlu0 %581
  %v584 = vmul.f32 %v582, %v178
  %v585 = vadd.f32 %v584, %v485
  %v586 = vadd.f32 %v585, %v179
  %v587 = vxor.u32 %v586, 2147483648
  %v588 = vmul.f32 %v587, 1.442695
  %v589 = vpow.pop %v588
  %v590 = vadd.f32 %v589, 1.0
  %v591 = vrcp.pop %v590
  %v592 = vmul.f32 1.0, %v591
  %v593 = vtanh.pop %v586
  %v594 = vmul.f32 %v592, 0.0
  %596 = vrot.lane.b32.xlu0 %v593, 64
  %v597 = vpop.permute.xlu0 %596
  %v599 = vmul.f32 %v592, %v597
  %601 = vrot.lane.b32.xlu0 %v599, 32
  %v602 = vpop.permute.xlu0 %601
  %v604 = vadd.f32 %v594, %v602
  %v605 = vtanh.pop %v604
  %607 = vrot.lane.b32.xlu0 %v605, 64
  %v608 = vpop.permute.xlu0 %607
  %v610 = vmul.f32 %v592, %v608
  %612 = vrot.lane.b32.xlu0 %v610, 32
  %v613 = vpop.permute.xlu0 %612
  %vm615 = vcmask 261120
  %v616 = vsel %vm615, %v613, %v604
  %v618 = vsel %vm343, %v616, 0
  %620 = vmatprep.subr.mxu0 %v122
  %621 = vmatpush1.msra.mxu0 %v121
  %622 = vmatprep.subr.mxu0 %v125
  %623 = vmatpush1.msra.mxu0 %v124
  %624 = vmatprep.subr.mxu0 %v128
  %625 = vmatpush1.msra.mxu0 %v127
  %626 = vmatprep.subr.mxu0 %v131
  %627 = vmatpush1.msra.mxu0 %v130
  %628 = vmatprep.subr.mxu0 %v134
  %629 = vmatpush1.msra.mxu0 %v133
  %630 = vmatprep.subr.mxu0 %v137
  %631 = vmatpush1.msra.mxu0 %v136
  %632 = vmatprep.subr.mxu0 %v140
  %633 = vmatpush1.msra.mxu0 %v139
  %634 = vmatprep.subr.mxu0 %v143
  %635 = vmatpush1.msra.mxu0 %v142
  %636 = vmatprep.subr.mxu0 0.0
  %637 = vmatpush1.msra.mxu0 0.0
  %638 = vmatprep.subr.mxu0 0.0
  %639 = vmatpush1.msra.mxu0 0.0
  %640 = vmatprep.subr.mxu0 0.0
  %641 = vmatpush1.msra.mxu0 0.0
  %642 = vmatprep.subr.mxu0 0.0
  %643 = vmatpush1.msra.mxu0 0.0
  %644 = vmatprep.subr.mxu0 0.0
  %645 = vmatpush1.msra.mxu0 0.0
  %646 = vmatprep.subr.mxu0 0.0
  %647 = vmatpush1.msra.mxu0 0.0
  %648 = vmatprep.subr.mxu0 0.0
  %649 = vmatpush1.msra.mxu0 0.0
  %650 = vmatprep.subr.mxu0 0.0
  %651 = vmatpush1.msra.mxu0 0.0
  %652 = vmatprep.subr.mxu0 0.0
  %653 = vmatpush1.msra.mxu0 0.0
  %654 = vmatprep.subr.mxu0 0.0
  %655 = vmatpush1.msra.mxu0 0.0
  %656 = vmatprep.subr.mxu0 0.0
  %657 = vmatpush1.msra.mxu0 0.0
  %658 = vmatprep.subr.mxu0 0.0
  %659 = vmatpush1.msra.mxu0 0.0
  %660 = vmatprep.subr.mxu0 0.0
  %661 = vmatpush1.msra.mxu0 0.0
  %662 = vmatprep.subr.mxu0 0.0
  %663 = vmatpush1.msra.mxu0 0.0
  %664 = vmatprep.subr.mxu0 0.0
  %665 = vmatpush1.msra.mxu0 0.0
  %666 = vmatprep.subr.mxu0 0.0
  %667 = vmatpush1.msra.mxu0 0.0
  %668 = vmatprep.subr.mxu0 0.0
  %669 = vmatpush1.msra.mxu0 0.0
  %670 = vmatprep.subr.mxu0 0.0
  %671 = vmatpush1.msra.mxu0 0.0
  %672 = vmatprep.subr.mxu0 0.0
  %673 = vmatpush1.msra.mxu0 0.0
  %674 = vmatprep.subr.mxu0 0.0
  %675 = vmatpush1.msra.mxu0 0.0
  %676 = vmatprep.subr.mxu0 0.0
  %677 = vmatpush1.msra.mxu0 0.0
  %678 = vmatprep.subr.mxu0 0.0
  %679 = vmatpush1.msra.mxu0 0.0
  %680 = vmatprep.subr.mxu0 0.0
  %681 = vmatpush1.msra.mxu0 0.0
  %682 = vmatprep.subr.mxu0 0.0
  %683 = vmatpush1.msra.mxu0 0.0
  %684 = vmatprep.mubr.f32.mxu0 0.0
  %685 = vmatmul.mubr.f32.gmra.mrb[0].mxu0 %v618
  %v686 = vpop.f32.mrb[0].mxu0
  %v687 = vadd.f32 0.0, %v686
  %v688 = vpop.f32.mrb[0].mxu0
  %v689 = vadd.f32 0.0, %v688
  %690 = vdwg.mxu0
  %691 = vmatprep.subr.mxu0 0.0
  %692 = vmatpush1.msra.mxu0 %v123
  %693 = vmatprep.subr.mxu0 0.0
  %694 = vmatpush1.msra.mxu0 %v126
  %695 = vmatprep.subr.mxu0 0.0
  %696 = vmatpush1.msra.mxu0 %v129
  %697 = vmatprep.subr.mxu0 0.0
  %698 = vmatpush1.msra.mxu0 %v132
  %699 = vmatprep.subr.mxu0 0.0
  %700 = vmatpush1.msra.mxu0 %v135
  %701 = vmatprep.subr.mxu0 0.0
  %702 = vmatpush1.msra.mxu0 %v138
  %703 = vmatprep.subr.mxu0 0.0
  %704 = vmatpush1.msra.mxu0 %v141
  %705 = vmatprep.subr.mxu0 0.0
  %706 = vmatpush1.msra.mxu0 %v144
  %707 = vmatprep.subr.mxu0 0.0
  %708 = vmatpush1.msra.mxu0 0.0
  %709 = vmatprep.subr.mxu0 0.0
  %710 = vmatpush1.msra.mxu0 0.0
  %711 = vmatprep.subr.mxu0 0.0
  %712 = vmatpush1.msra.mxu0 0.0
  %713 = vmatprep.subr.mxu0 0.0
  %714 = vmatpush1.msra.mxu0 0.0
  %715 = vmatprep.subr.mxu0 0.0
  %716 = vmatpush1.msra.mxu0 0.0
  %717 = vmatprep.subr.mxu0 0.0
  %718 = vmatpush1.msra.mxu0 0.0
  %719 = vmatprep.subr.mxu0 0.0
  %720 = vmatpush1.msra.mxu0 0.0
  %721 = vmatprep.subr.mxu0 0.0
  %722 = vmatpush1.msra.mxu0 0.0
  %723 = vmatprep.subr.mxu0 0.0
  %724 = vmatpush1.msra.mxu0 0.0
  %725 = vmatprep.subr.mxu0 0.0
  %726 = vmatpush1.msra.mxu0 0.0
  %727 = vmatprep.subr.mxu0 0.0
  %728 = vmatpush1.msra.mxu0 0.0
  %729 = vmatprep.subr.mxu0 0.0
  %730 = vmatpush1.msra.mxu0 0.0
  %731 = vmatprep.subr.mxu0 0.0
  %732 = vmatpush1.msra.mxu0 0.0
  %733 = vmatprep.subr.mxu0 0.0
  %734 = vmatpush1.msra.mxu0 0.0
  %735 = vmatprep.subr.mxu0 0.0
  %736 = vmatpush1.msra.mxu0 0.0
  %737 = vmatprep.subr.mxu0 0.0
  %738 = vmatpush1.msra.mxu0 0.0
  %739 = vmatprep.subr.mxu0 0.0
  %740 = vmatpush1.msra.mxu0 0.0
  %741 = vmatprep.subr.mxu0 0.0
  %742 = vmatpush1.msra.mxu0 0.0
  %743 = vmatprep.subr.mxu0 0.0
  %744 = vmatpush1.msra.mxu0 0.0
  %745 = vmatprep.subr.mxu0 0.0
  %746 = vmatpush1.msra.mxu0 0.0
  %747 = vmatprep.subr.mxu0 0.0
  %748 = vmatpush1.msra.mxu0 0.0
  %749 = vmatprep.subr.mxu0 0.0
  %750 = vmatpush1.msra.mxu0 0.0
  %751 = vmatprep.subr.mxu0 0.0
  %752 = vmatpush1.msra.mxu0 0.0
  %753 = vmatprep.subr.mxu0 0.0
  %754 = vmatpush1.msra.mxu0 0.0
  %755 = vmatprep.mubr.f32.mxu0 0.0
  %756 = vmatmul.mubr.f32.gmra.mrb[0].mxu0 %v618
  %v757 = vpop.f32.mrb[0].mxu0
  %v758 = vadd.f32 0.0, %v757
  %v759 = vpop.f32.mrb[0].mxu0
  %760 = vdwg.mxu0
  %v761 = vadd.f32 %v334, %v687
  %v762 = vadd.f32 %v335, %v689
  %v763 = vtanh.pop %v761
  %v764 = vtanh.pop %v762
  %765 = vmatprep.subr.mxu0 0.0
  %766 = vmatpush1.msra.mxu0 %v145
  %767 = vmatprep.subr.mxu0 0.0
  %768 = vmatpush1.msra.mxu0 %v146
  %769 = vmatprep.subr.mxu0 0.0
  %770 = vmatpush1.msra.mxu0 %v147
  %771 = vmatprep.subr.mxu0 0.0
  %772 = vmatpush1.msra.mxu0 %v148
  %773 = vmatprep.subr.mxu0 0.0
  %774 = vmatpush1.msra.mxu0 %v149
  %775 = vmatprep.subr.mxu0 0.0
  %776 = vmatpush1.msra.mxu0 %v150
  %777 = vmatprep.subr.mxu0 0.0
  %778 = vmatpush1.msra.mxu0 %v151
  %779 = vmatprep.subr.mxu0 0.0
  %780 = vmatpush1.msra.mxu0 %v152
  %781 = vmatprep.subr.mxu0 0.0
  %782 = vmatpush1.msra.mxu0 %v153
  %783 = vmatprep.subr.mxu0 0.0
  %784 = vmatpush1.msra.mxu0 %v154
  %785 = vmatprep.subr.mxu0 0.0
  %786 = vmatpush1.msra.mxu0 %v155
  %787 = vmatprep.subr.mxu0 0.0
  %788 = vmatpush1.msra.mxu0 %v156
  %789 = vmatprep.subr.mxu0 0.0
  %790 = vmatpush1.msra.mxu0 %v157
  %791 = vmatprep.subr.mxu0 0.0
  %792 = vmatpush1.msra.mxu0 %v158
  %793 = vmatprep.subr.mxu0 0.0
  %794 = vmatpush1.msra.mxu0 %v159
  %795 = vmatprep.subr.mxu0 0.0
  %796 = vmatpush1.msra.mxu0 %v160
  %797 = vmatprep.subr.mxu0 0.0
  %798 = vmatpush1.msra.mxu0 %v161
  %799 = vmatprep.subr.mxu0 0.0
  %800 = vmatpush1.msra.mxu0 %v162
  %801 = vmatprep.subr.mxu0 0.0
  %802 = vmatpush1.msra.mxu0 %v163
  %803 = vmatprep.subr.mxu0 0.0
  %804 = vmatpush1.msra.mxu0 %v164
  %805 = vmatprep.subr.mxu0 0.0
  %806 = vmatpush1.msra.mxu0 %v165
  %807 = vmatprep.subr.mxu0 0.0
  %808 = vmatpush1.msra.mxu0 %v166
  %809 = vmatprep.subr.mxu0 0.0
  %810 = vmatpush1.msra.mxu0 %v167
  %811 = vmatprep.subr.mxu0 0.0
  %812 = vmatpush1.msra.mxu0 %v168
  %813 = vmatprep.subr.mxu0 0.0
  %814 = vmatpush1.msra.mxu0 %v169
  %815 = vmatprep.subr.mxu0 0.0
  %816 = vmatpush1.msra.mxu0 %v170
  %817 = vmatprep.subr.mxu0 0.0
  %818 = vmatpush1.msra.mxu0 %v171
  %819 = vmatprep.subr.mxu0 0.0
  %820 = vmatpush1.msra.mxu0 %v172
  %821 = vmatprep.subr.mxu0 0.0
  %822 = vmatpush1.msra.mxu0 %v173
  %823 = vmatprep.subr.mxu0 0.0
  %824 = vmatpush1.msra.mxu0 %v174
  %825 = vmatprep.subr.mxu0 0.0
  %826 = vmatpush1.msra.mxu0 %v175
  %827 = vmatprep.subr.mxu0 0.0
  %828 = vmatpush1.msra.mxu0 %v176
  %829 = vmatprep.mubr.f32.mxu0 %v764
  %830 = vmatmul.mubr.f32.gmra.mrb[0].mxu0 %v763
  %v831 = vpop.f32.mrb[0].mxu0
  %v832 = vadd.f32 0.0, %v831
  %v833 = vpop.f32.mrb[0].mxu0
  %834 = vdwg.mxu0
  %v835 = vsel %vm562, %v832, -inf
  %836 = vmax.xlane.f32.xlu0 %v835
  %v837 = vpop.xlane.xlu0 %836
  %v838 = vsub.f32 %v832, %v837
  %v839 = vmul.f32 %v838, 1.442695
  %v840 = vpow.pop %v839
  %v841 = vsel %vm562, %v840, 0.0
  %842 = vadd.xlane.f32.xlu0 %v841
  %v843 = vpop.xlane.xlu0 %842
  %v844 = vrcp.pop %v843
  %v845 = vmul.f32 %v840, %v844
  %v846 = vmul.f32 %v845, %v320
  %v847 = vsel %vm562, %v846, 0.0
  %848 = vadd.xlane.f32.xlu0 %v847
  %v849 = vpop.xlane.xlu0 %848
  %v850 = vadd.f32 %v849, %v342
  %852 = vset.pattern.permute.xlu0 1
  %853 = vperm.xlu0 %852, %v850
  %v854 = vpop.permute.xlu0 %853
  %v856 = vmul.f32 %v854, %v178
  %v857 = vadd.f32 %v856, %v758
  %v858 = vadd.f32 %v857, %v179
  %v859 = vxor.u32 %v858, 2147483648
  %v860 = vmul.f32 %v859, 1.442695
  %v861 = vpow.pop %v860
  %v862 = vadd.f32 %v861, 1.0
  %v863 = vrcp.pop %v862
  %v864 = vmul.f32 1.0, %v863
  %v865 = vtanh.pop %v858
  %v866 = vmul.f32 %v864, %v604
  %868 = vrot.lane.b32.xlu0 %v865, 64
  %v869 = vpop.permute.xlu0 %868
  %v871 = vmul.f32 %v864, %v869
  %873 = vrot.lane.b32.xlu0 %v871, 32
  %v874 = vpop.permute.xlu0 %873
  %v876 = vadd.f32 %v866, %v874
  %v877 = vtanh.pop %v876
  %879 = vrot.lane.b32.xlu0 %v877, 64
  %v880 = vpop.permute.xlu0 %879
  %v882 = vmul.f32 %v864, %v880
  %884 = vrot.lane.b32.xlu0 %v882, 32
  %v885 = vpop.permute.xlu0 %884
  %v887 = vsel %vm615, %v885, %v876
  %v889 = vsel %vm343, %v887, 0
  %891 = vmatprep.subr.mxu0 %v122
  %892 = vmatpush1.msra.mxu0 %v121
  %893 = vmatprep.subr.mxu0 %v125
  %894 = vmatpush1.msra.mxu0 %v124
  %895 = vmatprep.subr.mxu0 %v128
  %896 = vmatpush1.msra.mxu0 %v127
  %897 = vmatprep.subr.mxu0 %v131
  %898 = vmatpush1.msra.mxu0 %v130
  %899 = vmatprep.subr.mxu0 %v134
  %900 = vmatpush1.msra.mxu0 %v133
  %901 = vmatprep.subr.mxu0 %v137
  %902 = vmatpush1.msra.mxu0 %v136
  %903 = vmatprep.subr.mxu0 %v140
  %904 = vmatpush1.msra.mxu0 %v139
  %905 = vmatprep.subr.mxu0 %v143
  %906 = vmatpush1.msra.mxu0 %v142
  %907 = vmatprep.subr.mxu0 0.0
  %908 = vmatpush1.msra.mxu0 0.0
  %909 = vmatprep.subr.mxu0 0.0
  %910 = vmatpush1.msra.mxu0 0.0
  %911 = vmatprep.subr.mxu0 0.0
  %912 = vmatpush1.msra.mxu0 0.0
  %913 = vmatprep.subr.mxu0 0.0
  %914 = vmatpush1.msra.mxu0 0.0
  %915 = vmatprep.subr.mxu0 0.0
  %916 = vmatpush1.msra.mxu0 0.0
  %917 = vmatprep.subr.mxu0 0.0
  %918 = vmatpush1.msra.mxu0 0.0
  %919 = vmatprep.subr.mxu0 0.0
  %920 = vmatpush1.msra.mxu0 0.0
  %921 = vmatprep.subr.mxu0 0.0
  %922 = vmatpush1.msra.mxu0 0.0
  %923 = vmatprep.subr.mxu0 0.0
  %924 = vmatpush1.msra.mxu0 0.0
  %925 = vmatprep.subr.mxu0 0.0
  %926 = vmatpush1.msra.mxu0 0.0
  %927 = vmatprep.subr.mxu0 0.0
  %928 = vmatpush1.msra.mxu0 0.0
  %929 = vmatprep.subr.mxu0 0.0
  %930 = vmatpush1.msra.mxu0 0.0
  %931 = vmatprep.subr.mxu0 0.0
  %932 = vmatpush1.msra.mxu0 0.0
  %933 = vmatprep.subr.mxu0 0.0
  %934 = vmatpush1.msra.mxu0 0.0
  %935 = vmatprep.subr.mxu0 0.0
  %936 = vmatpush1.msra.mxu0 0.0
  %937 = vmatprep.subr.mxu0 0.0
  %938 = vmatpush1.msra.mxu0 0.0
  %939 = vmatprep.subr.mxu0 0.0
  %940 = vmatpush1.msra.mxu0 0.0
  %941 = vmatprep.subr.mxu0 0.0
  %942 = vmatpush1.msra.mxu0 0.0
  %943 = vmatprep.subr.mxu0 0.0
  %944 = vmatpush1.msra.mxu0 0.0
  %945 = vmatprep.subr.mxu0 0.0
  %946 = vmatpush1.msra.mxu0 0.0
  %947 = vmatprep.subr.mxu0 0.0
  %948 = vmatpush1.msra.mxu0 0.0
  %949 = vmatprep.subr.mxu0 0.0
  %950 = vmatpush1.msra.mxu0 0.0
  %951 = vmatprep.subr.mxu0 0.0
  %952 = vmatpush1.msra.mxu0 0.0
  %953 = vmatprep.subr.mxu0 0.0
  %954 = vmatpush1.msra.mxu0 0.0
  %955 = vmatprep.mubr.f32.mxu0 0.0
  %956 = vmatmul.mubr.f32.gmra.mrb[0].mxu0 %v889
  %v957 = vpop.f32.mrb[0].mxu0
  %v958 = vadd.f32 0.0, %v957
  %v959 = vpop.f32.mrb[0].mxu0
  %v960 = vadd.f32 0.0, %v959
  %961 = vdwg.mxu0
  %962 = vmatprep.subr.mxu0 0.0
  %963 = vmatpush1.msra.mxu0 %v123
  %964 = vmatprep.subr.mxu0 0.0
  %965 = vmatpush1.msra.mxu0 %v126
  %966 = vmatprep.subr.mxu0 0.0
  %967 = vmatpush1.msra.mxu0 %v129
  %968 = vmatprep.subr.mxu0 0.0
  %969 = vmatpush1.msra.mxu0 %v132
  %970 = vmatprep.subr.mxu0 0.0
  %971 = vmatpush1.msra.mxu0 %v135
  %972 = vmatprep.subr.mxu0 0.0
  %973 = vmatpush1.msra.mxu0 %v138
  %974 = vmatprep.subr.mxu0 0.0
  %975 = vmatpush1.msra.mxu0 %v141
  %976 = vmatprep.subr.mxu0 0.0
  %977 = vmatpush1.msra.mxu0 %v144
  %978 = vmatprep.subr.mxu0 0.0
  %979 = vmatpush1.msra.mxu0 0.0
  %980 = vmatprep.subr.mxu0 0.0
  %981 = vmatpush1.msra.mxu0 0.0
  %982 = vmatprep.subr.mxu0 0.0
  %983 = vmatpush1.msra.mxu0 0.0
  %984 = vmatprep.subr.mxu0 0.0
  %985 = vmatpush1.msra.mxu0 0.0
  %986 = vmatprep.subr.mxu0 0.0
  %987 = vmatpush1.msra.mxu0 0.0
  %988 = vmatprep.subr.mxu0 0.0
  %989 = vmatpush1.msra.mxu0 0.0
  %990 = vmatprep.subr.mxu0 0.0
  %991 = vmatpush1.msra.mxu0 0.0
  %992 = vmatprep.subr.mxu0 0.0
  %993 = vmatpush1.msra.mxu0 0.0
  %994 = vmatprep.subr.mxu0 0.0
  %995 = vmatpush1.msra.mxu0 0.0
  %996 = vmatprep.subr.mxu0 0.0
  %997 = vmatpush1.msra.mxu0 0.0
  %998 = vmatprep.subr.mxu0 0.0
  %999 = vmatpush1.msra.mxu0 0.0
  %1000 = vmatprep.subr.mxu0 0.0
  %1001 = vmatpush1.msra.mxu0 0.0
  %1002 = vmatprep.subr.mxu0 0.0
  %1003 = vmatpush1.msra.mxu0 0.0
  %1004 = vmatprep.subr.mxu0 0.0
  %1005 = vmatpush1.msra.mxu0 0.0
  %1006 = vmatprep.subr.mxu0 0.0
  %1007 = vmatpush1.msra.mxu0 0.0
  %1008 = vmatprep.subr.mxu0 0.0
  %1009 = vmatpush1.msra.mxu0 0.0
  %1010 = vmatprep.subr.mxu0 0.0
  %1011 = vmatpush1.msra.mxu0 0.0
  %1012 = vmatprep.subr.mxu0 0.0
  %1013 = vmatpush1.msra.mxu0 0.0
  %1014 = vmatprep.subr.mxu0 0.0
  %1015 = vmatpush1.msra.mxu0 0.0
  %1016 = vmatprep.subr.mxu0 0.0
  %1017 = vmatpush1.msra.mxu0 0.0
  %1018 = vmatprep.subr.mxu0 0.0
  %1019 = vmatpush1.msra.mxu0 0.0
  %1020 = vmatprep.subr.mxu0 0.0
  %1021 = vmatpush1.msra.mxu0 0.0
  %1022 = vmatprep.subr.mxu0 0.0
  %1023 = vmatpush1.msra.mxu0 0.0
  %1024 = vmatprep.subr.mxu0 0.0
  %1025 = vmatpush1.msra.mxu0 0.0
  %1026 = vmatprep.mubr.f32.mxu0 0.0
  %1027 = vmatmul.mubr.f32.gmra.mrb[0].mxu0 %v889
  %v1028 = vpop.f32.mrb[0].mxu0
  %v1029 = vadd.f32 0.0, %v1028
  %v1030 = vpop.f32.mrb[0].mxu0
  %1031 = vdwg.mxu0
  %v1032 = vadd.f32 %v334, %v958
  %v1033 = vadd.f32 %v335, %v960
  %v1034 = vtanh.pop %v1032
  %v1035 = vtanh.pop %v1033
  %1036 = vmatprep.subr.mxu0 0.0
  %1037 = vmatpush1.msra.mxu0 %v145
  %1038 = vmatprep.subr.mxu0 0.0
  %1039 = vmatpush1.msra.mxu0 %v146
  %1040 = vmatprep.subr.mxu0 0.0
  %1041 = vmatpush1.msra.mxu0 %v147
  %1042 = vmatprep.subr.mxu0 0.0
  %1043 = vmatpush1.msra.mxu0 %v148
  %1044 = vmatprep.subr.mxu0 0.0
  %1045 = vmatpush1.msra.mxu0 %v149
  %1046 = vmatprep.subr.mxu0 0.0
  %1047 = vmatpush1.msra.mxu0 %v150
  %1048 = vmatprep.subr.mxu0 0.0
  %1049 = vmatpush1.msra.mxu0 %v151
  %1050 = vmatprep.subr.mxu0 0.0
  %1051 = vmatpush1.msra.mxu0 %v152
  %1052 = vmatprep.subr.mxu0 0.0
  %1053 = vmatpush1.msra.mxu0 %v153
  %1054 = vmatprep.subr.mxu0 0.0
  %1055 = vmatpush1.msra.mxu0 %v154
  %1056 = vmatprep.subr.mxu0 0.0
  %1057 = vmatpush1.msra.mxu0 %v155
  %1058 = vmatprep.subr.mxu0 0.0
  %1059 = vmatpush1.msra.mxu0 %v156
  %1060 = vmatprep.subr.mxu0 0.0
  %1061 = vmatpush1.msra.mxu0 %v157
  %1062 = vmatprep.subr.mxu0 0.0
  %1063 = vmatpush1.msra.mxu0 %v158
  %1064 = vmatprep.subr.mxu0 0.0
  %1065 = vmatpush1.msra.mxu0 %v159
  %1066 = vmatprep.subr.mxu0 0.0
  %1067 = vmatpush1.msra.mxu0 %v160
  %1068 = vmatprep.subr.mxu0 0.0
  %1069 = vmatpush1.msra.mxu0 %v161
  %1070 = vmatprep.subr.mxu0 0.0
  %1071 = vmatpush1.msra.mxu0 %v162
  %1072 = vmatprep.subr.mxu0 0.0
  %1073 = vmatpush1.msra.mxu0 %v163
  %1074 = vmatprep.subr.mxu0 0.0
  %1075 = vmatpush1.msra.mxu0 %v164
  %1076 = vmatprep.subr.mxu0 0.0
  %1077 = vmatpush1.msra.mxu0 %v165
  %1078 = vmatprep.subr.mxu0 0.0
  %1079 = vmatpush1.msra.mxu0 %v166
  %1080 = vmatprep.subr.mxu0 0.0
  %1081 = vmatpush1.msra.mxu0 %v167
  %1082 = vmatprep.subr.mxu0 0.0
  %1083 = vmatpush1.msra.mxu0 %v168
  %1084 = vmatprep.subr.mxu0 0.0
  %1085 = vmatpush1.msra.mxu0 %v169
  %1086 = vmatprep.subr.mxu0 0.0
  %1087 = vmatpush1.msra.mxu0 %v170
  %1088 = vmatprep.subr.mxu0 0.0
  %1089 = vmatpush1.msra.mxu0 %v171
  %1090 = vmatprep.subr.mxu0 0.0
  %1091 = vmatpush1.msra.mxu0 %v172
  %1092 = vmatprep.subr.mxu0 0.0
  %1093 = vmatpush1.msra.mxu0 %v173
  %1094 = vmatprep.subr.mxu0 0.0
  %1095 = vmatpush1.msra.mxu0 %v174
  %1096 = vmatprep.subr.mxu0 0.0
  %1097 = vmatpush1.msra.mxu0 %v175
  %1098 = vmatprep.subr.mxu0 0.0
  %1099 = vmatpush1.msra.mxu0 %v176
  %1100 = vmatprep.mubr.f32.mxu0 %v1035
  %1101 = vmatmul.mubr.f32.gmra.mrb[0].mxu0 %v1034
  %v1102 = vpop.f32.mrb[0].mxu0
  %v1103 = vadd.f32 0.0, %v1102
  %v1104 = vpop.f32.mrb[0].mxu0
  %1105 = vdwg.mxu0
  %v1106 = vsel %vm562, %v1103, -inf
  %1107 = vmax.xlane.f32.xlu0 %v1106
  %v1108 = vpop.xlane.xlu0 %1107
  %v1109 = vsub.f32 %v1103, %v1108
  %v1110 = vmul.f32 %v1109, 1.442695
  %v1111 = vpow.pop %v1110
  %v1112 = vsel %vm562, %v1111, 0.0
  %1113 = vadd.xlane.f32.xlu0 %v1112
  %v1114 = vpop.xlane.xlu0 %1113
  %v1115 = vrcp.pop %v1114
  %v1116 = vmul.f32 %v1111, %v1115
  %v1117 = vmul.f32 %v1116, %v320
  %v1118 = vsel %vm562, %v1117, 0.0
  %1119 = vadd.xlane.f32.xlu0 %v1118
  %v1120 = vpop.xlane.xlu0 %1119
  %v1121 = vadd.f32 %v1120, %v342
  %1123 = vset.pattern.permute.xlu0 2
  %1124 = vperm.xlu0 %1123, %v1121
  %v1125 = vpop.permute.xlu0 %1124
  %v1127 = vmul.f32 %v1125, %v178
  %v1128 = vadd.f32 %v1127, %v1029
  %v1129 = vadd.f32 %v1128, %v179
  %v1130 = vxor.u32 %v1129, 2147483648
  %v1131 = vmul.f32 %v1130, 1.442695
  %v1132 = vpow.pop %v1131
  %v1133 = vadd.f32 %v1132, 1.0
  %v1134 = vrcp.pop %v1133
  %v1135 = vmul.f32 1.0, %v1134
  %v1136 = vtanh.pop %v1129
  %v1137 = vmul.f32 %v1135, %v876
  %1139 = vrot.lane.b32.xlu0 %v1136, 64
  %v1140 = vpop.permute.xlu0 %1139
  %v1142 = vmul.f32 %v1135, %v1140
  %1144 = vrot.lane.b32.xlu0 %v1142, 32
  %v1145 = vpop.permute.xlu0 %1144
  %v1147 = vadd.f32 %v1137, %v1145
  %v1148 = vtanh.pop %v1147
  %1150 = vrot.lane.b32.xlu0 %v1148, 64
  %v1151 = vpop.permute.xlu0 %1150
  %v1153 = vmul.f32 %v1135, %v1151
  %1155 = vrot.lane.b32.xlu0 %v1153, 32
  %v1156 = vpop.permute.xlu0 %1155
  %v1158 = vsel %vm615, %v1156, %v1147
  %v1160 = vsel %vm343, %v1158, 0
  %1162 = vmatprep.subr.mxu0 %v122
  %1163 = vmatpush1.msra.mxu0 %v121
  %1164 = vmatprep.subr.mxu0 %v125
  %1165 = vmatpush1.msra.mxu0 %v124
  %1166 = vmatprep.subr.mxu0 %v128
  %1167 = vmatpush1.msra.mxu0 %v127
  %1168 = vmatprep.subr.mxu0 %v131
  %1169 = vmatpush1.msra.mxu0 %v130
  %1170 = vmatprep.subr.mxu0 %v134
  %1171 = vmatpush1.msra.mxu0 %v133
  %1172 = vmatprep.subr.mxu0 %v137
  %1173 = vmatpush1.msra.mxu0 %v136
  %1174 = vmatprep.subr.mxu0 %v140
  %1175 = vmatpush1.msra.mxu0 %v139
  %1176 = vmatprep.subr.mxu0 %v143
  %1177 = vmatpush1.msra.mxu0 %v142
  %1178 = vmatprep.subr.mxu0 0.0
  %1179 = vmatpush1.msra.mxu0 0.0
  %1180 = vmatprep.subr.mxu0 0.0
  %1181 = vmatpush1.msra.mxu0 0.0
  %1182 = vmatprep.subr.mxu0 0.0
  %1183 = vmatpush1.msra.mxu0 0.0
  %1184 = vmatprep.subr.mxu0 0.0
  %1185 = vmatpush1.msra.mxu0 0.0
  %1186 = vmatprep.subr.mxu0 0.0
  %1187 = vmatpush1.msra.mxu0 0.0
  %1188 = vmatprep.subr.mxu0 0.0
  %1189 = vmatpush1.msra.mxu0 0.0
  %1190 = vmatprep.subr.mxu0 0.0
  %1191 = vmatpush1.msra.mxu0 0.0
  %1192 = vmatprep.subr.mxu0 0.0
  %1193 = vmatpush1.msra.mxu0 0.0
  %1194 = vmatprep.subr.mxu0 0.0
  %1195 = vmatpush1.msra.mxu0 0.0
  %1196 = vmatprep.subr.mxu0 0.0
  %1197 = vmatpush1.msra.mxu0 0.0
  %1198 = vmatprep.subr.mxu0 0.0
  %1199 = vmatpush1.msra.mxu0 0.0
  %1200 = vmatprep.subr.mxu0 0.0
  %1201 = vmatpush1.msra.mxu0 0.0
  %1202 = vmatprep.subr.mxu0 0.0
  %1203 = vmatpush1.msra.mxu0 0.0
  %1204 = vmatprep.subr.mxu0 0.0
  %1205 = vmatpush1.msra.mxu0 0.0
  %1206 = vmatprep.subr.mxu0 0.0
  %1207 = vmatpush1.msra.mxu0 0.0
  %1208 = vmatprep.subr.mxu0 0.0
  %1209 = vmatpush1.msra.mxu0 0.0
  %1210 = vmatprep.subr.mxu0 0.0
  %1211 = vmatpush1.msra.mxu0 0.0
  %1212 = vmatprep.subr.mxu0 0.0
  %1213 = vmatpush1.msra.mxu0 0.0
  %1214 = vmatprep.subr.mxu0 0.0
  %1215 = vmatpush1.msra.mxu0 0.0
  %1216 = vmatprep.subr.mxu0 0.0
  %1217 = vmatpush1.msra.mxu0 0.0
  %1218 = vmatprep.subr.mxu0 0.0
  %1219 = vmatpush1.msra.mxu0 0.0
  %1220 = vmatprep.subr.mxu0 0.0
  %1221 = vmatpush1.msra.mxu0 0.0
  %1222 = vmatprep.subr.mxu0 0.0
  %1223 = vmatpush1.msra.mxu0 0.0
  %1224 = vmatprep.subr.mxu0 0.0
  %1225 = vmatpush1.msra.mxu0 0.0
  %1226 = vmatprep.mubr.f32.mxu0 0.0
  %1227 = vmatmul.mubr.f32.gmra.mrb[0].mxu0 %v1160
  %v1228 = vpop.f32.mrb[0].mxu0
  %v1229 = vadd.f32 0.0, %v1228
  %v1230 = vpop.f32.mrb[0].mxu0
  %v1231 = vadd.f32 0.0, %v1230
  %1232 = vdwg.mxu0
  %1233 = vmatprep.subr.mxu0 0.0
  %1234 = vmatpush1.msra.mxu0 %v123
  %1235 = vmatprep.subr.mxu0 0.0
  %1236 = vmatpush1.msra.mxu0 %v126
  %1237 = vmatprep.subr.mxu0 0.0
  %1238 = vmatpush1.msra.mxu0 %v129
  %1239 = vmatprep.subr.mxu0 0.0
  %1240 = vmatpush1.msra.mxu0 %v132
  %1241 = vmatprep.subr.mxu0 0.0
  %1242 = vmatpush1.msra.mxu0 %v135
  %1243 = vmatprep.subr.mxu0 0.0
  %1244 = vmatpush1.msra.mxu0 %v138
  %1245 = vmatprep.subr.mxu0 0.0
  %1246 = vmatpush1.msra.mxu0 %v141
  %1247 = vmatprep.subr.mxu0 0.0
  %1248 = vmatpush1.msra.mxu0 %v144
  %1249 = vmatprep.subr.mxu0 0.0
  %1250 = vmatpush1.msra.mxu0 0.0
  %1251 = vmatprep.subr.mxu0 0.0
  %1252 = vmatpush1.msra.mxu0 0.0
  %1253 = vmatprep.subr.mxu0 0.0
  %1254 = vmatpush1.msra.mxu0 0.0
  %1255 = vmatprep.subr.mxu0 0.0
  %1256 = vmatpush1.msra.mxu0 0.0
  %1257 = vmatprep.subr.mxu0 0.0
  %1258 = vmatpush1.msra.mxu0 0.0
  %1259 = vmatprep.subr.mxu0 0.0
  %1260 = vmatpush1.msra.mxu0 0.0
  %1261 = vmatprep.subr.mxu0 0.0
  %1262 = vmatpush1.msra.mxu0 0.0
  %1263 = vmatprep.subr.mxu0 0.0
  %1264 = vmatpush1.msra.mxu0 0.0
  %1265 = vmatprep.subr.mxu0 0.0
  %1266 = vmatpush1.msra.mxu0 0.0
  %1267 = vmatprep.subr.mxu0 0.0
  %1268 = vmatpush1.msra.mxu0 0.0
  %1269 = vmatprep.subr.mxu0 0.0
  %1270 = vmatpush1.msra.mxu0 0.0
  %1271 = vmatprep.subr.mxu0 0.0
  %1272 = vmatpush1.msra.mxu0 0.0
  %1273 = vmatprep.subr.mxu0 0.0
  %1274 = vmatpush1.msra.mxu0 0.0
  %1275 = vmatprep.subr.mxu0 0.0
  %1276 = vmatpush1.msra.mxu0 0.0
  %1277 = vmatprep.subr.mxu0 0.0
  %1278 = vmatpush1.msra.mxu0 0.0
  %1279 = vmatprep.subr.mxu0 0.0
  %1280 = vmatpush1.msra.mxu0 0.0
  %1281 = vmatprep.subr.mxu0 0.0
  %1282 = vmatpush1.msra.mxu0 0.0
  %1283 = vmatprep.subr.mxu0 0.0
  %1284 = vmatpush1.msra.mxu0 0.0
  %1285 = vmatprep.subr.mxu0 0.0
  %1286 = vmatpush1.msra.mxu0 0.0
  %1287 = vmatprep.subr.mxu0 0.0
  %1288 = vmatpush1.msra.mxu0 0.0
  %1289 = vmatprep.subr.mxu0 0.0
  %1290 = vmatpush1.msra.mxu0 0.0
  %1291 = vmatprep.subr.mxu0 0.0
  %1292 = vmatpush1.msra.mxu0 0.0
  %1293 = vmatprep.subr.mxu0 0.0
  %1294 = vmatpush1.msra.mxu0 0.0
  %1295 = vmatprep.subr.mxu0 0.0
  %1296 = vmatpush1.msra.mxu0 0.0
  %1297 = vmatprep.mubr.f32.mxu0 0.0
  %1298 = vmatmul.mubr.f32.gmra.mrb[0].mxu0 %v1160
  %v1299 = vpop.f32.mrb[0].mxu0
  %v1300 = vadd.f32 0.0, %v1299
  %v1301 = vpop.f32.mrb[0].mxu0
  %1302 = vdwg.mxu0
  %v1303 = vadd.f32 %v334, %v1229
  %v1304 = vadd.f32 %v335, %v1231
  %v1305 = vtanh.pop %v1303
  %v1306 = vtanh.pop %v1304
  %1307 = vmatprep.subr.mxu0 0.0
  %1308 = vmatpush1.msra.mxu0 %v145
  %1309 = vmatprep.subr.mxu0 0.0
  %1310 = vmatpush1.msra.mxu0 %v146
  %1311 = vmatprep.subr.mxu0 0.0
  %1312 = vmatpush1.msra.mxu0 %v147
  %1313 = vmatprep.subr.mxu0 0.0
  %1314 = vmatpush1.msra.mxu0 %v148
  %1315 = vmatprep.subr.mxu0 0.0
  %1316 = vmatpush1.msra.mxu0 %v149
  %1317 = vmatprep.subr.mxu0 0.0
  %1318 = vmatpush1.msra.mxu0 %v150
  %1319 = vmatprep.subr.mxu0 0.0
  %1320 = vmatpush1.msra.mxu0 %v151
  %1321 = vmatprep.subr.mxu0 0.0
  %1322 = vmatpush1.msra.mxu0 %v152
  %1323 = vmatprep.subr.mxu0 0.0
  %1324 = vmatpush1.msra.mxu0 %v153
  %1325 = vmatprep.subr.mxu0 0.0
  %1326 = vmatpush1.msra.mxu0 %v154
  %1327 = vmatprep.subr.mxu0 0.0
  %1328 = vmatpush1.msra.mxu0 %v155
  %1329 = vmatprep.subr.mxu0 0.0
  %1330 = vmatpush1.msra.mxu0 %v156
  %1331 = vmatprep.subr.mxu0 0.0
  %1332 = vmatpush1.msra.mxu0 %v157
  %1333 = vmatprep.subr.mxu0 0.0
  %1334 = vmatpush1.msra.mxu0 %v158
  %1335 = vmatprep.subr.mxu0 0.0
  %1336 = vmatpush1.msra.mxu0 %v159
  %1337 = vmatprep.subr.mxu0 0.0
  %1338 = vmatpush1.msra.mxu0 %v160
  %1339 = vmatprep.subr.mxu0 0.0
  %1340 = vmatpush1.msra.mxu0 %v161
  %1341 = vmatprep.subr.mxu0 0.0
  %1342 = vmatpush1.msra.mxu0 %v162
  %1343 = vmatprep.subr.mxu0 0.0
  %1344 = vmatpush1.msra.mxu0 %v163
  %1345 = vmatprep.subr.mxu0 0.0
  %1346 = vmatpush1.msra.mxu0 %v164
  %1347 = vmatprep.subr.mxu0 0.0
  %1348 = vmatpush1.msra.mxu0 %v165
  %1349 = vmatprep.subr.mxu0 0.0
  %1350 = vmatpush1.msra.mxu0 %v166
  %1351 = vmatprep.subr.mxu0 0.0
  %1352 = vmatpush1.msra.mxu0 %v167
  %1353 = vmatprep.subr.mxu0 0.0
  %1354 = vmatpush1.msra.mxu0 %v168
  %1355 = vmatprep.subr.mxu0 0.0
  %1356 = vmatpush1.msra.mxu0 %v169
  %1357 = vmatprep.subr.mxu0 0.0
  %1358 = vmatpush1.msra.mxu0 %v170
  %1359 = vmatprep.subr.mxu0 0.0
  %1360 = vmatpush1.msra.mxu0 %v171
  %1361 = vmatprep.subr.mxu0 0.0
  %1362 = vmatpush1.msra.mxu0 %v172
  %1363 = vmatprep.subr.mxu0 0.0
  %1364 = vmatpush1.msra.mxu0 %v173
  %1365 = vmatprep.subr.mxu0 0.0
  %1366 = vmatpush1.msra.mxu0 %v174
  %1367 = vmatprep.subr.mxu0 0.0
  %1368 = vmatpush1.msra.mxu0 %v175
  %1369 = vmatprep.subr.mxu0 0.0
  %1370 = vmatpush1.msra.mxu0 %v176
  %1371 = vmatprep.mubr.f32.mxu0 %v1306
  %1372 = vmatmul.mubr.f32.gmra.mrb[0].mxu0 %v1305
  %v1373 = vpop.f32.mrb[0].mxu0
  %v1374 = vadd.f32 0.0, %v1373
  %v1375 = vpop.f32.mrb[0].mxu0
  %1376 = vdwg.mxu0
  %v1377 = vsel %vm562, %v1374, -inf
  %1378 = vmax.xlane.f32.xlu0 %v1377
  %v1379 = vpop.xlane.xlu0 %1378
  %v1380 = vsub.f32 %v1374, %v1379
  %v1381 = vmul.f32 %v1380, 1.442695
  %v1382 = vpow.pop %v1381
  %v1383 = vsel %vm562, %v1382, 0.0
  %1384 = vadd.xlane.f32.xlu0 %v1383
  %v1385 = vpop.xlane.xlu0 %1384
  %v1386 = vrcp.pop %v1385
  %v1387 = vmul.f32 %v1382, %v1386
  %v1388 = vmul.f32 %v1387, %v320
  %v1389 = vsel %vm562, %v1388, 0.0
  %1390 = vadd.xlane.f32.xlu0 %v1389
  %v1391 = vpop.xlane.xlu0 %1390
  %v1392 = vadd.f32 %v1391, %v342
  %1394 = vset.pattern.permute.xlu0 3
  %1395 = vperm.xlu0 %1394, %v1392
  %v1396 = vpop.permute.xlu0 %1395
  %v1398 = vmul.f32 %v1396, %v178
  %v1399 = vadd.f32 %v1398, %v1300
  %v1400 = vadd.f32 %v1399, %v179
  %v1401 = vxor.u32 %v1400, 2147483648
  %v1402 = vmul.f32 %v1401, 1.442695
  %v1403 = vpow.pop %v1402
  %v1404 = vadd.f32 %v1403, 1.0
  %v1405 = vrcp.pop %v1404
  %v1406 = vmul.f32 1.0, %v1405
  %v1407 = vtanh.pop %v1400
  %v1408 = vmul.f32 %v1406, %v1147
  %1410 = vrot.lane.b32.xlu0 %v1407, 64
  %v1411 = vpop.permute.xlu0 %1410
  %v1413 = vmul.f32 %v1406, %v1411
  %1415 = vrot.lane.b32.xlu0 %v1413, 32
  %v1416 = vpop.permute.xlu0 %1415
  %v1418 = vadd.f32 %v1408, %v1416
  %v1419 = vtanh.pop %v1418
  %1421 = vrot.lane.b32.xlu0 %v1419, 64
  %v1422 = vpop.permute.xlu0 %1421
  %v1424 = vmul.f32 %v1406, %v1422
  %1426 = vrot.lane.b32.xlu0 %v1424, 32
  %v1427 = vpop.permute.xlu0 %1426
  %v1429 = vsel %vm615, %v1427, %v1418
  %v1431 = vsel %vm343, %v1429, 0
  %1433 = vmatprep.subr.mxu0 %v122
  %1434 = vmatpush1.msra.mxu0 %v121
  %1435 = vmatprep.subr.mxu0 %v125
  %1436 = vmatpush1.msra.mxu0 %v124
  %1437 = vmatprep.subr.mxu0 %v128
  %1438 = vmatpush1.msra.mxu0 %v127
  %1439 = vmatprep.subr.mxu0 %v131
  %1440 = vmatpush1.msra.mxu0 %v130
  %1441 = vmatprep.subr.mxu0 %v134
  %1442 = vmatpush1.msra.mxu0 %v133
  %1443 = vmatprep.subr.mxu0 %v137
  %1444 = vmatpush1.msra.mxu0 %v136
  %1445 = vmatprep.subr.mxu0 %v140
  %1446 = vmatpush1.msra.mxu0 %v139
  %1447 = vmatprep.subr.mxu0 %v143
  %1448 = vmatpush1.msra.mxu0 %v142
  %1449 = vmatprep.subr.mxu0 0.0
  %1450 = vmatpush1.msra.mxu0 0.0
  %1451 = vmatprep.subr.mxu0 0.0
  %1452 = vmatpush1.msra.mxu0 0.0
  %1453 = vmatprep.subr.mxu0 0.0
  %1454 = vmatpush1.msra.mxu0 0.0
  %1455 = vmatprep.subr.mxu0 0.0
  %1456 = vmatpush1.msra.mxu0 0.0
  %1457 = vmatprep.subr.mxu0 0.0
  %1458 = vmatpush1.msra.mxu0 0.0
  %1459 = vmatprep.subr.mxu0 0.0
  %1460 = vmatpush1.msra.mxu0 0.0
  %1461 = vmatprep.subr.mxu0 0.0
  %1462 = vmatpush1.msra.mxu0 0.0
  %1463 = vmatprep.subr.mxu0 0.0
  %1464 = vmatpush1.msra.mxu0 0.0
  %1465 = vmatprep.subr.mxu0 0.0
  %1466 = vmatpush1.msra.mxu0 0.0
  %1467 = vmatprep.subr.mxu0 0.0
  %1468 = vmatpush1.msra.mxu0 0.0
  %1469 = vmatprep.subr.mxu0 0.0
  %1470 = vmatpush1.msra.mxu0 0.0
  %1471 = vmatprep.subr.mxu0 0.0
  %1472 = vmatpush1.msra.mxu0 0.0
  %1473 = vmatprep.subr.mxu0 0.0
  %1474 = vmatpush1.msra.mxu0 0.0
  %1475 = vmatprep.subr.mxu0 0.0
  %1476 = vmatpush1.msra.mxu0 0.0
  %1477 = vmatprep.subr.mxu0 0.0
  %1478 = vmatpush1.msra.mxu0 0.0
  %1479 = vmatprep.subr.mxu0 0.0
  %1480 = vmatpush1.msra.mxu0 0.0
  %1481 = vmatprep.subr.mxu0 0.0
  %1482 = vmatpush1.msra.mxu0 0.0
  %1483 = vmatprep.subr.mxu0 0.0
  %1484 = vmatpush1.msra.mxu0 0.0
  %1485 = vmatprep.subr.mxu0 0.0
  %1486 = vmatpush1.msra.mxu0 0.0
  %1487 = vmatprep.subr.mxu0 0.0
  %1488 = vmatpush1.msra.mxu0 0.0
  %1489 = vmatprep.subr.mxu0 0.0
  %1490 = vmatpush1.msra.mxu0 0.0
  %1491 = vmatprep.subr.mxu0 0.0
  %1492 = vmatpush1.msra.mxu0 0.0
  %1493 = vmatprep.subr.mxu0 0.0
  %1494 = vmatpush1.msra.mxu0 0.0
  %1495 = vmatprep.subr.mxu0 0.0
  %1496 = vmatpush1.msra.mxu0 0.0
  %1497 = vmatprep.mubr.f32.mxu0 0.0
  %1498 = vmatmul.mubr.f32.gmra.mrb[0].mxu0 %v1431
  %v1499 = vpop.f32.mrb[0].mxu0
  %v1500 = vadd.f32 0.0, %v1499
  %v1501 = vpop.f32.mrb[0].mxu0
  %v1502 = vadd.f32 0.0, %v1501
  %1503 = vdwg.mxu0
  %1504 = vmatprep.subr.mxu0 0.0
  %1505 = vmatpush1.msra.mxu0 %v123
  %1506 = vmatprep.subr.mxu0 0.0
  %1507 = vmatpush1.msra.mxu0 %v126
  %1508 = vmatprep.subr.mxu0 0.0
  %1509 = vmatpush1.msra.mxu0 %v129
  %1510 = vmatprep.subr.mxu0 0.0
  %1511 = vmatpush1.msra.mxu0 %v132
  %1512 = vmatprep.subr.mxu0 0.0
  %1513 = vmatpush1.msra.mxu0 %v135
  %1514 = vmatprep.subr.mxu0 0.0
  %1515 = vmatpush1.msra.mxu0 %v138
  %1516 = vmatprep.subr.mxu0 0.0
  %1517 = vmatpush1.msra.mxu0 %v141
  %1518 = vmatprep.subr.mxu0 0.0
  %1519 = vmatpush1.msra.mxu0 %v144
  %1520 = vmatprep.subr.mxu0 0.0
  %1521 = vmatpush1.msra.mxu0 0.0
  %1522 = vmatprep.subr.mxu0 0.0
  %1523 = vmatpush1.msra.mxu0 0.0
  %1524 = vmatprep.subr.mxu0 0.0
  %1525 = vmatpush1.msra.mxu0 0.0
  %1526 = vmatprep.subr.mxu0 0.0
  %1527 = vmatpush1.msra.mxu0 0.0
  %1528 = vmatprep.subr.mxu0 0.0
  %1529 = vmatpush1.msra.mxu0 0.0
  %1530 = vmatprep.subr.mxu0 0.0
  %1531 = vmatpush1.msra.mxu0 0.0
  %1532 = vmatprep.subr.mxu0 0.0
  %1533 = vmatpush1.msra.mxu0 0.0
  %1534 = vmatprep.subr.mxu0 0.0
  %1535 = vmatpush1.msra.mxu0 0.0
  %1536 = vmatprep.subr.mxu0 0.0
  %1537 = vmatpush1.msra.mxu0 0.0
  %1538 = vmatprep.subr.mxu0 0.0
  %1539 = vmatpush1.msra.mxu0 0.0
  %1540 = vmatprep.subr.mxu0 0.0
  %1541 = vmatpush1.msra.mxu0 0.0
  %1542 = vmatprep.subr.mxu0 0.0
  %1543 = vmatpush1.msra.mxu0 0.0
  %1544 = vmatprep.subr.mxu0 0.0
  %1545 = vmatpush1.msra.mxu0 0.0
  %1546 = vmatprep.subr.mxu0 0.0
  %1547 = vmatpush1.msra.mxu0 0.0
  %1548 = vmatprep.subr.mxu0 0.0
  %1549 = vmatpush1.msra.mxu0 0.0
  %1550 = vmatprep.subr.mxu0 0.0
  %1551 = vmatpush1.msra.mxu0 0.0
  %1552 = vmatprep.subr.mxu0 0.0
  %1553 = vmatpush1.msra.mxu0 0.0
  %1554 = vmatprep.subr.mxu0 0.0
  %1555 = vmatpush1.msra.mxu0 0.0
  %1556 = vmatprep.subr.mxu0 0.0
  %1557 = vmatpush1.msra.mxu0 0.0
  %1558 = vmatprep.subr.mxu0 0.0
  %1559 = vmatpush1.msra.mxu0 0.0
  %1560 = vmatprep.subr.mxu0 0.0
  %1561 = vmatpush1.msra.mxu0 0.0
  %1562 = vmatprep.subr.mxu0 0.0
  %1563 = vmatpush1.msra.mxu0 0.0
  %1564 = vmatprep.subr.mxu0 0.0
  %1565 = vmatpush1.msra.mxu0 0.0
  %1566 = vmatprep.subr.mxu0 0.0
  %1567 = vmatpush1.msra.mxu0 0.0
  %1568 = vmatprep.mubr.f32.mxu0 0.0
  %1569 = vmatmul.mubr.f32.gmra.mrb[0].mxu0 %v1431
  %v1570 = vpop.f32.mrb[0].mxu0
  %v1571 = vadd.f32 0.0, %v1570
  %v1572 = vpop.f32.mrb[0].mxu0
  %1573 = vdwg.mxu0
  %v1574 = vadd.f32 %v334, %v1500
  %v1575 = vadd.f32 %v335, %v1502
  %v1576 = vtanh.pop %v1574
  %v1577 = vtanh.pop %v1575
  %1578 = vmatprep.subr.mxu0 0.0
  %1579 = vmatpush1.msra.mxu0 %v145
  %1580 = vmatprep.subr.mxu0 0.0
  %1581 = vmatpush1.msra.mxu0 %v146
  %1582 = vmatprep.subr.mxu0 0.0
  %1583 = vmatpush1.msra.mxu0 %v147
  %1584 = vmatprep.subr.mxu0 0.0
  %1585 = vmatpush1.msra.mxu0 %v148
  %1586 = vmatprep.subr.mxu0 0.0
  %1587 = vmatpush1.msra.mxu0 %v149
  %1588 = vmatprep.subr.mxu0 0.0
  %1589 = vmatpush1.msra.mxu0 %v150
  %1590 = vmatprep.subr.mxu0 0.0
  %1591 = vmatpush1.msra.mxu0 %v151
  %1592 = vmatprep.subr.mxu0 0.0
  %1593 = vmatpush1.msra.mxu0 %v152
  %1594 = vmatprep.subr.mxu0 0.0
  %1595 = vmatpush1.msra.mxu0 %v153
  %1596 = vmatprep.subr.mxu0 0.0
  %1597 = vmatpush1.msra.mxu0 %v154
  %1598 = vmatprep.subr.mxu0 0.0
  %1599 = vmatpush1.msra.mxu0 %v155
  %1600 = vmatprep.subr.mxu0 0.0
  %1601 = vmatpush1.msra.mxu0 %v156
  %1602 = vmatprep.subr.mxu0 0.0
  %1603 = vmatpush1.msra.mxu0 %v157
  %1604 = vmatprep.subr.mxu0 0.0
  %1605 = vmatpush1.msra.mxu0 %v158
  %1606 = vmatprep.subr.mxu0 0.0
  %1607 = vmatpush1.msra.mxu0 %v159
  %1608 = vmatprep.subr.mxu0 0.0
  %1609 = vmatpush1.msra.mxu0 %v160
  %1610 = vmatprep.subr.mxu0 0.0
  %1611 = vmatpush1.msra.mxu0 %v161
  %1612 = vmatprep.subr.mxu0 0.0
  %1613 = vmatpush1.msra.mxu0 %v162
  %1614 = vmatprep.subr.mxu0 0.0
  %1615 = vmatpush1.msra.mxu0 %v163
  %1616 = vmatprep.subr.mxu0 0.0
  %1617 = vmatpush1.msra.mxu0 %v164
  %1618 = vmatprep.subr.mxu0 0.0
  %1619 = vmatpush1.msra.mxu0 %v165
  %1620 = vmatprep.subr.mxu0 0.0
  %1621 = vmatpush1.msra.mxu0 %v166
  %1622 = vmatprep.subr.mxu0 0.0
  %1623 = vmatpush1.msra.mxu0 %v167
  %1624 = vmatprep.subr.mxu0 0.0
  %1625 = vmatpush1.msra.mxu0 %v168
  %1626 = vmatprep.subr.mxu0 0.0
  %1627 = vmatpush1.msra.mxu0 %v169
  %1628 = vmatprep.subr.mxu0 0.0
  %1629 = vmatpush1.msra.mxu0 %v170
  %1630 = vmatprep.subr.mxu0 0.0
  %1631 = vmatpush1.msra.mxu0 %v171
  %1632 = vmatprep.subr.mxu0 0.0
  %1633 = vmatpush1.msra.mxu0 %v172
  %1634 = vmatprep.subr.mxu0 0.0
  %1635 = vmatpush1.msra.mxu0 %v173
  %1636 = vmatprep.subr.mxu0 0.0
  %1637 = vmatpush1.msra.mxu0 %v174
  %1638 = vmatprep.subr.mxu0 0.0
  %1639 = vmatpush1.msra.mxu0 %v175
  %1640 = vmatprep.subr.mxu0 0.0
  %1641 = vmatpush1.msra.mxu0 %v176
  %1642 = vmatprep.mubr.f32.mxu0 %v1577
  %1643 = vmatmul.mubr.f32.gmra.mrb[0].mxu0 %v1576
  %v1644 = vpop.f32.mrb[0].mxu0
  %v1645 = vadd.f32 0.0, %v1644
  %v1646 = vpop.f32.mrb[0].mxu0
  %1647 = vdwg.mxu0
  %v1648 = vsel %vm562, %v1645, -inf
  %1649 = vmax.xlane.f32.xlu0 %v1648
  %v1650 = vpop.xlane.xlu0 %1649
  %v1651 = vsub.f32 %v1645, %v1650
  %v1652 = vmul.f32 %v1651, 1.442695
  %v1653 = vpow.pop %v1652
  %v1654 = vsel %vm562, %v1653, 0.0
  %1655 = vadd.xlane.f32.xlu0 %v1654
  %v1656 = vpop.xlane.xlu0 %1655
  %v1657 = vrcp.pop %v1656
  %v1658 = vmul.f32 %v1653, %v1657
  %v1659 = vmul.f32 %v1658, %v320
  %v1660 = vsel %vm562, %v1659, 0.0
  %1661 = vadd.xlane.f32.xlu0 %v1660
  %v1662 = vpop.xlane.xlu0 %1661
  %v1663 = vadd.f32 %v1662, %v342
  %1665 = vset.pattern.permute.xlu0 4
  %1666 = vperm.xlu0 %1665, %v1663
  %v1667 = vpop.permute.xlu0 %1666
  %v1669 = vmul.f32 %v1667, %v178
  %v1670 = vadd.f32 %v1669, %v1571
  %v1671 = vadd.f32 %v1670, %v179
  %v1672 = vxor.u32 %v1671, 2147483648
  %v1673 = vmul.f32 %v1672, 1.442695
  %v1674 = vpow.pop %v1673
  %v1675 = vadd.f32 %v1674, 1.0
  %v1676 = vrcp.pop %v1675
  %v1677 = vmul.f32 1.0, %v1676
  %v1678 = vtanh.pop %v1671
  %v1679 = vmul.f32 %v1677, %v1418
  %1681 = vrot.lane.b32.xlu0 %v1678, 64
  %v1682 = vpop.permute.xlu0 %1681
  %v1684 = vmul.f32 %v1677, %v1682
  %1686 = vrot.lane.b32.xlu0 %v1684, 32
  %v1687 = vpop.permute.xlu0 %1686
  %v1689 = vadd.f32 %v1679, %v1687
  %v1690 = vtanh.pop %v1689
  %1692 = vrot.lane.b32.xlu0 %v1690, 64
  %v1693 = vpop.permute.xlu0 %1692
  %v1695 = vmul.f32 %v1677, %v1693
  %1697 = vrot.lane.b32.xlu0 %v1695, 32
  %v1698 = vpop.permute.xlu0 %1697
  %v1700 = vsel %vm615, %v1698, %v1689
  %v1702 = vsel %vm343, %v1700, 0
  %1704 = vmatprep.subr.mxu0 %v122
  %1705 = vmatpush1.msra.mxu0 %v121
  %1706 = vmatprep.subr.mxu0 %v125
  %1707 = vmatpush1.msra.mxu0 %v124
  %1708 = vmatprep.subr.mxu0 %v128
  %1709 = vmatpush1.msra.mxu0 %v127
  %1710 = vmatprep.subr.mxu0 %v131
  %1711 = vmatpush1.msra.mxu0 %v130
  %1712 = vmatprep.subr.mxu0 %v134
  %1713 = vmatpush1.msra.mxu0 %v133
  %1714 = vmatprep.subr.mxu0 %v137
  %1715 = vmatpush1.msra.mxu0 %v136
  %1716 = vmatprep.subr.mxu0 %v140
  %1717 = vmatpush1.msra.mxu0 %v139
  %1718 = vmatprep.subr.mxu0 %v143
  %1719 = vmatpush1.msra.mxu0 %v142
  %1720 = vmatprep.subr.mxu0 0.0
  %1721 = vmatpush1.msra.mxu0 0.0
  %1722 = vmatprep.subr.mxu0 0.0
  %1723 = vmatpush1.msra.mxu0 0.0
  %1724 = vmatprep.subr.mxu0 0.0
  %1725 = vmatpush1.msra.mxu0 0.0
  %1726 = vmatprep.subr.mxu0 0.0
  %1727 = vmatpush1.msra.mxu0 0.0
  %1728 = vmatprep.subr.mxu0 0.0
  %1729 = vmatpush1.msra.mxu0 0.0
  %1730 = vmatprep.subr.mxu0 0.0
  %1731 = vmatpush1.msra.mxu0 0.0
  %1732 = vmatprep.subr.mxu0 0.0
  %1733 = vmatpush1.msra.mxu0 0.0
  %1734 = vmatprep.subr.mxu0 0.0
  %1735 = vmatpush1.msra.mxu0 0.0
  %1736 = vmatprep.subr.mxu0 0.0
  %1737 = vmatpush1.msra.mxu0 0.0
  %1738 = vmatprep.subr.mxu0 0.0
  %1739 = vmatpush1.msra.mxu0 0.0
  %1740 = vmatprep.subr.mxu0 0.0
  %1741 = vmatpush1.msra.mxu0 0.0
  %1742 = vmatprep.subr.mxu0 0.0
  %1743 = vmatpush1.msra.mxu0 0.0
  %1744 = vmatprep.subr.mxu0 0.0
  %1745 = vmatpush1.msra.mxu0 0.0
  %1746 = vmatprep.subr.mxu0 0.0
  %1747 = vmatpush1.msra.mxu0 0.0
  %1748 = vmatprep.subr.mxu0 0.0
  %1749 = vmatpush1.msra.mxu0 0.0
  %1750 = vmatprep.subr.mxu0 0.0
  %1751 = vmatpush1.msra.mxu0 0.0
  %1752 = vmatprep.subr.mxu0 0.0
  %1753 = vmatpush1.msra.mxu0 0.0
  %1754 = vmatprep.subr.mxu0 0.0
  %1755 = vmatpush1.msra.mxu0 0.0
  %1756 = vmatprep.subr.mxu0 0.0
  %1757 = vmatpush1.msra.mxu0 0.0
  %1758 = vmatprep.subr.mxu0 0.0
  %1759 = vmatpush1.msra.mxu0 0.0
  %1760 = vmatprep.subr.mxu0 0.0
  %1761 = vmatpush1.msra.mxu0 0.0
  %1762 = vmatprep.subr.mxu0 0.0
  %1763 = vmatpush1.msra.mxu0 0.0
  %1764 = vmatprep.subr.mxu0 0.0
  %1765 = vmatpush1.msra.mxu0 0.0
  %1766 = vmatprep.subr.mxu0 0.0
  %1767 = vmatpush1.msra.mxu0 0.0
  %1768 = vmatprep.mubr.f32.mxu0 0.0
  %1769 = vmatmul.mubr.f32.gmra.mrb[0].mxu0 %v1702
  %v1770 = vpop.f32.mrb[0].mxu0
  %v1771 = vadd.f32 0.0, %v1770
  %v1772 = vpop.f32.mrb[0].mxu0
  %v1773 = vadd.f32 0.0, %v1772
  %1774 = vdwg.mxu0
  %1775 = vmatprep.subr.mxu0 0.0
  %1776 = vmatpush1.msra.mxu0 %v123
  %1777 = vmatprep.subr.mxu0 0.0
  %1778 = vmatpush1.msra.mxu0 %v126
  %1779 = vmatprep.subr.mxu0 0.0
  %1780 = vmatpush1.msra.mxu0 %v129
  %1781 = vmatprep.subr.mxu0 0.0
  %1782 = vmatpush1.msra.mxu0 %v132
  %1783 = vmatprep.subr.mxu0 0.0
  %1784 = vmatpush1.msra.mxu0 %v135
  %1785 = vmatprep.subr.mxu0 0.0
  %1786 = vmatpush1.msra.mxu0 %v138
  %1787 = vmatprep.subr.mxu0 0.0
  %1788 = vmatpush1.msra.mxu0 %v141
  %1789 = vmatprep.subr.mxu0 0.0
  %1790 = vmatpush1.msra.mxu0 %v144
  %1791 = vmatprep.subr.mxu0 0.0
  %1792 = vmatpush1.msra.mxu0 0.0
  %1793 = vmatprep.subr.mxu0 0.0
  %1794 = vmatpush1.msra.mxu0 0.0
  %1795 = vmatprep.subr.mxu0 0.0
  %1796 = vmatpush1.msra.mxu0 0.0
  %1797 = vmatprep.subr.mxu0 0.0
  %1798 = vmatpush1.msra.mxu0 0.0
  %1799 = vmatprep.subr.mxu0 0.0
  %1800 = vmatpush1.msra.mxu0 0.0
  %1801 = vmatprep.subr.mxu0 0.0
  %1802 = vmatpush1.msra.mxu0 0.0
  %1803 = vmatprep.subr.mxu0 0.0
  %1804 = vmatpush1.msra.mxu0 0.0
  %1805 = vmatprep.subr.mxu0 0.0
  %1806 = vmatpush1.msra.mxu0 0.0
  %1807 = vmatprep.subr.mxu0 0.0
  %1808 = vmatpush1.msra.mxu0 0.0
  %1809 = vmatprep.subr.mxu0 0.0
  %1810 = vmatpush1.msra.mxu0 0.0
  %1811 = vmatprep.subr.mxu0 0.0
  %1812 = vmatpush1.msra.mxu0 0.0
  %1813 = vmatprep.subr.mxu0 0.0
  %1814 = vmatpush1.msra.mxu0 0.0
  %1815 = vmatprep.subr.mxu0 0.0
  %1816 = vmatpush1.msra.mxu0 0.0
  %1817 = vmatprep.subr.mxu0 0.0
  %1818 = vmatpush1.msra.mxu0 0.0
  %1819 = vmatprep.subr.mxu0 0.0
  %1820 = vmatpush1.msra.mxu0 0.0
  %1821 = vmatprep.subr.mxu0 0.0
  %1822 = vmatpush1.msra.mxu0 0.0
  %1823 = vmatprep.subr.mxu0 0.0
  %1824 = vmatpush1.msra.mxu0 0.0
  %1825 = vmatprep.subr.mxu0 0.0
  %1826 = vmatpush1.msra.mxu0 0.0
  %1827 = vmatprep.subr.mxu0 0.0
  %1828 = vmatpush1.msra.mxu0 0.0
  %1829 = vmatprep.subr.mxu0 0.0
  %1830 = vmatpush1.msra.mxu0 0.0
  %1831 = vmatprep.subr.mxu0 0.0
  %1832 = vmatpush1.msra.mxu0 0.0
  %1833 = vmatprep.subr.mxu0 0.0
  %1834 = vmatpush1.msra.mxu0 0.0
  %1835 = vmatprep.subr.mxu0 0.0
  %1836 = vmatpush1.msra.mxu0 0.0
  %1837 = vmatprep.subr.mxu0 0.0
  %1838 = vmatpush1.msra.mxu0 0.0
  %1839 = vmatprep.mubr.f32.mxu0 0.0
  %1840 = vmatmul.mubr.f32.gmra.mrb[0].mxu0 %v1702
  %v1841 = vpop.f32.mrb[0].mxu0
  %v1842 = vadd.f32 0.0, %v1841
  %v1843 = vpop.f32.mrb[0].mxu0
  %1844 = vdwg.mxu0
  %v1845 = vadd.f32 %v334, %v1771
  %v1846 = vadd.f32 %v335, %v1773
  %v1847 = vtanh.pop %v1845
  %v1848 = vtanh.pop %v1846
  %1849 = vmatprep.subr.mxu0 0.0
  %1850 = vmatpush1.msra.mxu0 %v145
  %1851 = vmatprep.subr.mxu0 0.0
  %1852 = vmatpush1.msra.mxu0 %v146
  %1853 = vmatprep.subr.mxu0 0.0
  %1854 = vmatpush1.msra.mxu0 %v147
  %1855 = vmatprep.subr.mxu0 0.0
  %1856 = vmatpush1.msra.mxu0 %v148
  %1857 = vmatprep.subr.mxu0 0.0
  %1858 = vmatpush1.msra.mxu0 %v149
  %1859 = vmatprep.subr.mxu0 0.0
  %1860 = vmatpush1.msra.mxu0 %v150
  %1861 = vmatprep.subr.mxu0 0.0
  %1862 = vmatpush1.msra.mxu0 %v151
  %1863 = vmatprep.subr.mxu0 0.0
  %1864 = vmatpush1.msra.mxu0 %v152
  %1865 = vmatprep.subr.mxu0 0.0
  %1866 = vmatpush1.msra.mxu0 %v153
  %1867 = vmatprep.subr.mxu0 0.0
  %1868 = vmatpush1.msra.mxu0 %v154
  %1869 = vmatprep.subr.mxu0 0.0
  %1870 = vmatpush1.msra.mxu0 %v155
  %1871 = vmatprep.subr.mxu0 0.0
  %1872 = vmatpush1.msra.mxu0 %v156
  %1873 = vmatprep.subr.mxu0 0.0
  %1874 = vmatpush1.msra.mxu0 %v157
  %1875 = vmatprep.subr.mxu0 0.0
  %1876 = vmatpush1.msra.mxu0 %v158
  %1877 = vmatprep.subr.mxu0 0.0
  %1878 = vmatpush1.msra.mxu0 %v159
  %1879 = vmatprep.subr.mxu0 0.0
  %1880 = vmatpush1.msra.mxu0 %v160
  %1881 = vmatprep.subr.mxu0 0.0
  %1882 = vmatpush1.msra.mxu0 %v161
  %1883 = vmatprep.subr.mxu0 0.0
  %1884 = vmatpush1.msra.mxu0 %v162
  %1885 = vmatprep.subr.mxu0 0.0
  %1886 = vmatpush1.msra.mxu0 %v163
  %1887 = vmatprep.subr.mxu0 0.0
  %1888 = vmatpush1.msra.mxu0 %v164
  %1889 = vmatprep.subr.mxu0 0.0
  %1890 = vmatpush1.msra.mxu0 %v165
  %1891 = vmatprep.subr.mxu0 0.0
  %1892 = vmatpush1.msra.mxu0 %v166
  %1893 = vmatprep.subr.mxu0 0.0
  %1894 = vmatpush1.msra.mxu0 %v167
  %1895 = vmatprep.subr.mxu0 0.0
  %1896 = vmatpush1.msra.mxu0 %v168
  %1897 = vmatprep.subr.mxu0 0.0
  %1898 = vmatpush1.msra.mxu0 %v169
  %1899 = vmatprep.subr.mxu0 0.0
  %1900 = vmatpush1.msra.mxu0 %v170
  %1901 = vmatprep.subr.mxu0 0.0
  %1902 = vmatpush1.msra.mxu0 %v171
  %1903 = vmatprep.subr.mxu0 0.0
  %1904 = vmatpush1.msra.mxu0 %v172
  %1905 = vmatprep.subr.mxu0 0.0
  %1906 = vmatpush1.msra.mxu0 %v173
  %1907 = vmatprep.subr.mxu0 0.0
  %1908 = vmatpush1.msra.mxu0 %v174
  %1909 = vmatprep.subr.mxu0 0.0
  %1910 = vmatpush1.msra.mxu0 %v175
  %1911 = vmatprep.subr.mxu0 0.0
  %1912 = vmatpush1.msra.mxu0 %v176
  %1913 = vmatprep.mubr.f32.mxu0 %v1848
  %1914 = vmatmul.mubr.f32.gmra.mrb[0].mxu0 %v1847
  %v1915 = vpop.f32.mrb[0].mxu0
  %v1916 = vadd.f32 0.0, %v1915
  %v1917 = vpop.f32.mrb[0].mxu0
  %1918 = vdwg.mxu0
  %v1919 = vsel %vm562, %v1916, -inf
  %1920 = vmax.xlane.f32.xlu0 %v1919
  %v1921 = vpop.xlane.xlu0 %1920
  %v1922 = vsub.f32 %v1916, %v1921
  %v1923 = vmul.f32 %v1922, 1.442695
  %v1924 = vpow.pop %v1923
  %v1925 = vsel %vm562, %v1924, 0.0
  %1926 = vadd.xlane.f32.xlu0 %v1925
  %v1927 = vpop.xlane.xlu0 %1926
  %v1928 = vrcp.pop %v1927
  %v1929 = vmul.f32 %v1924, %v1928
  %v1930 = vmul.f32 %v1929, %v320
  %v1931 = vsel %vm562, %v1930, 0.0
  %1932 = vadd.xlane.f32.xlu0 %v1931
  %v1933 = vpop.xlane.xlu0 %1932
  %v1934 = vadd.f32 %v1933, %v342
  %1936 = vset.pattern.permute.xlu0 5
  %1937 = vperm.xlu0 %1936, %v1934
  %v1938 = vpop.permute.xlu0 %1937
  %v1940 = vmul.f32 %v1938, %v178
  %v1941 = vadd.f32 %v1940, %v1842
  %v1942 = vadd.f32 %v1941, %v179
  %v1943 = vxor.u32 %v1942, 2147483648
  %v1944 = vmul.f32 %v1943, 1.442695
  %v1945 = vpow.pop %v1944
  %v1946 = vadd.f32 %v1945, 1.0
  %v1947 = vrcp.pop %v1946
  %v1948 = vmul.f32 1.0, %v1947
  %v1949 = vtanh.pop %v1942
  %v1950 = vmul.f32 %v1948, %v1689
  %1952 = vrot.lane.b32.xlu0 %v1949, 64
  %v1953 = vpop.permute.xlu0 %1952
  %v1955 = vmul.f32 %v1948, %v1953
  %1957 = vrot.lane.b32.xlu0 %v1955, 32
  %v1958 = vpop.permute.xlu0 %1957
  %v1960 = vadd.f32 %v1950, %v1958
  %v1961 = vtanh.pop %v1960
  %1963 = vrot.lane.b32.xlu0 %v1961, 64
  %v1964 = vpop.permute.xlu0 %1963
  %v1966 = vmul.f32 %v1948, %v1964
  %1968 = vrot.lane.b32.xlu0 %v1966, 32
  %v1969 = vpop.permute.xlu0 %1968
  %v1971 = vsel %vm615, %v1969, %v1960
  %v1973 = vsel %vm343, %v1971, 0
  %1975 = vmatprep.subr.mxu0 %v122
  %1976 = vmatpush1.msra.mxu0 %v121
  %1977 = vmatprep.subr.mxu0 %v125
  %1978 = vmatpush1.msra.mxu0 %v124
  %1979 = vmatprep.subr.mxu0 %v128
  %1980 = vmatpush1.msra.mxu0 %v127
  %1981 = vmatprep.subr.mxu0 %v131
  %1982 = vmatpush1.msra.mxu0 %v130
  %1983 = vmatprep.subr.mxu0 %v134
  %1984 = vmatpush1.msra.mxu0 %v133
  %1985 = vmatprep.subr.mxu0 %v137
  %1986 = vmatpush1.msra.mxu0 %v136
  %1987 = vmatprep.subr.mxu0 %v140
  %1988 = vmatpush1.msra.mxu0 %v139
  %1989 = vmatprep.subr.mxu0 %v143
  %1990 = vmatpush1.msra.mxu0 %v142
  %1991 = vmatprep.subr.mxu0 0.0
  %1992 = vmatpush1.msra.mxu0 0.0
  %1993 = vmatprep.subr.mxu0 0.0
  %1994 = vmatpush1.msra.mxu0 0.0
  %1995 = vmatprep.subr.mxu0 0.0
  %1996 = vmatpush1.msra.mxu0 0.0
  %1997 = vmatprep.subr.mxu0 0.0
  %1998 = vmatpush1.msra.mxu0 0.0
  %1999 = vmatprep.subr.mxu0 0.0
  %2000 = vmatpush1.msra.mxu0 0.0
  %2001 = vmatprep.subr.mxu0 0.0
  %2002 = vmatpush1.msra.mxu0 0.0
  %2003 = vmatprep.subr.mxu0 0.0
  %2004 = vmatpush1.msra.mxu0 0.0
  %2005 = vmatprep.subr.mxu0 0.0
  %2006 = vmatpush1.msra.mxu0 0.0
  %2007 = vmatprep.subr.mxu0 0.0
  %2008 = vmatpush1.msra.mxu0 0.0
  %2009 = vmatprep.subr.mxu0 0.0
  %2010 = vmatpush1.msra.mxu0 0.0
  %2011 = vmatprep.subr.mxu0 0.0
  %2012 = vmatpush1.msra.mxu0 0.0
  %2013 = vmatprep.subr.mxu0 0.0
  %2014 = vmatpush1.msra.mxu0 0.0
  %2015 = vmatprep.subr.mxu0 0.0
  %2016 = vmatpush1.msra.mxu0 0.0
  %2017 = vmatprep.subr.mxu0 0.0
  %2018 = vmatpush1.msra.mxu0 0.0
  %2019 = vmatprep.subr.mxu0 0.0
  %2020 = vmatpush1.msra.mxu0 0.0
  %2021 = vmatprep.subr.mxu0 0.0
  %2022 = vmatpush1.msra.mxu0 0.0
  %2023 = vmatprep.subr.mxu0 0.0
  %2024 = vmatpush1.msra.mxu0 0.0
  %2025 = vmatprep.subr.mxu0 0.0
  %2026 = vmatpush1.msra.mxu0 0.0
  %2027 = vmatprep.subr.mxu0 0.0
  %2028 = vmatpush1.msra.mxu0 0.0
  %2029 = vmatprep.subr.mxu0 0.0
  %2030 = vmatpush1.msra.mxu0 0.0
  %2031 = vmatprep.subr.mxu0 0.0
  %2032 = vmatpush1.msra.mxu0 0.0
  %2033 = vmatprep.subr.mxu0 0.0
  %2034 = vmatpush1.msra.mxu0 0.0
  %2035 = vmatprep.subr.mxu0 0.0
  %2036 = vmatpush1.msra.mxu0 0.0
  %2037 = vmatprep.subr.mxu0 0.0
  %2038 = vmatpush1.msra.mxu0 0.0
  %2039 = vmatprep.mubr.f32.mxu0 0.0
  %2040 = vmatmul.mubr.f32.gmra.mrb[0].mxu0 %v1973
  %v2041 = vpop.f32.mrb[0].mxu0
  %v2042 = vadd.f32 0.0, %v2041
  %v2043 = vpop.f32.mrb[0].mxu0
  %v2044 = vadd.f32 0.0, %v2043
  %2045 = vdwg.mxu0
  %2046 = vmatprep.subr.mxu0 0.0
  %2047 = vmatpush1.msra.mxu0 %v123
  %2048 = vmatprep.subr.mxu0 0.0
  %2049 = vmatpush1.msra.mxu0 %v126
  %2050 = vmatprep.subr.mxu0 0.0
  %2051 = vmatpush1.msra.mxu0 %v129
  %2052 = vmatprep.subr.mxu0 0.0
  %2053 = vmatpush1.msra.mxu0 %v132
  %2054 = vmatprep.subr.mxu0 0.0
  %2055 = vmatpush1.msra.mxu0 %v135
  %2056 = vmatprep.subr.mxu0 0.0
  %2057 = vmatpush1.msra.mxu0 %v138
  %2058 = vmatprep.subr.mxu0 0.0
  %2059 = vmatpush1.msra.mxu0 %v141
  %2060 = vmatprep.subr.mxu0 0.0
  %2061 = vmatpush1.msra.mxu0 %v144
  %2062 = vmatprep.subr.mxu0 0.0
  %2063 = vmatpush1.msra.mxu0 0.0
  %2064 = vmatprep.subr.mxu0 0.0
  %2065 = vmatpush1.msra.mxu0 0.0
  %2066 = vmatprep.subr.mxu0 0.0
  %2067 = vmatpush1.msra.mxu0 0.0
  %2068 = vmatprep.subr.mxu0 0.0
  %2069 = vmatpush1.msra.mxu0 0.0
  %2070 = vmatprep.subr.mxu0 0.0
  %2071 = vmatpush1.msra.mxu0 0.0
  %2072 = vmatprep.subr.mxu0 0.0
  %2073 = vmatpush1.msra.mxu0 0.0
  %2074 = vmatprep.subr.mxu0 0.0
  %2075 = vmatpush1.msra.mxu0 0.0
  %2076 = vmatprep.subr.mxu0 0.0
  %2077 = vmatpush1.msra.mxu0 0.0
  %2078 = vmatprep.subr.mxu0 0.0
  %2079 = vmatpush1.msra.mxu0 0.0
  %2080 = vmatprep.subr.mxu0 0.0
  %2081 = vmatpush1.msra.mxu0 0.0
  %2082 = vmatprep.subr.mxu0 0.0
  %2083 = vmatpush1.msra.mxu0 0.0
  %2084 = vmatprep.subr.mxu0 0.0
  %2085 = vmatpush1.msra.mxu0 0.0
  %2086 = vmatprep.subr.mxu0 0.0
  %2087 = vmatpush1.msra.mxu0 0.0
  %2088 = vmatprep.subr.mxu0 0.0
  %2089 = vmatpush1.msra.mxu0 0.0
  %2090 = vmatprep.subr.mxu0 0.0
  %2091 = vmatpush1.msra.mxu0 0.0
  %2092 = vmatprep.subr.mxu0 0.0
  %2093 = vmatpush1.msra.mxu0 0.0
  %2094 = vmatprep.subr.mxu0 0.0
  %2095 = vmatpush1.msra.mxu0 0.0
  %2096 = vmatprep.subr.mxu0 0.0
  %2097 = vmatpush1.msra.mxu0 0.0
  %2098 = vmatprep.subr.mxu0 0.0
  %2099 = vmatpush1.msra.mxu0 0.0
  %2100 = vmatprep.subr.mxu0 0.0
  %2101 = vmatpush1.msra.mxu0 0.0
  %2102 = vmatprep.subr.mxu0 0.0
  %2103 = vmatpush1.msra.mxu0 0.0
  %2104 = vmatprep.subr.mxu0 0.0
  %2105 = vmatpush1.msra.mxu0 0.0
  %2106 = vmatprep.subr.mxu0 0.0
  %2107 = vmatpush1.msra.mxu0 0.0
  %2108 = vmatprep.subr.mxu0 0.0
  %2109 = vmatpush1.msra.mxu0 0.0
  %2110 = vmatprep.mubr.f32.mxu0 0.0
  %2111 = vmatmul.mubr.f32.gmra.mrb[0].mxu0 %v1973
  %v2112 = vpop.f32.mrb[0].mxu0
  %v2113 = vadd.f32 0.0, %v2112
  %v2114 = vpop.f32.mrb[0].mxu0
  %2115 = vdwg.mxu0
  %v2116 = vadd.f32 %v334, %v2042
  %v2117 = vadd.f32 %v335, %v2044
  %v2118 = vtanh.pop %v2116
  %v2119 = vtanh.pop %v2117
  %2120 = vmatprep.subr.mxu0 0.0
  %2121 = vmatpush1.msra.mxu0 %v145
  %2122 = vmatprep.subr.mxu0 0.0
  %2123 = vmatpush1.msra.mxu0 %v146
  %2124 = vmatprep.subr.mxu0 0.0
  %2125 = vmatpush1.msra.mxu0 %v147
  %2126 = vmatprep.subr.mxu0 0.0
  %2127 = vmatpush1.msra.mxu0 %v148
  %2128 = vmatprep.subr.mxu0 0.0
  %2129 = vmatpush1.msra.mxu0 %v149
  %2130 = vmatprep.subr.mxu0 0.0
  %2131 = vmatpush1.msra.mxu0 %v150
  %2132 = vmatprep.subr.mxu0 0.0
  %2133 = vmatpush1.msra.mxu0 %v151
  %2134 = vmatprep.subr.mxu0 0.0
  %2135 = vmatpush1.msra.mxu0 %v152
  %2136 = vmatprep.subr.mxu0 0.0
  %2137 = vmatpush1.msra.mxu0 %v153
  %2138 = vmatprep.subr.mxu0 0.0
  %2139 = vmatpush1.msra.mxu0 %v154
  %2140 = vmatprep.subr.mxu0 0.0
  %2141 = vmatpush1.msra.mxu0 %v155
  %2142 = vmatprep.subr.mxu0 0.0
  %2143 = vmatpush1.msra.mxu0 %v156
  %2144 = vmatprep.subr.mxu0 0.0
  %2145 = vmatpush1.msra.mxu0 %v157
  %2146 = vmatprep.subr.mxu0 0.0
  %2147 = vmatpush1.msra.mxu0 %v158
  %2148 = vmatprep.subr.mxu0 0.0
  %2149 = vmatpush1.msra.mxu0 %v159
  %2150 = vmatprep.subr.mxu0 0.0
  %2151 = vmatpush1.msra.mxu0 %v160
  %2152 = vmatprep.subr.mxu0 0.0
  %2153 = vmatpush1.msra.mxu0 %v161
  %2154 = vmatprep.subr.mxu0 0.0
  %2155 = vmatpush1.msra.mxu0 %v162
  %2156 = vmatprep.subr.mxu0 0.0
  %2157 = vmatpush1.msra.mxu0 %v163
  %2158 = vmatprep.subr.mxu0 0.0
  %2159 = vmatpush1.msra.mxu0 %v164
  %2160 = vmatprep.subr.mxu0 0.0
  %2161 = vmatpush1.msra.mxu0 %v165
  %2162 = vmatprep.subr.mxu0 0.0
  %2163 = vmatpush1.msra.mxu0 %v166
  %2164 = vmatprep.subr.mxu0 0.0
  %2165 = vmatpush1.msra.mxu0 %v167
  %2166 = vmatprep.subr.mxu0 0.0
  %2167 = vmatpush1.msra.mxu0 %v168
  %2168 = vmatprep.subr.mxu0 0.0
  %2169 = vmatpush1.msra.mxu0 %v169
  %2170 = vmatprep.subr.mxu0 0.0
  %2171 = vmatpush1.msra.mxu0 %v170
  %2172 = vmatprep.subr.mxu0 0.0
  %2173 = vmatpush1.msra.mxu0 %v171
  %2174 = vmatprep.subr.mxu0 0.0
  %2175 = vmatpush1.msra.mxu0 %v172
  %2176 = vmatprep.subr.mxu0 0.0
  %2177 = vmatpush1.msra.mxu0 %v173
  %2178 = vmatprep.subr.mxu0 0.0
  %2179 = vmatpush1.msra.mxu0 %v174
  %2180 = vmatprep.subr.mxu0 0.0
  %2181 = vmatpush1.msra.mxu0 %v175
  %2182 = vmatprep.subr.mxu0 0.0
  %2183 = vmatpush1.msra.mxu0 %v176
  %2184 = vmatprep.mubr.f32.mxu0 %v2119
  %2185 = vmatmul.mubr.f32.gmra.mrb[0].mxu0 %v2118
  %v2186 = vpop.f32.mrb[0].mxu0
  %v2187 = vadd.f32 0.0, %v2186
  %v2188 = vpop.f32.mrb[0].mxu0
  %2189 = vdwg.mxu0
  %v2190 = vsel %vm562, %v2187, -inf
  %2191 = vmax.xlane.f32.xlu0 %v2190
  %v2192 = vpop.xlane.xlu0 %2191
  %v2193 = vsub.f32 %v2187, %v2192
  %v2194 = vmul.f32 %v2193, 1.442695
  %v2195 = vpow.pop %v2194
  %v2196 = vsel %vm562, %v2195, 0.0
  %2197 = vadd.xlane.f32.xlu0 %v2196
  %v2198 = vpop.xlane.xlu0 %2197
  %v2199 = vrcp.pop %v2198
  %v2200 = vmul.f32 %v2195, %v2199
  %v2201 = vmul.f32 %v2200, %v320
  %v2202 = vsel %vm562, %v2201, 0.0
  %2203 = vadd.xlane.f32.xlu0 %v2202
  %v2204 = vpop.xlane.xlu0 %2203
  %v2205 = vadd.f32 %v2204, %v342
  %2207 = vset.pattern.permute.xlu0 6
  %2208 = vperm.xlu0 %2207, %v2205
  %v2209 = vpop.permute.xlu0 %2208
  %v2211 = vmul.f32 %v2209, %v178
  %v2212 = vadd.f32 %v2211, %v2113
  %v2213 = vadd.f32 %v2212, %v179
  %v2214 = vxor.u32 %v2213, 2147483648
  %v2215 = vmul.f32 %v2214, 1.442695
  %v2216 = vpow.pop %v2215
  %v2217 = vadd.f32 %v2216, 1.0
  %v2218 = vrcp.pop %v2217
  %v2219 = vmul.f32 1.0, %v2218
  %v2220 = vtanh.pop %v2213
  %v2221 = vmul.f32 %v2219, %v1960
  %2223 = vrot.lane.b32.xlu0 %v2220, 64
  %v2224 = vpop.permute.xlu0 %2223
  %v2226 = vmul.f32 %v2219, %v2224
  %2228 = vrot.lane.b32.xlu0 %v2226, 32
  %v2229 = vpop.permute.xlu0 %2228
  %v2231 = vadd.f32 %v2221, %v2229
  %v2232 = vtanh.pop %v2231
  %2234 = vrot.lane.b32.xlu0 %v2232, 64
  %v2235 = vpop.permute.xlu0 %2234
  %v2237 = vmul.f32 %v2219, %v2235
  %2239 = vrot.lane.b32.xlu0 %v2237, 32
  %v2240 = vpop.permute.xlu0 %2239
  %v2242 = vsel %vm615, %v2240, %v2231
  %v2244 = vsel %vm343, %v2242, 0
  %2246 = vmatprep.subr.mxu0 %v122
  %2247 = vmatpush1.msra.mxu0 %v121
  %2248 = vmatprep.subr.mxu0 %v125
  %2249 = vmatpush1.msra.mxu0 %v124
  %2250 = vmatprep.subr.mxu0 %v128
  %2251 = vmatpush1.msra.mxu0 %v127
  %2252 = vmatprep.subr.mxu0 %v131
  %2253 = vmatpush1.msra.mxu0 %v130
  %2254 = vmatprep.subr.mxu0 %v134
  %2255 = vmatpush1.msra.mxu0 %v133
  %2256 = vmatprep.subr.mxu0 %v137
  %2257 = vmatpush1.msra.mxu0 %v136
  %2258 = vmatprep.subr.mxu0 %v140
  %2259 = vmatpush1.msra.mxu0 %v139
  %2260 = vmatprep.subr.mxu0 %v143
  %2261 = vmatpush1.msra.mxu0 %v142
  %2262 = vmatprep.subr.mxu0 0.0
  %2263 = vmatpush1.msra.mxu0 0.0
  %2264 = vmatprep.subr.mxu0 0.0
  %2265 = vmatpush1.msra.mxu0 0.0
  %2266 = vmatprep.subr.mxu0 0.0
  %2267 = vmatpush1.msra.mxu0 0.0
  %2268 = vmatprep.subr.mxu0 0.0
  %2269 = vmatpush1.msra.mxu0 0.0
  %2270 = vmatprep.subr.mxu0 0.0
  %2271 = vmatpush1.msra.mxu0 0.0
  %2272 = vmatprep.subr.mxu0 0.0
  %2273 = vmatpush1.msra.mxu0 0.0
  %2274 = vmatprep.subr.mxu0 0.0
  %2275 = vmatpush1.msra.mxu0 0.0
  %2276 = vmatprep.subr.mxu0 0.0
  %2277 = vmatpush1.msra.mxu0 0.0
  %2278 = vmatprep.subr.mxu0 0.0
  %2279 = vmatpush1.msra.mxu0 0.0
  %2280 = vmatprep.subr.mxu0 0.0
  %2281 = vmatpush1.msra.mxu0 0.0
  %2282 = vmatprep.subr.mxu0 0.0
  %2283 = vmatpush1.msra.mxu0 0.0
  %2284 = vmatprep.subr.mxu0 0.0
  %2285 = vmatpush1.msra.mxu0 0.0
  %2286 = vmatprep.subr.mxu0 0.0
  %2287 = vmatpush1.msra.mxu0 0.0
  %2288 = vmatprep.subr.mxu0 0.0
  %2289 = vmatpush1.msra.mxu0 0.0
  %2290 = vmatprep.subr.mxu0 0.0
  %2291 = vmatpush1.msra.mxu0 0.0
  %2292 = vmatprep.subr.mxu0 0.0
  %2293 = vmatpush1.msra.mxu0 0.0
  %2294 = vmatprep.subr.mxu0 0.0
  %2295 = vmatpush1.msra.mxu0 0.0
  %2296 = vmatprep.subr.mxu0 0.0
  %2297 = vmatpush1.msra.mxu0 0.0
  %2298 = vmatprep.subr.mxu0 0.0
  %2299 = vmatpush1.msra.mxu0 0.0
  %2300 = vmatprep.subr.mxu0 0.0
  %2301 = vmatpush1.msra.mxu0 0.0
  %2302 = vmatprep.subr.mxu0 0.0
  %2303 = vmatpush1.msra.mxu0 0.0
  %2304 = vmatprep.subr.mxu0 0.0
  %2305 = vmatpush1.msra.mxu0 0.0
  %2306 = vmatprep.subr.mxu0 0.0
  %2307 = vmatpush1.msra.mxu0 0.0
  %2308 = vmatprep.subr.mxu0 0.0
  %2309 = vmatpush1.msra.mxu0 0.0
  %2310 = vmatprep.mubr.f32.mxu0 0.0
  %2311 = vmatmul.mubr.f32.gmra.mrb[0].mxu0 %v2244
  %v2312 = vpop.f32.mrb[0].mxu0
  %v2313 = vadd.f32 0.0, %v2312
  %v2314 = vpop.f32.mrb[0].mxu0
  %v2315 = vadd.f32 0.0, %v2314
  %2316 = vdwg.mxu0
  %2317 = vmatprep.subr.mxu0 0.0
  %2318 = vmatpush1.msra.mxu0 %v123
  %2319 = vmatprep.subr.mxu0 0.0
  %2320 = vmatpush1.msra.mxu0 %v126
  %2321 = vmatprep.subr.mxu0 0.0
  %2322 = vmatpush1.msra.mxu0 %v129
  %2323 = vmatprep.subr.mxu0 0.0
  %2324 = vmatpush1.msra.mxu0 %v132
  %2325 = vmatprep.subr.mxu0 0.0
  %2326 = vmatpush1.msra.mxu0 %v135
  %2327 = vmatprep.subr.mxu0 0.0
  %2328 = vmatpush1.msra.mxu0 %v138
  %2329 = vmatprep.subr.mxu0 0.0
  %2330 = vmatpush1.msra.mxu0 %v141
  %2331 = vmatprep.subr.mxu0 0.0
  %2332 = vmatpush1.msra.mxu0 %v144
  %2333 = vmatprep.subr.mxu0 0.0
  %2334 = vmatpush1.msra.mxu0 0.0
  %2335 = vmatprep.subr.mxu0 0.0
  %2336 = vmatpush1.msra.mxu0 0.0
  %2337 = vmatprep.subr.mxu0 0.0
  %2338 = vmatpush1.msra.mxu0 0.0
  %2339 = vmatprep.subr.mxu0 0.0
  %2340 = vmatpush1.msra.mxu0 0.0
  %2341 = vmatprep.subr.mxu0 0.0
  %2342 = vmatpush1.msra.mxu0 0.0
  %2343 = vmatprep.subr.mxu0 0.0
  %2344 = vmatpush1.msra.mxu0 0.0
  %2345 = vmatprep.subr.mxu0 0.0
  %2346 = vmatpush1.msra.mxu0 0.0
  %2347 = vmatprep.subr.mxu0 0.0
  %2348 = vmatpush1.msra.mxu0 0.0
  %2349 = vmatprep.subr.mxu0 0.0
  %2350 = vmatpush1.msra.mxu0 0.0
  %2351 = vmatprep.subr.mxu0 0.0
  %2352 = vmatpush1.msra.mxu0 0.0
  %2353 = vmatprep.subr.mxu0 0.0
  %2354 = vmatpush1.msra.mxu0 0.0
  %2355 = vmatprep.subr.mxu0 0.0
  %2356 = vmatpush1.msra.mxu0 0.0
  %2357 = vmatprep.subr.mxu0 0.0
  %2358 = vmatpush1.msra.mxu0 0.0
  %2359 = vmatprep.subr.mxu0 0.0
  %2360 = vmatpush1.msra.mxu0 0.0
  %2361 = vmatprep.subr.mxu0 0.0
  %2362 = vmatpush1.msra.mxu0 0.0
  %2363 = vmatprep.subr.mxu0 0.0
  %2364 = vmatpush1.msra.mxu0 0.0
  %2365 = vmatprep.subr.mxu0 0.0
  %2366 = vmatpush1.msra.mxu0 0.0
  %2367 = vmatprep.subr.mxu0 0.0
  %2368 = vmatpush1.msra.mxu0 0.0
  %2369 = vmatprep.subr.mxu0 0.0
  %2370 = vmatpush1.msra.mxu0 0.0
  %2371 = vmatprep.subr.mxu0 0.0
  %2372 = vmatpush1.msra.mxu0 0.0
  %2373 = vmatprep.subr.mxu0 0.0
  %2374 = vmatpush1.msra.mxu0 0.0
  %2375 = vmatprep.subr.mxu0 0.0
  %2376 = vmatpush1.msra.mxu0 0.0
  %2377 = vmatprep.subr.mxu0 0.0
  %2378 = vmatpush1.msra.mxu0 0.0
  %2379 = vmatprep.subr.mxu0 0.0
  %2380 = vmatpush1.msra.mxu0 0.0
  %2381 = vmatprep.mubr.f32.mxu0 0.0
  %2382 = vmatmul.mubr.f32.gmra.mrb[0].mxu0 %v2244
  %v2383 = vpop.f32.mrb[0].mxu0
  %v2384 = vadd.f32 0.0, %v2383
  %v2385 = vpop.f32.mrb[0].mxu0
  %2386 = vdwg.mxu0
  %v2387 = vadd.f32 %v334, %v2313
  %v2388 = vadd.f32 %v335, %v2315
  %v2389 = vtanh.pop %v2387
  %v2390 = vtanh.pop %v2388
  %2391 = vmatprep.subr.mxu0 0.0
  %2392 = vmatpush1.msra.mxu0 %v145
  %2393 = vmatprep.subr.mxu0 0.0
  %2394 = vmatpush1.msra.mxu0 %v146
  %2395 = vmatprep.subr.mxu0 0.0
  %2396 = vmatpush1.msra.mxu0 %v147
  %2397 = vmatprep.subr.mxu0 0.0
  %2398 = vmatpush1.msra.mxu0 %v148
  %2399 = vmatprep.subr.mxu0 0.0
  %2400 = vmatpush1.msra.mxu0 %v149
  %2401 = vmatprep.subr.mxu0 0.0
  %2402 = vmatpush1.msra.mxu0 %v150
  %2403 = vmatprep.subr.mxu0 0.0
  %2404 = vmatpush1.msra.mxu0 %v151
  %2405 = vmatprep.subr.mxu0 0.0
  %2406 = vmatpush1.msra.mxu0 %v152
  %2407 = vmatprep.subr.mxu0 0.0
  %2408 = vmatpush1.msra.mxu0 %v153
  %2409 = vmatprep.subr.mxu0 0.0
  %2410 = vmatpush1.msra.mxu0 %v154
  %2411 = vmatprep.subr.mxu0 0.0
  %2412 = vmatpush1.msra.mxu0 %v155
  %2413 = vmatprep.subr.mxu0 0.0
  %2414 = vmatpush1.msra.mxu0 %v156
  %2415 = vmatprep.subr.mxu0 0.0
  %2416 = vmatpush1.msra.mxu0 %v157
  %2417 = vmatprep.subr.mxu0 0.0
  %2418 = vmatpush1.msra.mxu0 %v158
  %2419 = vmatprep.subr.mxu0 0.0
  %2420 = vmatpush1.msra.mxu0 %v159
  %2421 = vmatprep.subr.mxu0 0.0
  %2422 = vmatpush1.msra.mxu0 %v160
  %2423 = vmatprep.subr.mxu0 0.0
  %2424 = vmatpush1.msra.mxu0 %v161
  %2425 = vmatprep.subr.mxu0 0.0
  %2426 = vmatpush1.msra.mxu0 %v162
  %2427 = vmatprep.subr.mxu0 0.0
  %2428 = vmatpush1.msra.mxu0 %v163
  %2429 = vmatprep.subr.mxu0 0.0
  %2430 = vmatpush1.msra.mxu0 %v164
  %2431 = vmatprep.subr.mxu0 0.0
  %2432 = vmatpush1.msra.mxu0 %v165
  %2433 = vmatprep.subr.mxu0 0.0
  %2434 = vmatpush1.msra.mxu0 %v166
  %2435 = vmatprep.subr.mxu0 0.0
  %2436 = vmatpush1.msra.mxu0 %v167
  %2437 = vmatprep.subr.mxu0 0.0
  %2438 = vmatpush1.msra.mxu0 %v168
  %2439 = vmatprep.subr.mxu0 0.0
  %2440 = vmatpush1.msra.mxu0 %v169
  %2441 = vmatprep.subr.mxu0 0.0
  %2442 = vmatpush1.msra.mxu0 %v170
  %2443 = vmatprep.subr.mxu0 0.0
  %2444 = vmatpush1.msra.mxu0 %v171
  %2445 = vmatprep.subr.mxu0 0.0
  %2446 = vmatpush1.msra.mxu0 %v172
  %2447 = vmatprep.subr.mxu0 0.0
  %2448 = vmatpush1.msra.mxu0 %v173
  %2449 = vmatprep.subr.mxu0 0.0
  %2450 = vmatpush1.msra.mxu0 %v174
  %2451 = vmatprep.subr.mxu0 0.0
  %2452 = vmatpush1.msra.mxu0 %v175
  %2453 = vmatprep.subr.mxu0 0.0
  %2454 = vmatpush1.msra.mxu0 %v176
  %2455 = vmatprep.mubr.f32.mxu0 %v2390
  %2456 = vmatmul.mubr.f32.gmra.mrb[0].mxu0 %v2389
  %v2457 = vpop.f32.mrb[0].mxu0
  %v2458 = vadd.f32 0.0, %v2457
  %v2459 = vpop.f32.mrb[0].mxu0
  %2460 = vdwg.mxu0
  %v2461 = vsel %vm562, %v2458, -inf
  %2462 = vmax.xlane.f32.xlu0 %v2461
  %v2463 = vpop.xlane.xlu0 %2462
  %v2464 = vsub.f32 %v2458, %v2463
  %v2465 = vmul.f32 %v2464, 1.442695
  %v2466 = vpow.pop %v2465
  %v2467 = vsel %vm562, %v2466, 0.0
  %2468 = vadd.xlane.f32.xlu0 %v2467
  %v2469 = vpop.xlane.xlu0 %2468
  %v2470 = vrcp.pop %v2469
  %v2471 = vmul.f32 %v2466, %v2470
  %v2472 = vmul.f32 %v2471, %v320
  %v2473 = vsel %vm562, %v2472, 0.0
  %2474 = vadd.xlane.f32.xlu0 %v2473
  %v2475 = vpop.xlane.xlu0 %2474
  %v2476 = vadd.f32 %v2475, %v342
  %2478 = vset.pattern.permute.xlu0 7
  %2479 = vperm.xlu0 %2478, %v2476
  %v2480 = vpop.permute.xlu0 %2479
  %v2482 = vmul.f32 %v2480, %v178
  %v2483 = vadd.f32 %v2482, %v2384
  %v2484 = vadd.f32 %v2483, %v179
  %v2485 = vxor.u32 %v2484, 2147483648
  %v2486 = vmul.f32 %v2485, 1.442695
  %v2487 = vpow.pop %v2486
  %v2488 = vadd.f32 %v2487, 1.0
  %v2489 = vrcp.pop %v2488
  %v2490 = vmul.f32 1.0, %v2489
  %v2491 = vtanh.pop %v2484
  %v2492 = vmul.f32 %v2490, %v2231
  %2494 = vrot.lane.b32.xlu0 %v2491, 64
  %v2495 = vpop.permute.xlu0 %2494
  %v2497 = vmul.f32 %v2490, %v2495
  %2499 = vrot.lane.b32.xlu0 %v2497, 32
  %v2500 = vpop.permute.xlu0 %2499
  %v2502 = vadd.f32 %v2492, %v2500
  %v2503 = vtanh.pop %v2502
  %2505 = vrot.lane.b32.xlu0 %v2503, 64
  %v2506 = vpop.permute.xlu0 %2505
  %v2508 = vmul.f32 %v2490, %v2506
  %2510 = vrot.lane.b32.xlu0 %v180, 96
  %v2511 = vpop.permute.xlu0 %2510
  %v2513 = vmul.f32 %v2508, %v2511
  %2515 = vrot.lane.b32.xlu0 %v2513, 32
  %v2516 = vpop.permute.xlu0 %2515
  %v2518 = vsel %vm615, %v2516, 0.0
  %2519 = vadd.xlane.f32.xlu0 %v2518
  %v2520 = vpop.xlane.xlu0 %2519
  %2522 = vrot.lane.b32.xlu0 %v320, 120
  %v2523 = vpop.permute.xlu0 %2522
  %v2525 = vmul.f32 %v2471, %v2523
  %v2526 = vsel %vm562, %v2525, 0.0
  %2527 = vadd.xlane.f32.xlu0 %v2526
  %v2528 = vpop.xlane.xlu0 %2527
  %v2529 = vadd.f32 %v2520, %v2528
  %v2530 = vadd.f32 %v2529, %v181
  %2532 = vrot.lane.b32.xlu0 %v2530, 127
  %v2533 = vpop.permute.xlu0 %2532
  %vm2535 = vcmask 7168
  %2536 = vst.msk [vmem:[%s6] sm:$0xff] %vm2535, %v2533
  // Predicated region
  $region26: #{tpu_custom_call.1} parent=0 // pred_check
    _
  $region27: #{tpu_custom_call.1} parent=0 // pred_check_branch
    %2538 = sbr.rel (0) target = $region29
  $region28: #{tpu_custom_call.1} parent=0 // pred_region
    _
  $region29: #{tpu_custom_call.1} parent=0 // pred_fallthru
    _
  // Predicated region
  $region30: #{tpu_custom_call.1} parent=0 // pred_check
    _
  $region31: #{tpu_custom_call.1} parent=0 // pred_check_branch
    %2540 = sbr.rel (0) target = $region33
  $region32: #{tpu_custom_call.1} parent=0 // pred_region
    _
  $region33: #{tpu_custom_call.1} parent=0 // pred_fallthru
    _

</llo_original>
